<compile_context>
chip_gen: v6e
topology: v6e:2x2x1
jax: 0.10.0
libtpu: 0.0.40
codegen_flags: <defaults>
</compile_context>

<pallas_src>
import functools

import jax
import jax.numpy as jnp
import numpy as np
from jax import lax
from jax.experimental import pallas as pl
from jax.experimental.pallas import tpu as pltpu

INTER = 24                 # self.inter_size in the PyTorch module
EPS = 1e-5                 # BatchNorm3d default eps
MXU_DTYPE = jnp.bfloat16   # MXU input dtype (accumulation stays f32)

MAX_TILE_N = 512           # max pixels per tile (multiple of 16)
ROW_CAP = 1024             # max MXU rows (TILE_B*TILE_N) per grid step


def _round_up(a, m):
    return ((a + m - 1) // m) * m


# ----------------------------------------------------------------------------
# Pallas kernel: one (TILE_B, TILE_N) pixel block, all four fused layers,
# plus the running per-batch spatial-sum accumulation into the output block.
# ----------------------------------------------------------------------------
def spectral_encoder_kernel(mask_needed, tiles_per_part, tile_n, hw,  # static
                            xp_ref,                  # (TILE_B, TILE_N, C) bf16
                            pool_ref,                # (TILE_B, ROWS)      bf16
                            w1_ref, s1_ref, t1_ref,  # (C, Wd), (1, Wd), (1, Wd)
                            w2_ref, s2_ref, t2_ref,  # (Wd, Wd), ...
                            w3_ref, s3_ref, t3_ref,  # (Wd, Wd), ...
                            w4_ref, s4_ref, t4_ref,  # (Wd, F), (1, F), (1, F)
                            out_ref):                # (TILE_B, F) f32 (resident over t)
    t = pl.program_id(2)

    @pl.when(t == 0)
    def _():
        out_ref[...] = jnp.zeros_like(out_ref)

    tb, tn, c = xp_ref.shape
    rows = tb * tn
    x = xp_ref[...].reshape(rows, c)                             # (ROWS, C) bf16

    # ---- conv1 (+BN1+ReLU): single (ROWS, C) @ (C, Wd) matmul ---------------
    h1 = jnp.maximum(
        jnp.dot(x, w1_ref[...], preferred_element_type=jnp.float32)
        * s1_ref[...] + t1_ref[...], 0.0)                        # (ROWS, Wd) f32

    # ---- conv2 (+BN2+ReLU): block-Toeplitz weight, single matmul ------------
    h2 = jnp.maximum(
        jnp.dot(h1.astype(w2_ref.dtype), w2_ref[...],
                preferred_element_type=jnp.float32)
        * s2_ref[...] + t2_ref[...], 0.0)

    # ---- conv3, residual add (pre-BN), BN3 + ReLU ---------------------------
    y3 = jnp.dot(h2.astype(w3_ref.dtype), w3_ref[...],
                 preferred_element_type=jnp.float32)
    h3 = jnp.maximum((h1 + y3) * s3_ref[...] + t3_ref[...], 0.0)

    # ---- conv4 (full-depth, valid) + BN4 + ReLU -----------------------------
    h4 = jnp.maximum(
        jnp.dot(h3.astype(w4_ref.dtype), w4_ref[...],
                preferred_element_type=jnp.float32)
        * s4_ref[...] + t4_ref[...], 0.0)                        # (ROWS, F) f32

    # ---- zero out padded pixel rows (only traced if HW was padded) ----------
    if mask_needed:
        p = pl.program_id(1)
        pix_start = (p * tiles_per_part + t) * tile_n
        local = lax.broadcasted_iota(jnp.int32, (rows, 1), 0) % tile_n
        h4 = jnp.where(pix_start + local < hw, h4, 0.0)

    # ---- per-batch spatial sum as a block-diagonal ones matmul (MXU) --------
    out_ref[...] += jnp.dot(pool_ref[...], h4.astype(pool_ref.dtype),
                            preferred_element_type=jnp.float32)


# ----------------------------------------------------------------------------
# Parameter initialization (deterministic, PyTorch-shaped weights).
# ----------------------------------------------------------------------------
def init_params(key, input_channels, feature_dim):
    inter = INTER
    k4 = (input_channels - 7 + 2 * 1) // 2 + 1   # conv4 depth kernel (== D1)
    keys = jax.random.split(key, 24)

    def rnd(k, shape, scale=0.1):
        return scale * jax.random.normal(k, shape, jnp.float32)

    def bn(ka, kb, kc, kd, c):
        gamma = 1.0 + 0.1 * jax.random.normal(ka, (c,), jnp.float32)
        beta = 0.1 * jax.random.normal(kb, (c,), jnp.float32)
        rmean = 0.1 * jax.random.normal(kc, (c,), jnp.float32)
        rvar = 0.9 + 0.1 * jnp.abs(jax.random.normal(kd, (c,), jnp.float32))
        return gamma, beta, rmean, rvar

    params = dict(
        w1=rnd(keys[0], (inter, 1, 7)), b1=rnd(keys[1], (inter,)),
        w2=rnd(keys[2], (inter, inter, 7)), b2=rnd(keys[3], (inter,)),
        w3=rnd(keys[4], (inter, inter, 7)), b3=rnd(keys[5], (inter,)),
        w4=rnd(keys[6], (feature_dim, inter, k4)), b4=rnd(keys[7], (feature_dim,)),
        bn1=bn(keys[8], keys[9], keys[10], keys[11], inter),
        bn2=bn(keys[12], keys[13], keys[14], keys[15], inter),
        bn3=bn(keys[16], keys[17], keys[18], keys[19], inter),
        bn4=bn(keys[20], keys[21], keys[22], keys[23], feature_dim),
    )
    return params


# ----------------------------------------------------------------------------
# Host-side weight packing: fused conv weights + folded BN affines.
# ----------------------------------------------------------------------------
def prepare_kernel_args(params, input_channels, mxu_dtype=MXU_DTYPE):
    inter = INTER
    C = input_channels
    D1 = (C - 7 + 2) // 2 + 1                   # depth after conv1 (stride 2)
    Wd = D1 * inter                             # fused lane width

    # conv1: fold stride-2 + pad-1 depth windowing into a (C, Wd) weight.
    # Input index for output depth d, tap kk is 2*d - 1 + kk; taps that would
    # multiply the zero padding are simply dropped (no input pad required).
    w1 = np.asarray(params["w1"])[:, 0, :]      # (out=inter, k=7)
    W1f = np.zeros((C, Wd), np.float32)
    for d in range(D1):
        for kk in range(7):
            c = 2 * d - 1 + kk
            if 0 <= c < C:
                W1f[c, d * inter:(d + 1) * inter] = w1[:, kk]

    # conv2/conv3: block-Toeplitz (banded) weights, zero blocks = padding.
    def toeplitz(w):
        w = np.asarray(w)                       # (out, in, 7)
        Wf = np.zeros((Wd, Wd), np.float32)
        for d_out in range(D1):
            for d_in in range(D1):
                k = d_in - d_out + 3
                if 0 <= k <= 6:
                    Wf[d_in * inter:(d_in + 1) * inter,
                       d_out * inter:(d_out + 1) * inter] = w[:, :, k].T
        return Wf

    W2f = toeplitz(params["w2"])
    W3f = toeplitz(params["w3"])

    # conv4: full-depth valid conv -> (Wd, F).
    w4 = np.asarray(params["w4"])               # (F, inter, D1)
    F = w4.shape[0]
    W4f = np.transpose(w4, (2, 1, 0)).reshape(Wd, F)

    # Fold conv bias + BN(running stats) into per-lane scale/shift, pre-tiled
    # to the fused lane width (no per-depth broadcasts in-kernel).
    def fold(bias, bn_params, rep):
        gamma, beta, rmean, rvar = (np.asarray(p) for p in bn_params)
        scale = gamma / np.sqrt(rvar + EPS)
        shift = (np.asarray(bias) - rmean) * scale + beta
        return (np.tile(scale, rep)[None, :].astype(np.float32),
                np.tile(shift, rep)[None, :].astype(np.float32))

    s1, t1 = fold(params["b1"], params["bn1"], D1)
    s2, t2 = fold(params["b2"], params["bn2"], D1)
    s3, t3 = fold(params["b3"], params["bn3"], D1)
    s4, t4 = fold(params["b4"], params["bn4"], 1)

    mx = lambda a: jnp.asarray(a, mxu_dtype)
    f32 = lambda a: jnp.asarray(a, jnp.float32)
    return (mx(W1f), f32(s1), f32(t1),
            mx(W2f), f32(s2), f32(t2),
            mx(W3f), f32(s3), f32(t3),
            mx(W4f), f32(s4), f32(t4))


# ----------------------------------------------------------------------------
# Static tiling decisions.
# ----------------------------------------------------------------------------
def _choose_tiling(B, HW):
    # Pixel tile: always a multiple of 16 (legal BlockSpec + trivially mergeable
    # with the batch rows in bf16); pad HW up when necessary and mask in-kernel.
    tile_n = min(_round_up(HW, 16), MAX_TILE_N)
    hw_padded = _round_up(HW, tile_n)
    tiles = hw_padded // tile_n
    mask_needed = hw_padded != HW

    # Batch packing: largest divisor of B keeping the matmul M <= ROW_CAP rows
    # (v7x 64 MiB VMEM budget: ~5 live f32 intermediates * ROWS * 256 lanes).
    max_tb = max(1, ROW_CAP // tile_n)
    tile_b = 1
    for d in range(min(B, max_tb), 0, -1):
        if B % d == 0:
            tile_b = d
            break
    n_bblocks = B // tile_b

    # v7x dual-TC path for small batches: emit per-part partial sums so both
    # TensorCores can work on one batch element; reduced in XLA afterwards.
    n_parts = 2 if (n_bblocks == 1 and tiles > 1 and tiles % 2 == 0) else 1
    tiles_per_part = tiles // n_parts
    return tile_b, tile_n, hw_padded, n_bblocks, n_parts, tiles_per_part, mask_needed


# ----------------------------------------------------------------------------
# Wrapper: pixel-major layout, batch-packed tiles, pooled (B, F) output.
# ----------------------------------------------------------------------------
@functools.partial(jax.jit, static_argnames=("feature_dim",))
def spectral_encoder_forward(x, kernel_weights, feature_dim):
    B, C, H, W = x.shape
    HW = H * W
    F = feature_dim

    (tile_b, tile_n, hw_padded, n_bblocks,
     n_parts, tiles_per_part, mask_needed) = _choose_tiling(B, HW)
    rows = tile_b * tile_n

    # (B, C, H, W) -> (B, HW, C) pixel-major, bf16 for the MXU (no depth pad).
    x_pix = jnp.transpose(x, (0, 2, 3, 1)).reshape(B, HW, C).astype(MXU_DTYPE)
    if mask_needed:
        x_pix = jnp.pad(x_pix, ((0, 0), (0, hw_padded - HW), (0, 0)))

    # Block-diagonal ones matrix: per-batch-element spatial sum as one matmul.
    pool = (lax.broadcasted_iota(jnp.int32, (tile_b, rows), 1) // tile_n ==
            lax.broadcasted_iota(jnp.int32, (tile_b, rows), 0)).astype(MXU_DTYPE)

    kern = functools.partial(spectral_encoder_kernel,
                             mask_needed, tiles_per_part, tile_n, HW)

    in_specs = [pl.BlockSpec((tile_b, tile_n, C),
                             lambda bb, p, t: (bb, p * tiles_per_part + t, 0)),
                pl.BlockSpec(pool.shape, lambda bb, p, t: (0, 0))]
    in_specs += [pl.BlockSpec(w.shape, lambda bb, p, t: (0, 0))
                 for w in kernel_weights]

    Wd = kernel_weights[3].shape[0]
    flops = 2 * B * hw_padded * (C * Wd + 2 * Wd * Wd + Wd * F + F)
    bytes_accessed = (x_pix.size * x_pix.dtype.itemsize
                      + sum(w.size * w.dtype.itemsize for w in kernel_weights)
                      + n_bblocks * n_parts * tile_b * F * 4)

    partial_sums = pl.pallas_call(
        kern,
        out_shape=jax.ShapeDtypeStruct((n_bblocks, n_parts, tile_b, F),
                                       jnp.float32),
        grid=(n_bblocks, n_parts, tiles_per_part),
        in_specs=in_specs,
        out_specs=pl.BlockSpec((None, None, tile_b, F),
                               lambda bb, p, t: (bb, p, 0, 0)),
        compiler_params=pltpu.CompilerParams(
            dimension_semantics=("parallel", "parallel", "arbitrary"),
            vmem_limit_bytes=32 * 1024 * 1024),
        cost_estimate=pl.CostEstimate(flops=int(flops), transcendentals=0,
                                      bytes_accessed=int(bytes_accessed)),
    )(x_pix, pool, *kernel_weights)

    # Reduce the (optional) per-part partial sums and normalize by true HW.
    out = partial_sums.sum(axis=1) * (1.0 / HW)        # (n_bblocks, tile_b, F)
    return out.reshape(B, F)


# ----------------------------------------------------------------------------
# Pure-JAX reference (independent math path via lax.conv) for validation.
# ----------------------------------------------------------------------------
def reference_forward(x, params):
    B, C, H, W = x.shape
    xr = jnp.transpose(x, (0, 2, 3, 1)).reshape(B * H * W, 1, C)

    def conv1d(v, w, stride, pad):
        return lax.conv_general_dilated(
            v, w, (stride,), [(pad, pad)],
            dimension_numbers=("NCH", "OIH", "NCH"),
            precision=lax.Precision.HIGHEST)

    def bn(y, p):
        g, b, m, v = p
        return ((y - m[None, :, None]) / jnp.sqrt(v[None, :, None] + EPS)
                * g[None, :, None] + b[None, :, None])

    y = conv1d(xr, params["w1"], 2, 1) + params["b1"][None, :, None]
    y = jax.nn.relu(bn(y, params["bn1"]))
    res = y
    y = conv1d(y, params["w2"], 1, 3) + params["b2"][None, :, None]
    y = jax.nn.relu(bn(y, params["bn2"]))
    y = conv1d(y, params["w3"], 1, 3) + params["b3"][None, :, None]
    y = res + y
    y = jax.nn.relu(bn(y, params["bn3"]))
    y = conv1d(y, params["w4"], 1, 0) + params["b4"][None, :, None]  # (N, F, 1)
    y = jax.nn.relu(bn(y, params["bn4"]))
    y = y[:, :, 0].reshape(B, H * W, -1).mean(axis=1)                # (B, F)
    return y


if __name__ == "__main__":
    # Small, forward-consistent shapes (batch=8 exercises the batch packing:
    # 8 x 64 = 512 MXU rows per grid step).
    batch = 8
    input_channels = 16   # spectral bands (depth of the 3-D conv)
    patch_size = 8        # H = W = patch_size
    feature_dim = 32

    key = jax.random.PRNGKey(0)
    kx, kp = jax.random.split(key)
    x = jax.random.normal(kx, (batch, input_channels, patch_size, patch_size),
                          jnp.float32)

    params = init_params(kp, input_channels, feature_dim)
    kernel_weights = prepare_kernel_args(params, input_channels)

    out = spectral_encoder_forward(x, kernel_weights, feature_dim=feature_dim)
    out = jax.block_until_ready(out)

    ref = reference_forward(x, params)
    # bf16 MXU inputs give ~1e-2 relative error vs the f32 reference
    # (inference-grade accuracy by design).
    np.testing.assert_allclose(np.asarray(out), np.asarray(ref),
                               rtol=2e-2, atol=2e-2)

    print("KERNEL_OK")
</pallas_src>

<mosaic_0001>
module attributes {stable_mosaic.version = 11 : i64} {
  func.func @spectral_encoder_kernel(%arg0: i32, %arg1: i32, %arg2: i32, %arg3: memref<8x64x16xbf16, #tpu.memory_space<vmem>>, %arg4: memref<8x512xbf16, #tpu.memory_space<vmem>>, %arg5: memref<16x144xbf16, #tpu.memory_space<vmem>>, %arg6: memref<1x144xf32, #tpu.memory_space<vmem>>, %arg7: memref<1x144xf32, #tpu.memory_space<vmem>>, %arg8: memref<144x144xbf16, #tpu.memory_space<vmem>>, %arg9: memref<1x144xf32, #tpu.memory_space<vmem>>, %arg10: memref<1x144xf32, #tpu.memory_space<vmem>>, %arg11: memref<144x144xbf16, #tpu.memory_space<vmem>>, %arg12: memref<1x144xf32, #tpu.memory_space<vmem>>, %arg13: memref<1x144xf32, #tpu.memory_space<vmem>>, %arg14: memref<144x32xbf16, #tpu.memory_space<vmem>>, %arg15: memref<1x32xf32, #tpu.memory_space<vmem>>, %arg16: memref<1x32xf32, #tpu.memory_space<vmem>>, %arg17: memref<1x1x8x32xf32, #tpu.memory_space<vmem>>) attributes {dimension_semantics = [#tpu.dimension_semantics<parallel>, #tpu.dimension_semantics<parallel>, #tpu.dimension_semantics<arbitrary>], iteration_bounds = array<i64: 1, 1, 1>, scalar_prefetch = 0 : i64, scratch_operands = 0 : i64, tpu.core_type = #tpu.core_type<tc>, window_params = [{transform_indices = @transform_0, window_bounds = array<i64: 8, 64, 16>}, {pipeline_mode = #tpu.pipeline_mode<synchronous>, transform_indices = @transform_1, window_bounds = array<i64: 8, 512>}, {pipeline_mode = #tpu.pipeline_mode<synchronous>, transform_indices = @transform_2, window_bounds = array<i64: 16, 144>}, {pipeline_mode = #tpu.pipeline_mode<synchronous>, transform_indices = @transform_3, window_bounds = array<i64: 1, 144>}, {pipeline_mode = #tpu.pipeline_mode<synchronous>, transform_indices = @transform_4, window_bounds = array<i64: 1, 144>}, {pipeline_mode = #tpu.pipeline_mode<synchronous>, transform_indices = @transform_5, window_bounds = array<i64: 144, 144>}, {pipeline_mode = #tpu.pipeline_mode<synchronous>, transform_indices = @transform_6, window_bounds = array<i64: 1, 144>}, {pipeline_mode = #tpu.pipeline_mode<synchronous>, transform_indices = @transform_7, window_bounds = array<i64: 1, 144>}, {pipeline_mode = #tpu.pipeline_mode<synchronous>, transform_indices = @transform_8, window_bounds = array<i64: 144, 144>}, {pipeline_mode = #tpu.pipeline_mode<synchronous>, transform_indices = @transform_9, window_bounds = array<i64: 1, 144>}, {pipeline_mode = #tpu.pipeline_mode<synchronous>, transform_indices = @transform_10, window_bounds = array<i64: 1, 144>}, {pipeline_mode = #tpu.pipeline_mode<synchronous>, transform_indices = @transform_11, window_bounds = array<i64: 144, 32>}, {pipeline_mode = #tpu.pipeline_mode<synchronous>, transform_indices = @transform_12, window_bounds = array<i64: 1, 32>}, {pipeline_mode = #tpu.pipeline_mode<synchronous>, transform_indices = @transform_13, window_bounds = array<i64: 1, 32>}, {transform_indices = @transform_14, window_bounds = array<i64: 1, 1, 8, 32>}]} {
    %c0_i32 = arith.constant 0 : i32
    %0 = arith.cmpi eq, %arg2, %c0_i32 : i32
    %1 = arith.extui %0 : i1 to i32
    %c0_i32_0 = arith.constant 0 : i32
    %2 = arith.cmpi ne, %1, %c0_i32_0 : i32
    scf.if %2 {
      %cst_45 = arith.constant 0.000000e+00 : f32
      %58 = vector.broadcast %cst_45 : f32 to vector<8x32xf32>
      %c0_46 = arith.constant 0 : index
      %c0_47 = arith.constant 0 : index
      %c0_48 = arith.constant 0 : index
      %c0_49 = arith.constant 0 : index
      %59 = vector.load %arg17[%c0_46, %c0_47, %c0_48, %c0_49] : memref<1x1x8x32xf32, #tpu.memory_space<vmem>>, vector<1x1x8x32xf32>
      %60 = vector.shape_cast %59 : vector<1x1x8x32xf32> to vector<8x32xf32>
      %61 = vector.shape_cast %58 : vector<8x32xf32> to vector<1x1x8x32xf32>
      tpu.vector_store %arg17[%c0_46, %c0_47, %c0_48, %c0_49], %61 {strides = array<i32>} : memref<1x1x8x32xf32, #tpu.memory_space<vmem>>, vector<1x1x8x32xf32>,
    } else {
    }
    %c0 = arith.constant 0 : index
    %c0_1 = arith.constant 0 : index
    %c0_2 = arith.constant 0 : index
    %3 = vector.load %arg3[%c0, %c0_1, %c0_2] : memref<8x64x16xbf16, #tpu.memory_space<vmem>>, vector<8x64x16xbf16>
    %4 = vector.shape_cast %3 : vector<8x64x16xbf16> to vector<512x16xbf16>
    %c0_3 = arith.constant 0 : index
    %c0_4 = arith.constant 0 : index
    %5 = vector.load %arg5[%c0_3, %c0_4] : memref<16x144xbf16, #tpu.memory_space<vmem>>, vector<16x144xbf16>
    %cst = arith.constant dense<0.000000e+00> : vector<512x144xf32>
    %6 = tpu.matmul %4, %5, %cst {dimension_numbers = #tpu.dot_dimension_numbers<[1], [0], [0], [1], [0, 0, 1, 1], [], []>} : vector<512x16xbf16>, vector<16x144xbf16>, vector<512x144xf32> -> vector<512x144xf32>
    %c0_5 = arith.constant 0 : index
    %c0_6 = arith.constant 0 : index
    %7 = vector.load %arg6[%c0_5, %c0_6] : memref<1x144xf32, #tpu.memory_space<vmem>>, vector<1x144xf32>
    %8 = vector.broadcast %7 : vector<1x144xf32> to vector<512x144xf32>
    %9 = arith.mulf %6, %8 : vector<512x144xf32>
    %c0_7 = arith.constant 0 : index
    %c0_8 = arith.constant 0 : index
    %10 = vector.load %arg7[%c0_7, %c0_8] : memref<1x144xf32, #tpu.memory_space<vmem>>, vector<1x144xf32>
    %11 = vector.broadcast %10 : vector<1x144xf32> to vector<512x144xf32>
    %12 = arith.addf %9, %11 : vector<512x144xf32>
    %cst_9 = arith.constant 0.000000e+00 : f32
    %13 = vector.broadcast %cst_9 : f32 to vector<512x144xf32>
    %14 = arith.maximumf %12, %13 : vector<512x144xf32>
    %15 = arith.truncf %14 : vector<512x144xf32> to vector<512x144xbf16>
    %c0_10 = arith.constant 0 : index
    %c0_11 = arith.constant 0 : index
    %16 = vector.load %arg8[%c0_10, %c0_11] : memref<144x144xbf16, #tpu.memory_space<vmem>>, vector<144x144xbf16>
    %cst_12 = arith.constant dense<0.000000e+00> : vector<512x144xf32>
    %17 = tpu.matmul %15, %16, %cst_12 {dimension_numbers = #tpu.dot_dimension_numbers<[1], [0], [0], [1], [0, 0, 1, 1], [], []>} : vector<512x144xbf16>, vector<144x144xbf16>, vector<512x144xf32> -> vector<512x144xf32>
    %c0_13 = arith.constant 0 : index
    %c0_14 = arith.constant 0 : index
    %18 = vector.load %arg9[%c0_13, %c0_14] : memref<1x144xf32, #tpu.memory_space<vmem>>, vector<1x144xf32>
    %19 = vector.broadcast %18 : vector<1x144xf32> to vector<512x144xf32>
    %20 = arith.mulf %17, %19 : vector<512x144xf32>
    %c0_15 = arith.constant 0 : index
    %c0_16 = arith.constant 0 : index
    %21 = vector.load %arg10[%c0_15, %c0_16] : memref<1x144xf32, #tpu.memory_space<vmem>>, vector<1x144xf32>
    %22 = vector.broadcast %21 : vector<1x144xf32> to vector<512x144xf32>
    %23 = arith.addf %20, %22 : vector<512x144xf32>
    %cst_17 = arith.constant 0.000000e+00 : f32
    %24 = vector.broadcast %cst_17 : f32 to vector<512x144xf32>
    %25 = arith.maximumf %23, %24 : vector<512x144xf32>
    %26 = arith.truncf %25 : vector<512x144xf32> to vector<512x144xbf16>
    %c0_18 = arith.constant 0 : index
    %c0_19 = arith.constant 0 : index
    %27 = vector.load %arg11[%c0_18, %c0_19] : memref<144x144xbf16, #tpu.memory_space<vmem>>, vector<144x144xbf16>
    %cst_20 = arith.constant dense<0.000000e+00> : vector<512x144xf32>
    %28 = tpu.matmul %26, %27, %cst_20 {dimension_numbers = #tpu.dot_dimension_numbers<[1], [0], [0], [1], [0, 0, 1, 1], [], []>} : vector<512x144xbf16>, vector<144x144xbf16>, vector<512x144xf32> -> vector<512x144xf32>
    %29 = arith.addf %14, %28 : vector<512x144xf32>
    %c0_21 = arith.constant 0 : index
    %c0_22 = arith.constant 0 : index
    %30 = vector.load %arg12[%c0_21, %c0_22] : memref<1x144xf32, #tpu.memory_space<vmem>>, vector<1x144xf32>
    %31 = vector.broadcast %30 : vector<1x144xf32> to vector<512x144xf32>
    %32 = arith.mulf %29, %31 : vector<512x144xf32>
    %c0_23 = arith.constant 0 : index
    %c0_24 = arith.constant 0 : index
    %33 = vector.load %arg13[%c0_23, %c0_24] : memref<1x144xf32, #tpu.memory_space<vmem>>, vector<1x144xf32>
    %34 = vector.broadcast %33 : vector<1x144xf32> to vector<512x144xf32>
    %35 = arith.addf %32, %34 : vector<512x144xf32>
    %cst_25 = arith.constant 0.000000e+00 : f32
    %36 = vector.broadcast %cst_25 : f32 to vector<512x144xf32>
    %37 = arith.maximumf %35, %36 : vector<512x144xf32>
    %38 = arith.truncf %37 : vector<512x144xf32> to vector<512x144xbf16>
    %c0_26 = arith.constant 0 : index
    %c0_27 = arith.constant 0 : index
    %39 = vector.load %arg14[%c0_26, %c0_27] : memref<144x32xbf16, #tpu.memory_space<vmem>>, vector<144x32xbf16>
    %cst_28 = arith.constant dense<0.000000e+00> : vector<512x32xf32>
    %40 = tpu.matmul %38, %39, %cst_28 {dimension_numbers = #tpu.dot_dimension_numbers<[1], [0], [0], [1], [0, 0, 1, 1], [], []>} : vector<512x144xbf16>, vector<144x32xbf16>, vector<512x32xf32> -> vector<512x32xf32>
    %c0_29 = arith.constant 0 : index
    %c0_30 = arith.constant 0 : index
    %41 = vector.load %arg15[%c0_29, %c0_30] : memref<1x32xf32, #tpu.memory_space<vmem>>, vector<1x32xf32>
    %42 = vector.broadcast %41 : vector<1x32xf32> to vector<512x32xf32>
    %43 = arith.mulf %40, %42 : vector<512x32xf32>
    %c0_31 = arith.constant 0 : index
    %c0_32 = arith.constant 0 : index
    %44 = vector.load %arg16[%c0_31, %c0_32] : memref<1x32xf32, #tpu.memory_space<vmem>>, vector<1x32xf32>
    %45 = vector.broadcast %44 : vector<1x32xf32> to vector<512x32xf32>
    %46 = arith.addf %43, %45 : vector<512x32xf32>
    %cst_33 = arith.constant 0.000000e+00 : f32
    %47 = vector.broadcast %cst_33 : f32 to vector<512x32xf32>
    %48 = arith.maximumf %46, %47 : vector<512x32xf32>
    %c0_34 = arith.constant 0 : index
    %c0_35 = arith.constant 0 : index
    %c0_36 = arith.constant 0 : index
    %c0_37 = arith.constant 0 : index
    %49 = vector.load %arg17[%c0_34, %c0_35, %c0_36, %c0_37] : memref<1x1x8x32xf32, #tpu.memory_space<vmem>>, vector<1x1x8x32xf32>
    %50 = vector.shape_cast %49 : vector<1x1x8x32xf32> to vector<8x32xf32>
    %c0_38 = arith.constant 0 : index
    %c0_39 = arith.constant 0 : index
    %51 = vector.load %arg4[%c0_38, %c0_39] : memref<8x512xbf16, #tpu.memory_space<vmem>>, vector<8x512xbf16>
    %52 = arith.truncf %48 : vector<512x32xf32> to vector<512x32xbf16>
    %cst_40 = arith.constant dense<0.000000e+00> : vector<8x32xf32>
    %53 = tpu.matmul %51, %52, %cst_40 {dimension_numbers = #tpu.dot_dimension_numbers<[1], [0], [0], [1], [0, 0, 1, 1], [], []>} : vector<8x512xbf16>, vector<512x32xbf16>, vector<8x32xf32> -> vector<8x32xf32>
    %54 = arith.addf %50, %53 : vector<8x32xf32>
    %c0_41 = arith.constant 0 : index
    %c0_42 = arith.constant 0 : index
    %c0_43 = arith.constant 0 : index
    %c0_44 = arith.constant 0 : index
    %55 = vector.load %arg17[%c0_41, %c0_42, %c0_43, %c0_44] : memref<1x1x8x32xf32, #tpu.memory_space<vmem>>, vector<1x1x8x32xf32>
    %56 = vector.shape_cast %55 : vector<1x1x8x32xf32> to vector<8x32xf32>
    %57 = vector.shape_cast %54 : vector<8x32xf32> to vector<1x1x8x32xf32>
    tpu.vector_store %arg17[%c0_41, %c0_42, %c0_43, %c0_44], %57 {strides = array<i32>} : memref<1x1x8x32xf32, #tpu.memory_space<vmem>>, vector<1x1x8x32xf32>,
    return
  }
  func.func @transform_0(%arg0: i32, %arg1: i32, %arg2: i32) -> (i32, i32, i32) {
    %c1_i32 = arith.constant 1 : i32
    %0 = arith.muli %arg1, %c1_i32 : i32
    %1 = arith.addi %0, %arg2 : i32
    %c0_i32 = arith.constant 0 : i32
    %c0_i32_0 = arith.constant 0 : i32
    return %arg0, %1, %c0_i32 : i32, i32, i32
  }
  func.func @transform_1(%arg0: i32, %arg1: i32, %arg2: i32) -> (i32, i32) {
    %c0_i32 = arith.constant 0 : i32
    %c0_i32_0 = arith.constant 0 : i32
    %c0_i32_1 = arith.constant 0 : i32
    return %c0_i32, %c0_i32_0 : i32, i32
  }
  func.func @transform_2(%arg0: i32, %arg1: i32, %arg2: i32) -> (i32, i32) {
    %c0_i32 = arith.constant 0 : i32
    %c0_i32_0 = arith.constant 0 : i32
    %c0_i32_1 = arith.constant 0 : i32
    return %c0_i32, %c0_i32_0 : i32, i32
  }
  func.func @transform_3(%arg0: i32, %arg1: i32, %arg2: i32) -> (i32, i32) {
    %c0_i32 = arith.constant 0 : i32
    %c0_i32_0 = arith.constant 0 : i32
    %c0_i32_1 = arith.constant 0 : i32
    return %c0_i32, %c0_i32_0 : i32, i32
  }
  func.func @transform_4(%arg0: i32, %arg1: i32, %arg2: i32) -> (i32, i32) {
    %c0_i32 = arith.constant 0 : i32
    %c0_i32_0 = arith.constant 0 : i32
    %c0_i32_1 = arith.constant 0 : i32
    return %c0_i32, %c0_i32_0 : i32, i32
  }
  func.func @transform_5(%arg0: i32, %arg1: i32, %arg2: i32) -> (i32, i32) {
    %c0_i32 = arith.constant 0 : i32
    %c0_i32_0 = arith.constant 0 : i32
    %c0_i32_1 = arith.constant 0 : i32
    return %c0_i32, %c0_i32_0 : i32, i32
  }
  func.func @transform_6(%arg0: i32, %arg1: i32, %arg2: i32) -> (i32, i32) {
    %c0_i32 = arith.constant 0 : i32
    %c0_i32_0 = arith.constant 0 : i32
    %c0_i32_1 = arith.constant 0 : i32
    return %c0_i32, %c0_i32_0 : i32, i32
  }
  func.func @transform_7(%arg0: i32, %arg1: i32, %arg2: i32) -> (i32, i32) {
    %c0_i32 = arith.constant 0 : i32
    %c0_i32_0 = arith.constant 0 : i32
    %c0_i32_1 = arith.constant 0 : i32
    return %c0_i32, %c0_i32_0 : i32, i32
  }
  func.func @transform_8(%arg0: i32, %arg1: i32, %arg2: i32) -> (i32, i32) {
    %c0_i32 = arith.constant 0 : i32
    %c0_i32_0 = arith.constant 0 : i32
    %c0_i32_1 = arith.constant 0 : i32
    return %c0_i32, %c0_i32_0 : i32, i32
  }
  func.func @transform_9(%arg0: i32, %arg1: i32, %arg2: i32) -> (i32, i32) {
    %c0_i32 = arith.constant 0 : i32
    %c0_i32_0 = arith.constant 0 : i32
    %c0_i32_1 = arith.constant 0 : i32
    return %c0_i32, %c0_i32_0 : i32, i32
  }
  func.func @transform_10(%arg0: i32, %arg1: i32, %arg2: i32) -> (i32, i32) {
    %c0_i32 = arith.constant 0 : i32
    %c0_i32_0 = arith.constant 0 : i32
    %c0_i32_1 = arith.constant 0 : i32
    return %c0_i32, %c0_i32_0 : i32, i32
  }
  func.func @transform_11(%arg0: i32, %arg1: i32, %arg2: i32) -> (i32, i32) {
    %c0_i32 = arith.constant 0 : i32
    %c0_i32_0 = arith.constant 0 : i32
    %c0_i32_1 = arith.constant 0 : i32
    return %c0_i32, %c0_i32_0 : i32, i32
  }
  func.func @transform_12(%arg0: i32, %arg1: i32, %arg2: i32) -> (i32, i32) {
    %c0_i32 = arith.constant 0 : i32
    %c0_i32_0 = arith.constant 0 : i32
    %c0_i32_1 = arith.constant 0 : i32
    return %c0_i32, %c0_i32_0 : i32, i32
  }
  func.func @transform_13(%arg0: i32, %arg1: i32, %arg2: i32) -> (i32, i32) {
    %c0_i32 = arith.constant 0 : i32
    %c0_i32_0 = arith.constant 0 : i32
    %c0_i32_1 = arith.constant 0 : i32
    return %c0_i32, %c0_i32_0 : i32, i32
  }
  func.func @transform_14(%arg0: i32, %arg1: i32, %arg2: i32) -> (i32, i32, i32, i32) {
    %c0_i32 = arith.constant 0 : i32
    %c0_i32_0 = arith.constant 0 : i32
    %c0_i32_1 = arith.constant 0 : i32
    return %arg0, %arg1, %c0_i32, %c0_i32_0 : i32, i32, i32, i32
  }
}

</mosaic_0001>

<llo_original>
// kernel: spectral_encoder_forward.1
$region0: #{spectral_encoder_forward.1}
  #allocation0 [shape = 'u32[]', space=smem, size = 0x4, offset = 0x4, fixed_abs, tag = 'smem constant byte address 0x4 - core index']
  #allocation1 [shape = 'u32[144,128]{1,0:T(1,128)}', space=vmem, size = 0x12000, scoped, tag = 'internal scratch']
  %s0 = inlined_call_operand.vmem [shape: bf16[8,64,16], index: 0, kind: input, shape index: {}]
  %s1 = inlined_call_operand.vmem [shape: bf16[8,512], index: 1, kind: input, shape index: {}]
  %s2 = inlined_call_operand.vmem [shape: bf16[16,144], index: 2, kind: input, shape index: {}]
  %s3 = inlined_call_operand.vmem [shape: f32[1,144], index: 3, kind: input, shape index: {}]
  %s4 = inlined_call_operand.vmem [shape: f32[1,144], index: 4, kind: input, shape index: {}]
  %s5 = inlined_call_operand.vmem [shape: bf16[144,144], index: 5, kind: input, shape index: {}]
  %s6 = inlined_call_operand.vmem [shape: f32[1,144], index: 6, kind: input, shape index: {}]
  %s7 = inlined_call_operand.vmem [shape: f32[1,144], index: 7, kind: input, shape index: {}]
  %s8 = inlined_call_operand.vmem [shape: bf16[144,144], index: 8, kind: input, shape index: {}]
  %s9 = inlined_call_operand.vmem [shape: f32[1,144], index: 9, kind: input, shape index: {}]
  %s10 = inlined_call_operand.vmem [shape: f32[1,144], index: 10, kind: input, shape index: {}]
  %s11 = inlined_call_operand.vmem [shape: bf16[144,32], index: 11, kind: input, shape index: {}]
  %s12 = inlined_call_operand.vmem [shape: f32[1,32], index: 12, kind: input, shape index: {}]
  %s13 = inlined_call_operand.vmem [shape: f32[1,32], index: 13, kind: input, shape index: {}]
  %s14 = inlined_call_operand.vmem [shape: f32[1,1,8,32], index: 14, kind: output, shape index: {}]
  %s15 = sld [smem:[#allocation0]]
  $region70: #{spectral_encoder_forward.1} parent=0
    _
  %s17 = ssub.s32 1, %s15
  %s18 = scalar_select 0, %s17, %s15
  // Predicated region
  $region2: #{spectral_encoder_forward.1} parent=0 // pred_check
    _
  $region3: #{spectral_encoder_forward.1} parent=0 // pred_check_branch
    %20 = sbr.rel (0) target = $region5
  $region4: #{spectral_encoder_forward.1} parent=0 // pred_region
    %s21 = sadd.s32 0, 0
    %s22 = smul.u32 8, %s21
    %p23 = scmp.lt.s32.totalorder %s22, 7
    %s24 = scalar_select %p23, %s22, 7
    %s25 = smul.addr %s24, 4
    %s26 = scalar_lea.vmem %s0, %s25
    %s27 = sadd.s32 0, 0
    %s28 = smul.u32 8, %s27
  $region5: #{spectral_encoder_forward.1} parent=0 // pred_fallthru
    _
  // Predicated region
  $region6: #{spectral_encoder_forward.1} parent=0 // pred_check
    _
  $region7: #{spectral_encoder_forward.1} parent=0 // pred_check_branch
    %30 = sbr.rel (0) target = $region9
  $region8: #{spectral_encoder_forward.1} parent=0 // pred_region
    _
  $region9: #{spectral_encoder_forward.1} parent=0 // pred_fallthru
    _
  // Predicated region
  $region10: #{spectral_encoder_forward.1} parent=0 // pred_check
    _
  $region11: #{spectral_encoder_forward.1} parent=0 // pred_check_branch
    %32 = sbr.rel (0) target = $region13
  $region12: #{spectral_encoder_forward.1} parent=0 // pred_region
    _
  $region13: #{spectral_encoder_forward.1} parent=0 // pred_fallthru
    _
  // Predicated region
  $region14: #{spectral_encoder_forward.1} parent=0 // pred_check
    _
  $region15: #{spectral_encoder_forward.1} parent=0 // pred_check_branch
    %34 = sbr.rel (0) target = $region17
  $region16: #{spectral_encoder_forward.1} parent=0 // pred_region
    _
  $region17: #{spectral_encoder_forward.1} parent=0 // pred_fallthru
    _
  // Predicated region
  $region18: #{spectral_encoder_forward.1} parent=0 // pred_check
    _
  $region19: #{spectral_encoder_forward.1} parent=0 // pred_check_branch
    %36 = sbr.rel (0) target = $region21
  $region20: #{spectral_encoder_forward.1} parent=0 // pred_region
    _
  $region21: #{spectral_encoder_forward.1} parent=0 // pred_fallthru
    _
  // Predicated region
  $region22: #{spectral_encoder_forward.1} parent=0 // pred_check
    _
  $region23: #{spectral_encoder_forward.1} parent=0 // pred_check_branch
    %38 = sbr.rel (0) target = $region25
  $region24: #{spectral_encoder_forward.1} parent=0 // pred_region
    _
  $region25: #{spectral_encoder_forward.1} parent=0 // pred_fallthru
    _
  // Predicated region
  $region26: #{spectral_encoder_forward.1} parent=0 // pred_check
    _
  $region27: #{spectral_encoder_forward.1} parent=0 // pred_check_branch
    %40 = sbr.rel (0) target = $region29
  $region28: #{spectral_encoder_forward.1} parent=0 // pred_region
    _
  $region29: #{spectral_encoder_forward.1} parent=0 // pred_fallthru
    _
  // Predicated region
  $region30: #{spectral_encoder_forward.1} parent=0 // pred_check
    _
  $region31: #{spectral_encoder_forward.1} parent=0 // pred_check_branch
    %42 = sbr.rel (0) target = $region33
  $region32: #{spectral_encoder_forward.1} parent=0 // pred_region
    _
  $region33: #{spectral_encoder_forward.1} parent=0 // pred_fallthru
    _
  // Predicated region
  $region34: #{spectral_encoder_forward.1} parent=0 // pred_check
    _
  $region35: #{spectral_encoder_forward.1} parent=0 // pred_check_branch
    %44 = sbr.rel (0) target = $region37
  $region36: #{spectral_encoder_forward.1} parent=0 // pred_region
    _
  $region37: #{spectral_encoder_forward.1} parent=0 // pred_fallthru
    _
  // Predicated region
  $region38: #{spectral_encoder_forward.1} parent=0 // pred_check
    _
  $region39: #{spectral_encoder_forward.1} parent=0 // pred_check_branch
    %46 = sbr.rel (0) target = $region41
  $region40: #{spectral_encoder_forward.1} parent=0 // pred_region
    _
  $region41: #{spectral_encoder_forward.1} parent=0 // pred_fallthru
    _
  // Predicated region
  $region42: #{spectral_encoder_forward.1} parent=0 // pred_check
    _
  $region43: #{spectral_encoder_forward.1} parent=0 // pred_check_branch
    %48 = sbr.rel (0) target = $region45
  $region44: #{spectral_encoder_forward.1} parent=0 // pred_region
    _
  $region45: #{spectral_encoder_forward.1} parent=0 // pred_fallthru
    _
  // Predicated region
  $region46: #{spectral_encoder_forward.1} parent=0 // pred_check
    _
  $region47: #{spectral_encoder_forward.1} parent=0 // pred_check_branch
    %50 = sbr.rel (0) target = $region49
  $region48: #{spectral_encoder_forward.1} parent=0 // pred_region
    _
  $region49: #{spectral_encoder_forward.1} parent=0 // pred_fallthru
    _
  // Predicated region
  $region50: #{spectral_encoder_forward.1} parent=0 // pred_check
    _
  $region51: #{spectral_encoder_forward.1} parent=0 // pred_check_branch
    %52 = sbr.rel (0) target = $region53
  $region52: #{spectral_encoder_forward.1} parent=0 // pred_region
    _
  $region53: #{spectral_encoder_forward.1} parent=0 // pred_fallthru
    _
  // Predicated region
  $region54: #{spectral_encoder_forward.1} parent=0 // pred_check
    _
  $region55: #{spectral_encoder_forward.1} parent=0 // pred_check_branch
    %54 = sbr.rel (0) target = $region57
  $region56: #{spectral_encoder_forward.1} parent=0 // pred_region
    _
  $region57: #{spectral_encoder_forward.1} parent=0 // pred_fallthru
    _
  %s55 = sadd.s32 0, 0
  %s56 = smul.u32 8, %s55
  %p57 = scmp.lt.s32.totalorder %s56, 7
  %s58 = scalar_select %p57, %s56, 7
  %s59 = smul.addr %s58, 4
  %s60 = scalar_lea.vmem %s0, %s59
  %s61 = sadd.s32 0, 0
  %s62 = smul.u32 8, %s61
  %p63 = scmp.lt.s32.totalorder %s62, 7
  %s64 = scalar_select %p63, %s62, 7
  %s65 = smul.addr %s64, 4
  %s66 = scalar_lea.vmem %s0, %s65
  %s67 = sadd.s32 0, 0
  %s68 = smul.u32 8, %s67
  %p70 = scmp.eq.s32.totalorder 0, 0
  // Predicated region
  $region58: #{spectral_encoder_forward.1} parent=0 // pred_check
    %p71 = pneg %p70
  $region59: #{spectral_encoder_forward.1} parent=0 // pred_check_branch
    %73 = sbr.rel (%p71) target = $region61
  $region60: #{spectral_encoder_forward.1} parent=0 // pred_region
    %vm74 = vcmask 261120
    %75 = vst.msk [vmem:[%s14] sm:$0xff] %vm74, 0.0
  $region61: #{spectral_encoder_forward.1} parent=0 // pred_fallthru
    _
  %v76 = vld [vmem:[%s66] sm:$0xf]
  %v77 = vld [vmem:[%s66 + $0x4] sm:$0xf]
  %v78 = vld [vmem:[%s66 + $0x8] sm:$0xf]
  %v79 = vld [vmem:[%s66 + $0xc] sm:$0xf]
  %v80 = vld [vmem:[%s66 + $0x10] sm:$0xf]
  %v81 = vld [vmem:[%s66 + $0x14] sm:$0xf]
  %v82 = vld [vmem:[%s66 + $0x18] sm:$0xf]
  %v83 = vld [vmem:[%s66 + $0x1c] sm:$0xf]
  %v84 = vld [vmem:[%s66 + $0x20] sm:$0xf]
  %v85 = vld [vmem:[%s66 + $0x24] sm:$0xf]
  %v86 = vld [vmem:[%s66 + $0x28] sm:$0xf]
  %v87 = vld [vmem:[%s66 + $0x2c] sm:$0xf]
  %v88 = vld [vmem:[%s66 + $0x30] sm:$0xf]
  %v89 = vld [vmem:[%s66 + $0x34] sm:$0xf]
  %v90 = vld [vmem:[%s66 + $0x38] sm:$0xf]
  %v91 = vld [vmem:[%s66 + $0x3c] sm:$0xf]
  %v92 = vld [vmem:[%s66 + $0x40] sm:$0xf]
  %v93 = vld [vmem:[%s66 + $0x44] sm:$0xf]
  %v94 = vld [vmem:[%s66 + $0x48] sm:$0xf]
  %v95 = vld [vmem:[%s66 + $0x4c] sm:$0xf]
  %v96 = vld [vmem:[%s66 + $0x50] sm:$0xf]
  %v97 = vld [vmem:[%s66 + $0x54] sm:$0xf]
  %v98 = vld [vmem:[%s66 + $0x58] sm:$0xf]
  %v99 = vld [vmem:[%s66 + $0x5c] sm:$0xf]
  %v100 = vld [vmem:[%s66 + $0x60] sm:$0xf]
  %v101 = vld [vmem:[%s66 + $0x64] sm:$0xf]
  %v102 = vld [vmem:[%s66 + $0x68] sm:$0xf]
  %v103 = vld [vmem:[%s66 + $0x6c] sm:$0xf]
  %v104 = vld [vmem:[%s66 + $0x70] sm:$0xf]
  %v105 = vld [vmem:[%s66 + $0x74] sm:$0xf]
  %v106 = vld [vmem:[%s66 + $0x78] sm:$0xf]
  %v107 = vld [vmem:[%s66 + $0x7c] sm:$0xf]
  %v108 = vld [vmem:[%s66 + $0x80] sm:$0xf]
  %v109 = vld [vmem:[%s66 + $0x84] sm:$0xf]
  %v110 = vld [vmem:[%s66 + $0x88] sm:$0xf]
  %v111 = vld [vmem:[%s66 + $0x8c] sm:$0xf]
  %v112 = vld [vmem:[%s66 + $0x90] sm:$0xf]
  %v113 = vld [vmem:[%s66 + $0x94] sm:$0xf]
  %v114 = vld [vmem:[%s66 + $0x98] sm:$0xf]
  %v115 = vld [vmem:[%s66 + $0x9c] sm:$0xf]
  %v116 = vld [vmem:[%s66 + $0xa0] sm:$0xf]
  %v117 = vld [vmem:[%s66 + $0xa4] sm:$0xf]
  %v118 = vld [vmem:[%s66 + $0xa8] sm:$0xf]
  %v119 = vld [vmem:[%s66 + $0xac] sm:$0xf]
  %v120 = vld [vmem:[%s66 + $0xb0] sm:$0xf]
  %v121 = vld [vmem:[%s66 + $0xb4] sm:$0xf]
  %v122 = vld [vmem:[%s66 + $0xb8] sm:$0xf]
  %v123 = vld [vmem:[%s66 + $0xbc] sm:$0xf]
  %v124 = vld [vmem:[%s66 + $0xc0] sm:$0xf]
  %v125 = vld [vmem:[%s66 + $0xc4] sm:$0xf]
  %v126 = vld [vmem:[%s66 + $0xc8] sm:$0xf]
  %v127 = vld [vmem:[%s66 + $0xcc] sm:$0xf]
  %v128 = vld [vmem:[%s66 + $0xd0] sm:$0xf]
  %v129 = vld [vmem:[%s66 + $0xd4] sm:$0xf]
  %v130 = vld [vmem:[%s66 + $0xd8] sm:$0xf]
  %v131 = vld [vmem:[%s66 + $0xdc] sm:$0xf]
  %v132 = vld [vmem:[%s66 + $0xe0] sm:$0xf]
  %v133 = vld [vmem:[%s66 + $0xe4] sm:$0xf]
  %v134 = vld [vmem:[%s66 + $0xe8] sm:$0xf]
  %v135 = vld [vmem:[%s66 + $0xec] sm:$0xf]
  %v136 = vld [vmem:[%s66 + $0xf0] sm:$0xf]
  %v137 = vld [vmem:[%s66 + $0xf4] sm:$0xf]
  %v138 = vld [vmem:[%s66 + $0xf8] sm:$0xf]
  %v139 = vld [vmem:[%s66 + $0xfc] sm:$0xf]
  %v140 = vld [vmem:[%s2] sm:$0xff]
  %v141 = vld [vmem:[%s2 + $0x8] sm:$0xff]
  %v206 = vunpack.c.l.b16 %v76
  %v207 = vunpack.c.l.b16 %v77
  %v208 = vunpack.c.l.b16 %v78
  %v209 = vunpack.c.l.b16 %v79
  %v210 = vunpack.c.l.b16 %v80
  %v211 = vunpack.c.l.b16 %v81
  %v212 = vunpack.c.l.b16 %v82
  %v213 = vunpack.c.l.b16 %v83
  %v214 = vunpack.c.l.b16 %v84
  %v215 = vunpack.c.l.b16 %v85
  %v216 = vunpack.c.l.b16 %v86
  %v217 = vunpack.c.l.b16 %v87
  %v218 = vunpack.c.l.b16 %v88
  %v219 = vunpack.c.l.b16 %v89
  %v220 = vunpack.c.l.b16 %v90
  %v221 = vunpack.c.l.b16 %v91
  %v222 = vunpack.c.l.b16 %v92
  %v223 = vunpack.c.l.b16 %v93
  %v224 = vunpack.c.l.b16 %v94
  %v225 = vunpack.c.l.b16 %v95
  %v226 = vunpack.c.l.b16 %v96
  %v227 = vunpack.c.l.b16 %v97
  %v228 = vunpack.c.l.b16 %v98
  %v229 = vunpack.c.l.b16 %v99
  %v230 = vunpack.c.l.b16 %v100
  %v231 = vunpack.c.l.b16 %v101
  %v232 = vunpack.c.l.b16 %v102
  %v233 = vunpack.c.l.b16 %v103
  %v234 = vunpack.c.l.b16 %v104
  %v235 = vunpack.c.l.b16 %v105
  %v236 = vunpack.c.l.b16 %v106
  %v237 = vunpack.c.l.b16 %v107
  %v238 = vunpack.c.l.b16 %v108
  %v239 = vunpack.c.l.b16 %v109
  %v240 = vunpack.c.l.b16 %v110
  %v241 = vunpack.c.l.b16 %v111
  %v242 = vunpack.c.l.b16 %v112
  %v243 = vunpack.c.l.b16 %v113
  %v244 = vunpack.c.l.b16 %v114
  %v245 = vunpack.c.l.b16 %v115
  %v246 = vunpack.c.l.b16 %v116
  %v247 = vunpack.c.l.b16 %v117
  %v248 = vunpack.c.l.b16 %v118
  %v249 = vunpack.c.l.b16 %v119
  %v250 = vunpack.c.l.b16 %v120
  %v251 = vunpack.c.l.b16 %v121
  %v252 = vunpack.c.l.b16 %v122
  %v253 = vunpack.c.l.b16 %v123
  %v254 = vunpack.c.l.b16 %v124
  %v255 = vunpack.c.l.b16 %v125
  %v256 = vunpack.c.l.b16 %v126
  %v257 = vunpack.c.l.b16 %v127
  %v258 = vunpack.c.l.b16 %v128
  %v259 = vunpack.c.l.b16 %v129
  %v260 = vunpack.c.l.b16 %v130
  %v261 = vunpack.c.l.b16 %v131
  %v262 = vunpack.c.l.b16 %v132
  %v263 = vunpack.c.l.b16 %v133
  %v264 = vunpack.c.l.b16 %v134
  %v265 = vunpack.c.l.b16 %v135
  %v266 = vunpack.c.l.b16 %v136
  %v267 = vunpack.c.l.b16 %v137
  %v268 = vunpack.c.l.b16 %v138
  %v269 = vunpack.c.l.b16 %v139
  %v270 = vpack.c.b16 %v207, %v206
  %v271 = vpack.c.b16 %v209, %v208
  %v272 = vpack.c.b16 %v211, %v210
  %v273 = vpack.c.b16 %v213, %v212
  %v274 = vpack.c.b16 %v215, %v214
  %v275 = vpack.c.b16 %v217, %v216
  %v276 = vpack.c.b16 %v219, %v218
  %v277 = vpack.c.b16 %v221, %v220
  %v278 = vpack.c.b16 %v223, %v222
  %v279 = vpack.c.b16 %v225, %v224
  %v280 = vpack.c.b16 %v227, %v226
  %v281 = vpack.c.b16 %v229, %v228
  %v282 = vpack.c.b16 %v231, %v230
  %v283 = vpack.c.b16 %v233, %v232
  %v284 = vpack.c.b16 %v235, %v234
  %v285 = vpack.c.b16 %v237, %v236
  %v286 = vpack.c.b16 %v239, %v238
  %v287 = vpack.c.b16 %v241, %v240
  %v288 = vpack.c.b16 %v243, %v242
  %v289 = vpack.c.b16 %v245, %v244
  %v290 = vpack.c.b16 %v247, %v246
  %v291 = vpack.c.b16 %v249, %v248
  %v292 = vpack.c.b16 %v251, %v250
  %v293 = vpack.c.b16 %v253, %v252
  %v294 = vpack.c.b16 %v255, %v254
  %v295 = vpack.c.b16 %v257, %v256
  %v296 = vpack.c.b16 %v259, %v258
  %v297 = vpack.c.b16 %v261, %v260
  %v298 = vpack.c.b16 %v263, %v262
  %v299 = vpack.c.b16 %v265, %v264
  %v300 = vpack.c.b16 %v267, %v266
  %v301 = vpack.c.b16 %v269, %v268
  %v304 = vunpack.c.l.b16 %v140
  %v305 = vunpack.c.h.b16 %v140
  %v306 = vunpack.c.l.b16 %v141
  %v307 = vunpack.c.h.b16 %v141
  %v308 = vpack.c.b16 %v306, %v304
  %v309 = vpack.c.b16 %v307, %v305
  %vm312 = vcmask 130048
  %v314 = vsel %vm312, %v270, 0
  %v317 = vsel %vm312, %v271, 0
  %v320 = vsel %vm312, %v272, 0
  %v323 = vsel %vm312, %v273, 0
  %v326 = vsel %vm312, %v274, 0
  %v329 = vsel %vm312, %v275, 0
  %v332 = vsel %vm312, %v276, 0
  %v335 = vsel %vm312, %v277, 0
  %v338 = vsel %vm312, %v278, 0
  %v341 = vsel %vm312, %v279, 0
  %v344 = vsel %vm312, %v280, 0
  %v347 = vsel %vm312, %v281, 0
  %v350 = vsel %vm312, %v282, 0
  %v353 = vsel %vm312, %v283, 0
  %v356 = vsel %vm312, %v284, 0
  %v359 = vsel %vm312, %v285, 0
  %v362 = vsel %vm312, %v286, 0
  %v365 = vsel %vm312, %v287, 0
  %v368 = vsel %vm312, %v288, 0
  %v371 = vsel %vm312, %v289, 0
  %v374 = vsel %vm312, %v290, 0
  %v377 = vsel %vm312, %v291, 0
  %v380 = vsel %vm312, %v292, 0
  %v383 = vsel %vm312, %v293, 0
  %v386 = vsel %vm312, %v294, 0
  %v389 = vsel %vm312, %v295, 0
  %v392 = vsel %vm312, %v296, 0
  %v395 = vsel %vm312, %v297, 0
  %v398 = vsel %vm312, %v298, 0
  %v401 = vsel %vm312, %v299, 0
  %v404 = vsel %vm312, %v300, 0
  %v407 = vsel %vm312, %v301, 0
  %409 = vmatprep.subr.bf16.mxu0 0
  %410 = vmatpush1.bf16.msra.mxu0 0
  %411 = vmatprep.subr.bf16.mxu0 0
  %412 = vmatpush1.bf16.msra.mxu0 0
  %413 = vmatprep.subr.bf16.mxu0 0
  %414 = vmatpush1.bf16.msra.mxu0 0
  %415 = vmatprep.subr.bf16.mxu0 0
  %416 = vmatpush1.bf16.msra.mxu0 0
  %417 = vmatprep.subr.bf16.mxu0 0
  %418 = vmatpush1.bf16.msra.mxu0 0
  %419 = vmatprep.subr.bf16.mxu0 0
  %420 = vmatpush1.bf16.msra.mxu0 0
  %421 = vmatprep.subr.bf16.mxu0 0
  %422 = vmatpush1.bf16.msra.mxu0 0
  %423 = vmatprep.subr.bf16.mxu0 %v309
  %424 = vmatpush1.bf16.msra.mxu0 %v308
  %425 = vmatprep.subr.bf16.mxu0 0
  %426 = vmatpush2.bf16.msra.mxu0 0
  %427 = vmatprep.subr.bf16.mxu0 0
  %428 = vmatpush2.bf16.msra.mxu0 0
  %429 = vmatprep.subr.bf16.mxu0 0
  %430 = vmatpush2.bf16.msra.mxu0 0
  %431 = vmatprep.subr.bf16.mxu0 0
  %432 = vmatpush2.bf16.msra.mxu0 0
  %433 = vmatprep.subr.bf16.mxu0 0
  %434 = vmatpush2.bf16.msra.mxu0 0
  %435 = vmatprep.subr.bf16.mxu0 0
  %436 = vmatpush2.bf16.msra.mxu0 0
  %437 = vmatprep.subr.bf16.mxu0 0
  %438 = vmatpush2.bf16.msra.mxu0 0
  %439 = vmatprep.subr.bf16.mxu0 0
  %440 = vmatpush2.bf16.msra.mxu0 0
  %441 = vmatprep.mubr.bf16.mxu0 0
  %442 = vmatmul.mubr.bf16.gmra.mxu0 %v314
  %v443 = vpop.f32.mrf.mxu0
  %v444 = vadd.f32 0.0, %v443
  %v445 = vpop.f32.mrf.mxu0
  %v446 = vadd.f32 0.0, %v445
  %v447 = vpop.f32.mrf.mxu0
  %v448 = vadd.f32 0.0, %v447
  %v449 = vpop.f32.mrf.mxu0
  %v450 = vadd.f32 0.0, %v449
  %451 = vmatprep.mubr.bf16.mxu0 0
  %452 = vmatmul.mubr.bf16.gmra.mxu0 %v317
  %v453 = vpop.f32.mrf.mxu0
  %v454 = vadd.f32 0.0, %v453
  %v455 = vpop.f32.mrf.mxu0
  %v456 = vadd.f32 0.0, %v455
  %v457 = vpop.f32.mrf.mxu0
  %v458 = vadd.f32 0.0, %v457
  %v459 = vpop.f32.mrf.mxu0
  %v460 = vadd.f32 0.0, %v459
  %461 = vmatprep.mubr.bf16.mxu0 0
  %462 = vmatmul.mubr.bf16.gmra.mxu0 %v320
  %v463 = vpop.f32.mrf.mxu0
  %v464 = vadd.f32 0.0, %v463
  %v465 = vpop.f32.mrf.mxu0
  %v466 = vadd.f32 0.0, %v465
  %v467 = vpop.f32.mrf.mxu0
  %v468 = vadd.f32 0.0, %v467
  %v469 = vpop.f32.mrf.mxu0
  %v470 = vadd.f32 0.0, %v469
  %471 = vmatprep.mubr.bf16.mxu0 0
  %472 = vmatmul.mubr.bf16.gmra.mxu0 %v323
  %v473 = vpop.f32.mrf.mxu0
  %v474 = vadd.f32 0.0, %v473
  %v475 = vpop.f32.mrf.mxu0
  %v476 = vadd.f32 0.0, %v475
  %v477 = vpop.f32.mrf.mxu0
  %v478 = vadd.f32 0.0, %v477
  %v479 = vpop.f32.mrf.mxu0
  %v480 = vadd.f32 0.0, %v479
  %481 = vmatprep.mubr.bf16.mxu0 0
  %482 = vmatmul.mubr.bf16.gmra.mxu0 %v326
  %v483 = vpop.f32.mrf.mxu0
  %v484 = vadd.f32 0.0, %v483
  %v485 = vpop.f32.mrf.mxu0
  %v486 = vadd.f32 0.0, %v485
  %v487 = vpop.f32.mrf.mxu0
  %v488 = vadd.f32 0.0, %v487
  %v489 = vpop.f32.mrf.mxu0
  %v490 = vadd.f32 0.0, %v489
  %491 = vmatprep.mubr.bf16.mxu0 0
  %492 = vmatmul.mubr.bf16.gmra.mxu0 %v329
  %v493 = vpop.f32.mrf.mxu0
  %v494 = vadd.f32 0.0, %v493
  %v495 = vpop.f32.mrf.mxu0
  %v496 = vadd.f32 0.0, %v495
  %v497 = vpop.f32.mrf.mxu0
  %v498 = vadd.f32 0.0, %v497
  %v499 = vpop.f32.mrf.mxu0
  %v500 = vadd.f32 0.0, %v499
  %501 = vmatprep.mubr.bf16.mxu0 0
  %502 = vmatmul.mubr.bf16.gmra.mxu0 %v332
  %v503 = vpop.f32.mrf.mxu0
  %v504 = vadd.f32 0.0, %v503
  %v505 = vpop.f32.mrf.mxu0
  %v506 = vadd.f32 0.0, %v505
  %v507 = vpop.f32.mrf.mxu0
  %v508 = vadd.f32 0.0, %v507
  %v509 = vpop.f32.mrf.mxu0
  %v510 = vadd.f32 0.0, %v509
  %511 = vmatprep.mubr.bf16.mxu0 0
  %512 = vmatmul.mubr.bf16.gmra.mxu0 %v335
  %v513 = vpop.f32.mrf.mxu0
  %v514 = vadd.f32 0.0, %v513
  %v515 = vpop.f32.mrf.mxu0
  %v516 = vadd.f32 0.0, %v515
  %v517 = vpop.f32.mrf.mxu0
  %v518 = vadd.f32 0.0, %v517
  %v519 = vpop.f32.mrf.mxu0
  %v520 = vadd.f32 0.0, %v519
  %521 = vmatprep.mubr.bf16.mxu0 0
  %522 = vmatmul.mubr.bf16.gmra.mxu0 %v338
  %v523 = vpop.f32.mrf.mxu0
  %v524 = vadd.f32 0.0, %v523
  %v525 = vpop.f32.mrf.mxu0
  %v526 = vadd.f32 0.0, %v525
  %v527 = vpop.f32.mrf.mxu0
  %v528 = vadd.f32 0.0, %v527
  %v529 = vpop.f32.mrf.mxu0
  %v530 = vadd.f32 0.0, %v529
  %531 = vmatprep.mubr.bf16.mxu0 0
  %532 = vmatmul.mubr.bf16.gmra.mxu0 %v341
  %v533 = vpop.f32.mrf.mxu0
  %v534 = vadd.f32 0.0, %v533
  %v535 = vpop.f32.mrf.mxu0
  %v536 = vadd.f32 0.0, %v535
  %v537 = vpop.f32.mrf.mxu0
  %v538 = vadd.f32 0.0, %v537
  %v539 = vpop.f32.mrf.mxu0
  %v540 = vadd.f32 0.0, %v539
  %541 = vmatprep.mubr.bf16.mxu0 0
  %542 = vmatmul.mubr.bf16.gmra.mxu0 %v344
  %v543 = vpop.f32.mrf.mxu0
  %v544 = vadd.f32 0.0, %v543
  %v545 = vpop.f32.mrf.mxu0
  %v546 = vadd.f32 0.0, %v545
  %v547 = vpop.f32.mrf.mxu0
  %v548 = vadd.f32 0.0, %v547
  %v549 = vpop.f32.mrf.mxu0
  %v550 = vadd.f32 0.0, %v549
  %551 = vmatprep.mubr.bf16.mxu0 0
  %552 = vmatmul.mubr.bf16.gmra.mxu0 %v347
  %v553 = vpop.f32.mrf.mxu0
  %v554 = vadd.f32 0.0, %v553
  %v555 = vpop.f32.mrf.mxu0
  %v556 = vadd.f32 0.0, %v555
  %v557 = vpop.f32.mrf.mxu0
  %v558 = vadd.f32 0.0, %v557
  %v559 = vpop.f32.mrf.mxu0
  %v560 = vadd.f32 0.0, %v559
  %561 = vmatprep.mubr.bf16.mxu0 0
  %562 = vmatmul.mubr.bf16.gmra.mxu0 %v350
  %v563 = vpop.f32.mrf.mxu0
  %v564 = vadd.f32 0.0, %v563
  %v565 = vpop.f32.mrf.mxu0
  %v566 = vadd.f32 0.0, %v565
  %v567 = vpop.f32.mrf.mxu0
  %v568 = vadd.f32 0.0, %v567
  %v569 = vpop.f32.mrf.mxu0
  %v570 = vadd.f32 0.0, %v569
  %571 = vmatprep.mubr.bf16.mxu0 0
  %572 = vmatmul.mubr.bf16.gmra.mxu0 %v353
  %v573 = vpop.f32.mrf.mxu0
  %v574 = vadd.f32 0.0, %v573
  %v575 = vpop.f32.mrf.mxu0
  %v576 = vadd.f32 0.0, %v575
  %v577 = vpop.f32.mrf.mxu0
  %v578 = vadd.f32 0.0, %v577
  %v579 = vpop.f32.mrf.mxu0
  %v580 = vadd.f32 0.0, %v579
  %581 = vmatprep.mubr.bf16.mxu0 0
  %582 = vmatmul.mubr.bf16.gmra.mxu0 %v356
  %v583 = vpop.f32.mrf.mxu0
  %v584 = vadd.f32 0.0, %v583
  %v585 = vpop.f32.mrf.mxu0
  %v586 = vadd.f32 0.0, %v585
  %v587 = vpop.f32.mrf.mxu0
  %v588 = vadd.f32 0.0, %v587
  %v589 = vpop.f32.mrf.mxu0
  %v590 = vadd.f32 0.0, %v589
  %591 = vmatprep.mubr.bf16.mxu0 0
  %592 = vmatmul.mubr.bf16.gmra.mxu0 %v359
  %v593 = vpop.f32.mrf.mxu0
  %v594 = vadd.f32 0.0, %v593
  %v595 = vpop.f32.mrf.mxu0
  %v596 = vadd.f32 0.0, %v595
  %v597 = vpop.f32.mrf.mxu0
  %v598 = vadd.f32 0.0, %v597
  %v599 = vpop.f32.mrf.mxu0
  %v600 = vadd.f32 0.0, %v599
  %601 = vmatprep.mubr.bf16.mxu0 0
  %602 = vmatmul.mubr.bf16.gmra.mxu0 %v362
  %v603 = vpop.f32.mrf.mxu0
  %v604 = vadd.f32 0.0, %v603
  %v605 = vpop.f32.mrf.mxu0
  %v606 = vadd.f32 0.0, %v605
  %v607 = vpop.f32.mrf.mxu0
  %v608 = vadd.f32 0.0, %v607
  %v609 = vpop.f32.mrf.mxu0
  %v610 = vadd.f32 0.0, %v609
  %611 = vmatprep.mubr.bf16.mxu0 0
  %612 = vmatmul.mubr.bf16.gmra.mxu0 %v365
  %v613 = vpop.f32.mrf.mxu0
  %v614 = vadd.f32 0.0, %v613
  %v615 = vpop.f32.mrf.mxu0
  %v616 = vadd.f32 0.0, %v615
  %v617 = vpop.f32.mrf.mxu0
  %v618 = vadd.f32 0.0, %v617
  %v619 = vpop.f32.mrf.mxu0
  %v620 = vadd.f32 0.0, %v619
  %621 = vmatprep.mubr.bf16.mxu0 0
  %622 = vmatmul.mubr.bf16.gmra.mxu0 %v368
  %v623 = vpop.f32.mrf.mxu0
  %v624 = vadd.f32 0.0, %v623
  %v625 = vpop.f32.mrf.mxu0
  %v626 = vadd.f32 0.0, %v625
  %v627 = vpop.f32.mrf.mxu0
  %v628 = vadd.f32 0.0, %v627
  %v629 = vpop.f32.mrf.mxu0
  %v630 = vadd.f32 0.0, %v629
  %631 = vmatprep.mubr.bf16.mxu0 0
  %632 = vmatmul.mubr.bf16.gmra.mxu0 %v371
  %v633 = vpop.f32.mrf.mxu0
  %v634 = vadd.f32 0.0, %v633
  %v635 = vpop.f32.mrf.mxu0
  %v636 = vadd.f32 0.0, %v635
  %v637 = vpop.f32.mrf.mxu0
  %v638 = vadd.f32 0.0, %v637
  %v639 = vpop.f32.mrf.mxu0
  %v640 = vadd.f32 0.0, %v639
  %641 = vmatprep.mubr.bf16.mxu0 0
  %642 = vmatmul.mubr.bf16.gmra.mxu0 %v374
  %v643 = vpop.f32.mrf.mxu0
  %v644 = vadd.f32 0.0, %v643
  %v645 = vpop.f32.mrf.mxu0
  %v646 = vadd.f32 0.0, %v645
  %v647 = vpop.f32.mrf.mxu0
  %v648 = vadd.f32 0.0, %v647
  %v649 = vpop.f32.mrf.mxu0
  %v650 = vadd.f32 0.0, %v649
  %651 = vmatprep.mubr.bf16.mxu0 0
  %652 = vmatmul.mubr.bf16.gmra.mxu0 %v377
  %v653 = vpop.f32.mrf.mxu0
  %v654 = vadd.f32 0.0, %v653
  %v655 = vpop.f32.mrf.mxu0
  %v656 = vadd.f32 0.0, %v655
  %v657 = vpop.f32.mrf.mxu0
  %v658 = vadd.f32 0.0, %v657
  %v659 = vpop.f32.mrf.mxu0
  %v660 = vadd.f32 0.0, %v659
  %661 = vmatprep.mubr.bf16.mxu0 0
  %662 = vmatmul.mubr.bf16.gmra.mxu0 %v380
  %v663 = vpop.f32.mrf.mxu0
  %v664 = vadd.f32 0.0, %v663
  %v665 = vpop.f32.mrf.mxu0
  %v666 = vadd.f32 0.0, %v665
  %v667 = vpop.f32.mrf.mxu0
  %v668 = vadd.f32 0.0, %v667
  %v669 = vpop.f32.mrf.mxu0
  %v670 = vadd.f32 0.0, %v669
  %671 = vmatprep.mubr.bf16.mxu0 0
  %672 = vmatmul.mubr.bf16.gmra.mxu0 %v383
  %v673 = vpop.f32.mrf.mxu0
  %v674 = vadd.f32 0.0, %v673
  %v675 = vpop.f32.mrf.mxu0
  %v676 = vadd.f32 0.0, %v675
  %v677 = vpop.f32.mrf.mxu0
  %v678 = vadd.f32 0.0, %v677
  %v679 = vpop.f32.mrf.mxu0
  %v680 = vadd.f32 0.0, %v679
  %681 = vmatprep.mubr.bf16.mxu0 0
  %682 = vmatmul.mubr.bf16.gmra.mxu0 %v386
  %v683 = vpop.f32.mrf.mxu0
  %v684 = vadd.f32 0.0, %v683
  %v685 = vpop.f32.mrf.mxu0
  %v686 = vadd.f32 0.0, %v685
  %v687 = vpop.f32.mrf.mxu0
  %v688 = vadd.f32 0.0, %v687
  %v689 = vpop.f32.mrf.mxu0
  %v690 = vadd.f32 0.0, %v689
  %691 = vmatprep.mubr.bf16.mxu0 0
  %692 = vmatmul.mubr.bf16.gmra.mxu0 %v389
  %v693 = vpop.f32.mrf.mxu0
  %v694 = vadd.f32 0.0, %v693
  %v695 = vpop.f32.mrf.mxu0
  %v696 = vadd.f32 0.0, %v695
  %v697 = vpop.f32.mrf.mxu0
  %v698 = vadd.f32 0.0, %v697
  %v699 = vpop.f32.mrf.mxu0
  %v700 = vadd.f32 0.0, %v699
  %701 = vmatprep.mubr.bf16.mxu0 0
  %702 = vmatmul.mubr.bf16.gmra.mxu0 %v392
  %v703 = vpop.f32.mrf.mxu0
  %v704 = vadd.f32 0.0, %v703
  %v705 = vpop.f32.mrf.mxu0
  %v706 = vadd.f32 0.0, %v705
  %v707 = vpop.f32.mrf.mxu0
  %v708 = vadd.f32 0.0, %v707
  %v709 = vpop.f32.mrf.mxu0
  %v710 = vadd.f32 0.0, %v709
  %711 = vmatprep.mubr.bf16.mxu0 0
  %712 = vmatmul.mubr.bf16.gmra.mxu0 %v395
  %v713 = vpop.f32.mrf.mxu0
  %v714 = vadd.f32 0.0, %v713
  %v715 = vpop.f32.mrf.mxu0
  %v716 = vadd.f32 0.0, %v715
  %v717 = vpop.f32.mrf.mxu0
  %v718 = vadd.f32 0.0, %v717
  %v719 = vpop.f32.mrf.mxu0
  %v720 = vadd.f32 0.0, %v719
  %721 = vmatprep.mubr.bf16.mxu0 0
  %722 = vmatmul.mubr.bf16.gmra.mxu0 %v398
  %v723 = vpop.f32.mrf.mxu0
  %v724 = vadd.f32 0.0, %v723
  %v725 = vpop.f32.mrf.mxu0
  %v726 = vadd.f32 0.0, %v725
  %v727 = vpop.f32.mrf.mxu0
  %v728 = vadd.f32 0.0, %v727
  %v729 = vpop.f32.mrf.mxu0
  %v730 = vadd.f32 0.0, %v729
  %731 = vmatprep.mubr.bf16.mxu0 0
  %732 = vmatmul.mubr.bf16.gmra.mxu0 %v401
  %v733 = vpop.f32.mrf.mxu0
  %v734 = vadd.f32 0.0, %v733
  %v735 = vpop.f32.mrf.mxu0
  %v736 = vadd.f32 0.0, %v735
  %v737 = vpop.f32.mrf.mxu0
  %v738 = vadd.f32 0.0, %v737
  %v739 = vpop.f32.mrf.mxu0
  %v740 = vadd.f32 0.0, %v739
  %741 = vmatprep.mubr.bf16.mxu0 0
  %742 = vmatmul.mubr.bf16.gmra.mxu0 %v404
  %v743 = vpop.f32.mrf.mxu0
  %v744 = vadd.f32 0.0, %v743
  %v745 = vpop.f32.mrf.mxu0
  %v746 = vadd.f32 0.0, %v745
  %v747 = vpop.f32.mrf.mxu0
  %v748 = vadd.f32 0.0, %v747
  %v749 = vpop.f32.mrf.mxu0
  %v750 = vadd.f32 0.0, %v749
  %751 = vmatprep.mubr.bf16.mxu0 0
  %752 = vmatmul.mubr.bf16.gmra.mxu0 %v407
  %v753 = vpop.f32.mrf.mxu0
  %v754 = vadd.f32 0.0, %v753
  %v755 = vpop.f32.mrf.mxu0
  %v756 = vadd.f32 0.0, %v755
  %v757 = vpop.f32.mrf.mxu0
  %v758 = vadd.f32 0.0, %v757
  %v759 = vpop.f32.mrf.mxu0
  %v760 = vadd.f32 0.0, %v759
  %761 = vdwg.mxu0
  %v762 = vld [vmem:[%s3] sm:$0x3]
  %v764 = vlaneseq
  %v765 = vshrl.u32 %v764, 7
  %v766 = vsub.s32 0, %v765
  %v767 = vrot.slane %v762, %v766
  %v768 = vlaneseq
  %v769 = vshrl.u32 %v768, 7
  %v770 = vsub.s32 1, %v769
  %v771 = vrot.slane %v762, %v770
  %v774 = vmul.f32 %v444, %v767
  %v775 = vmul.f32 %v446, %v771
  %v776 = vmul.f32 %v448, %v767
  %v777 = vmul.f32 %v450, %v771
  %v778 = vmul.f32 %v454, %v767
  %v779 = vmul.f32 %v456, %v771
  %v780 = vmul.f32 %v458, %v767
  %v781 = vmul.f32 %v460, %v771
  %v782 = vmul.f32 %v464, %v767
  %v783 = vmul.f32 %v466, %v771
  %v784 = vmul.f32 %v468, %v767
  %v785 = vmul.f32 %v470, %v771
  %v786 = vmul.f32 %v474, %v767
  %v787 = vmul.f32 %v476, %v771
  %v788 = vmul.f32 %v478, %v767
  %v789 = vmul.f32 %v480, %v771
  %v790 = vmul.f32 %v484, %v767
  %v791 = vmul.f32 %v486, %v771
  %v792 = vmul.f32 %v488, %v767
  %v793 = vmul.f32 %v490, %v771
  %v794 = vmul.f32 %v494, %v767
  %v795 = vmul.f32 %v496, %v771
  %v796 = vmul.f32 %v498, %v767
  %v797 = vmul.f32 %v500, %v771
  %v798 = vmul.f32 %v504, %v767
  %v799 = vmul.f32 %v506, %v771
  %v800 = vmul.f32 %v508, %v767
  %v801 = vmul.f32 %v510, %v771
  %v802 = vmul.f32 %v514, %v767
  %v803 = vmul.f32 %v516, %v771
  %v804 = vmul.f32 %v518, %v767
  %v805 = vmul.f32 %v520, %v771
  %v806 = vmul.f32 %v524, %v767
  %v807 = vmul.f32 %v526, %v771
  %v808 = vmul.f32 %v528, %v767
  %v809 = vmul.f32 %v530, %v771
  %v810 = vmul.f32 %v534, %v767
  %v811 = vmul.f32 %v536, %v771
  %v812 = vmul.f32 %v538, %v767
  %v813 = vmul.f32 %v540, %v771
  %v814 = vmul.f32 %v544, %v767
  %v815 = vmul.f32 %v546, %v771
  %v816 = vmul.f32 %v548, %v767
  %v817 = vmul.f32 %v550, %v771
  %v818 = vmul.f32 %v554, %v767
  %v819 = vmul.f32 %v556, %v771
  %v820 = vmul.f32 %v558, %v767
  %v821 = vmul.f32 %v560, %v771
  %v822 = vmul.f32 %v564, %v767
  %v823 = vmul.f32 %v566, %v771
  %v824 = vmul.f32 %v568, %v767
  %v825 = vmul.f32 %v570, %v771
  %v826 = vmul.f32 %v574, %v767
  %v827 = vmul.f32 %v576, %v771
  %v828 = vmul.f32 %v578, %v767
  %v829 = vmul.f32 %v580, %v771
  %v830 = vmul.f32 %v584, %v767
  %v831 = vmul.f32 %v586, %v771
  %v832 = vmul.f32 %v588, %v767
  %v833 = vmul.f32 %v590, %v771
  %v834 = vmul.f32 %v594, %v767
  %v835 = vmul.f32 %v596, %v771
  %v836 = vmul.f32 %v598, %v767
  %v837 = vmul.f32 %v600, %v771
  %v838 = vmul.f32 %v604, %v767
  %v839 = vmul.f32 %v606, %v771
  %v840 = vmul.f32 %v608, %v767
  %v841 = vmul.f32 %v610, %v771
  %v842 = vmul.f32 %v614, %v767
  %v843 = vmul.f32 %v616, %v771
  %v844 = vmul.f32 %v618, %v767
  %v845 = vmul.f32 %v620, %v771
  %v846 = vmul.f32 %v624, %v767
  %v847 = vmul.f32 %v626, %v771
  %v848 = vmul.f32 %v628, %v767
  %v849 = vmul.f32 %v630, %v771
  %v850 = vmul.f32 %v634, %v767
  %v851 = vmul.f32 %v636, %v771
  %v852 = vmul.f32 %v638, %v767
  %v853 = vmul.f32 %v640, %v771
  %v854 = vmul.f32 %v644, %v767
  %v855 = vmul.f32 %v646, %v771
  %v856 = vmul.f32 %v648, %v767
  %v857 = vmul.f32 %v650, %v771
  %v858 = vmul.f32 %v654, %v767
  %v859 = vmul.f32 %v656, %v771
  %v860 = vmul.f32 %v658, %v767
  %v861 = vmul.f32 %v660, %v771
  %v862 = vmul.f32 %v664, %v767
  %v863 = vmul.f32 %v666, %v771
  %v864 = vmul.f32 %v668, %v767
  %v865 = vmul.f32 %v670, %v771
  %v866 = vmul.f32 %v674, %v767
  %v867 = vmul.f32 %v676, %v771
  %v868 = vmul.f32 %v678, %v767
  %v869 = vmul.f32 %v680, %v771
  %v870 = vmul.f32 %v684, %v767
  %v871 = vmul.f32 %v686, %v771
  %v872 = vmul.f32 %v688, %v767
  %v873 = vmul.f32 %v690, %v771
  %v874 = vmul.f32 %v694, %v767
  %v875 = vmul.f32 %v696, %v771
  %v876 = vmul.f32 %v698, %v767
  %v877 = vmul.f32 %v700, %v771
  %v878 = vmul.f32 %v704, %v767
  %v879 = vmul.f32 %v706, %v771
  %v880 = vmul.f32 %v708, %v767
  %v881 = vmul.f32 %v710, %v771
  %v882 = vmul.f32 %v714, %v767
  %v883 = vmul.f32 %v716, %v771
  %v884 = vmul.f32 %v718, %v767
  %v885 = vmul.f32 %v720, %v771
  %v886 = vmul.f32 %v724, %v767
  %v887 = vmul.f32 %v726, %v771
  %v888 = vmul.f32 %v728, %v767
  %v889 = vmul.f32 %v730, %v771
  %v890 = vmul.f32 %v734, %v767
  %v891 = vmul.f32 %v736, %v771
  %v892 = vmul.f32 %v738, %v767
  %v893 = vmul.f32 %v740, %v771
  %v894 = vmul.f32 %v744, %v767
  %v895 = vmul.f32 %v746, %v771
  %v896 = vmul.f32 %v748, %v767
  %v897 = vmul.f32 %v750, %v771
  %v898 = vmul.f32 %v754, %v767
  %v899 = vmul.f32 %v756, %v771
  %v900 = vmul.f32 %v758, %v767
  %v901 = vmul.f32 %v760, %v771
  %v902 = vld [vmem:[%s4] sm:$0x3]
  %v904 = vlaneseq
  %v905 = vshrl.u32 %v904, 7
  %v906 = vsub.s32 0, %v905
  %v907 = vrot.slane %v902, %v906
  %v908 = vlaneseq
  %v909 = vshrl.u32 %v908, 7
  %v910 = vsub.s32 1, %v909
  %v911 = vrot.slane %v902, %v910
  %v914 = vadd.f32 %v774, %v907
  %v915 = vadd.f32 %v775, %v911
  %v916 = vadd.f32 %v776, %v907
  %v917 = vadd.f32 %v777, %v911
  %v918 = vadd.f32 %v778, %v907
  %v919 = vadd.f32 %v779, %v911
  %v920 = vadd.f32 %v780, %v907
  %v921 = vadd.f32 %v781, %v911
  %v922 = vadd.f32 %v782, %v907
  %v923 = vadd.f32 %v783, %v911
  %v924 = vadd.f32 %v784, %v907
  %v925 = vadd.f32 %v785, %v911
  %v926 = vadd.f32 %v786, %v907
  %v927 = vadd.f32 %v787, %v911
  %v928 = vadd.f32 %v788, %v907
  %v929 = vadd.f32 %v789, %v911
  %v930 = vadd.f32 %v790, %v907
  %v931 = vadd.f32 %v791, %v911
  %v932 = vadd.f32 %v792, %v907
  %v933 = vadd.f32 %v793, %v911
  %v934 = vadd.f32 %v794, %v907
  %v935 = vadd.f32 %v795, %v911
  %v936 = vadd.f32 %v796, %v907
  %v937 = vadd.f32 %v797, %v911
  %v938 = vadd.f32 %v798, %v907
  %v939 = vadd.f32 %v799, %v911
  %v940 = vadd.f32 %v800, %v907
  %v941 = vadd.f32 %v801, %v911
  %v942 = vadd.f32 %v802, %v907
  %v943 = vadd.f32 %v803, %v911
  %v944 = vadd.f32 %v804, %v907
  %v945 = vadd.f32 %v805, %v911
  %v946 = vadd.f32 %v806, %v907
  %v947 = vadd.f32 %v807, %v911
  %v948 = vadd.f32 %v808, %v907
  %v949 = vadd.f32 %v809, %v911
  %v950 = vadd.f32 %v810, %v907
  %v951 = vadd.f32 %v811, %v911
  %v952 = vadd.f32 %v812, %v907
  %v953 = vadd.f32 %v813, %v911
  %v954 = vadd.f32 %v814, %v907
  %v955 = vadd.f32 %v815, %v911
  %v956 = vadd.f32 %v816, %v907
  %v957 = vadd.f32 %v817, %v911
  %v958 = vadd.f32 %v818, %v907
  %v959 = vadd.f32 %v819, %v911
  %v960 = vadd.f32 %v820, %v907
  %v961 = vadd.f32 %v821, %v911
  %v962 = vadd.f32 %v822, %v907
  %v963 = vadd.f32 %v823, %v911
  %v964 = vadd.f32 %v824, %v907
  %v965 = vadd.f32 %v825, %v911
  %v966 = vadd.f32 %v826, %v907
  %v967 = vadd.f32 %v827, %v911
  %v968 = vadd.f32 %v828, %v907
  %v969 = vadd.f32 %v829, %v911
  %v970 = vadd.f32 %v830, %v907
  %v971 = vadd.f32 %v831, %v911
  %v972 = vadd.f32 %v832, %v907
  %v973 = vadd.f32 %v833, %v911
  %v974 = vadd.f32 %v834, %v907
  %v975 = vadd.f32 %v835, %v911
  %v976 = vadd.f32 %v836, %v907
  %v977 = vadd.f32 %v837, %v911
  %v978 = vadd.f32 %v838, %v907
  %v979 = vadd.f32 %v839, %v911
  %v980 = vadd.f32 %v840, %v907
  %v981 = vadd.f32 %v841, %v911
  %v982 = vadd.f32 %v842, %v907
  %v983 = vadd.f32 %v843, %v911
  %v984 = vadd.f32 %v844, %v907
  %v985 = vadd.f32 %v845, %v911
  %v986 = vadd.f32 %v846, %v907
  %v987 = vadd.f32 %v847, %v911
  %v988 = vadd.f32 %v848, %v907
  %v989 = vadd.f32 %v849, %v911
  %v990 = vadd.f32 %v850, %v907
  %v991 = vadd.f32 %v851, %v911
  %v992 = vadd.f32 %v852, %v907
  %v993 = vadd.f32 %v853, %v911
  %v994 = vadd.f32 %v854, %v907
  %v995 = vadd.f32 %v855, %v911
  %v996 = vadd.f32 %v856, %v907
  %v997 = vadd.f32 %v857, %v911
  %v998 = vadd.f32 %v858, %v907
  %v999 = vadd.f32 %v859, %v911
  %v1000 = vadd.f32 %v860, %v907
  %v1001 = vadd.f32 %v861, %v911
  %v1002 = vadd.f32 %v862, %v907
  %v1003 = vadd.f32 %v863, %v911
  %v1004 = vadd.f32 %v864, %v907
  %v1005 = vadd.f32 %v865, %v911
  %v1006 = vadd.f32 %v866, %v907
  %v1007 = vadd.f32 %v867, %v911
  %v1008 = vadd.f32 %v868, %v907
  %v1009 = vadd.f32 %v869, %v911
  %v1010 = vadd.f32 %v870, %v907
  %v1011 = vadd.f32 %v871, %v911
  %v1012 = vadd.f32 %v872, %v907
  %v1013 = vadd.f32 %v873, %v911
  %v1014 = vadd.f32 %v874, %v907
  %v1015 = vadd.f32 %v875, %v911
  %v1016 = vadd.f32 %v876, %v907
  %v1017 = vadd.f32 %v877, %v911
  %v1018 = vadd.f32 %v878, %v907
  %v1019 = vadd.f32 %v879, %v911
  %v1020 = vadd.f32 %v880, %v907
  %v1021 = vadd.f32 %v881, %v911
  %v1022 = vadd.f32 %v882, %v907
  %v1023 = vadd.f32 %v883, %v911
  %v1024 = vadd.f32 %v884, %v907
  %v1025 = vadd.f32 %v885, %v911
  %v1026 = vadd.f32 %v886, %v907
  %v1027 = vadd.f32 %v887, %v911
  %v1028 = vadd.f32 %v888, %v907
  %v1029 = vadd.f32 %v889, %v911
  %v1030 = vadd.f32 %v890, %v907
  %v1031 = vadd.f32 %v891, %v911
  %v1032 = vadd.f32 %v892, %v907
  %v1033 = vadd.f32 %v893, %v911
  %v1034 = vadd.f32 %v894, %v907
  %v1035 = vadd.f32 %v895, %v911
  %v1036 = vadd.f32 %v896, %v907
  %v1037 = vadd.f32 %v897, %v911
  %v1038 = vadd.f32 %v898, %v907
  %v1039 = vadd.f32 %v899, %v911
  %v1040 = vadd.f32 %v900, %v907
  %v1041 = vadd.f32 %v901, %v911
  %v1042 = vmax.f32 %v914, 0.0
  %v1043 = vmax.f32 %v915, 0.0
  %v1044 = vmax.f32 %v916, 0.0
  %v1045 = vmax.f32 %v917, 0.0
  %v1046 = vmax.f32 %v918, 0.0
  %v1047 = vmax.f32 %v919, 0.0
  %v1048 = vmax.f32 %v920, 0.0
  %v1049 = vmax.f32 %v921, 0.0
  %v1050 = vmax.f32 %v922, 0.0
  %v1051 = vmax.f32 %v923, 0.0
  %v1052 = vmax.f32 %v924, 0.0
  %v1053 = vmax.f32 %v925, 0.0
  %v1054 = vmax.f32 %v926, 0.0
  %v1055 = vmax.f32 %v927, 0.0
  %v1056 = vmax.f32 %v928, 0.0
  %v1057 = vmax.f32 %v929, 0.0
  %v1058 = vmax.f32 %v930, 0.0
  %v1059 = vmax.f32 %v931, 0.0
  %v1060 = vmax.f32 %v932, 0.0
  %v1061 = vmax.f32 %v933, 0.0
  %v1062 = vmax.f32 %v934, 0.0
  %v1063 = vmax.f32 %v935, 0.0
  %v1064 = vmax.f32 %v936, 0.0
  %v1065 = vmax.f32 %v937, 0.0
  %v1066 = vmax.f32 %v938, 0.0
  %v1067 = vmax.f32 %v939, 0.0
  %v1068 = vmax.f32 %v940, 0.0
  %v1069 = vmax.f32 %v941, 0.0
  %v1070 = vmax.f32 %v942, 0.0
  %v1071 = vmax.f32 %v943, 0.0
  %v1072 = vmax.f32 %v944, 0.0
  %v1073 = vmax.f32 %v945, 0.0
  %v1074 = vmax.f32 %v946, 0.0
  %v1075 = vmax.f32 %v947, 0.0
  %v1076 = vmax.f32 %v948, 0.0
  %v1077 = vmax.f32 %v949, 0.0
  %v1078 = vmax.f32 %v950, 0.0
  %v1079 = vmax.f32 %v951, 0.0
  %v1080 = vmax.f32 %v952, 0.0
  %v1081 = vmax.f32 %v953, 0.0
  %v1082 = vmax.f32 %v954, 0.0
  %v1083 = vmax.f32 %v955, 0.0
  %v1084 = vmax.f32 %v956, 0.0
  %v1085 = vmax.f32 %v957, 0.0
  %v1086 = vmax.f32 %v958, 0.0
  %v1087 = vmax.f32 %v959, 0.0
  %v1088 = vmax.f32 %v960, 0.0
  %v1089 = vmax.f32 %v961, 0.0
  %v1090 = vmax.f32 %v962, 0.0
  %v1091 = vmax.f32 %v963, 0.0
  %v1092 = vmax.f32 %v964, 0.0
  %v1093 = vmax.f32 %v965, 0.0
  %v1094 = vmax.f32 %v966, 0.0
  %v1095 = vmax.f32 %v967, 0.0
  %v1096 = vmax.f32 %v968, 0.0
  %v1097 = vmax.f32 %v969, 0.0
  %v1098 = vmax.f32 %v970, 0.0
  %v1099 = vmax.f32 %v971, 0.0
  %v1100 = vmax.f32 %v972, 0.0
  %v1101 = vmax.f32 %v973, 0.0
  %v1102 = vmax.f32 %v974, 0.0
  %v1103 = vmax.f32 %v975, 0.0
  %v1104 = vmax.f32 %v976, 0.0
  %v1105 = vmax.f32 %v977, 0.0
  %v1106 = vmax.f32 %v978, 0.0
  %v1107 = vmax.f32 %v979, 0.0
  %v1108 = vmax.f32 %v980, 0.0
  %v1109 = vmax.f32 %v981, 0.0
  %v1110 = vmax.f32 %v982, 0.0
  %v1111 = vmax.f32 %v983, 0.0
  %v1112 = vmax.f32 %v984, 0.0
  %v1113 = vmax.f32 %v985, 0.0
  %v1114 = vmax.f32 %v986, 0.0
  %v1115 = vmax.f32 %v987, 0.0
  %v1116 = vmax.f32 %v988, 0.0
  %v1117 = vmax.f32 %v989, 0.0
  %v1118 = vmax.f32 %v990, 0.0
  %v1119 = vmax.f32 %v991, 0.0
  %v1120 = vmax.f32 %v992, 0.0
  %v1121 = vmax.f32 %v993, 0.0
  %v1122 = vmax.f32 %v994, 0.0
  %v1123 = vmax.f32 %v995, 0.0
  %v1124 = vmax.f32 %v996, 0.0
  %v1125 = vmax.f32 %v997, 0.0
  %v1126 = vmax.f32 %v998, 0.0
  %v1127 = vmax.f32 %v999, 0.0
  %v1128 = vmax.f32 %v1000, 0.0
  %v1129 = vmax.f32 %v1001, 0.0
  %v1130 = vmax.f32 %v1002, 0.0
  %v1131 = vmax.f32 %v1003, 0.0
  %v1132 = vmax.f32 %v1004, 0.0
  %v1133 = vmax.f32 %v1005, 0.0
  %v1134 = vmax.f32 %v1006, 0.0
  %v1135 = vmax.f32 %v1007, 0.0
  %v1136 = vmax.f32 %v1008, 0.0
  %v1137 = vmax.f32 %v1009, 0.0
  %v1138 = vmax.f32 %v1010, 0.0
  %v1139 = vmax.f32 %v1011, 0.0
  %v1140 = vmax.f32 %v1012, 0.0
  %v1141 = vmax.f32 %v1013, 0.0
  %v1142 = vmax.f32 %v1014, 0.0
  %v1143 = vmax.f32 %v1015, 0.0
  %v1144 = vmax.f32 %v1016, 0.0
  %v1145 = vmax.f32 %v1017, 0.0
  %v1146 = vmax.f32 %v1018, 0.0
  %v1147 = vmax.f32 %v1019, 0.0
  %v1148 = vmax.f32 %v1020, 0.0
  %v1149 = vmax.f32 %v1021, 0.0
  %v1150 = vmax.f32 %v1022, 0.0
  %v1151 = vmax.f32 %v1023, 0.0
  %v1152 = vmax.f32 %v1024, 0.0
  %v1153 = vmax.f32 %v1025, 0.0
  %v1154 = vmax.f32 %v1026, 0.0
  %v1155 = vmax.f32 %v1027, 0.0
  %v1156 = vmax.f32 %v1028, 0.0
  %v1157 = vmax.f32 %v1029, 0.0
  %v1158 = vmax.f32 %v1030, 0.0
  %v1159 = vmax.f32 %v1031, 0.0
  %v1160 = vmax.f32 %v1032, 0.0
  %v1161 = vmax.f32 %v1033, 0.0
  %v1162 = vmax.f32 %v1034, 0.0
  %v1163 = vmax.f32 %v1035, 0.0
  %v1164 = vmax.f32 %v1036, 0.0
  %v1165 = vmax.f32 %v1037, 0.0
  %v1166 = vmax.f32 %v1038, 0.0
  %v1167 = vmax.f32 %v1039, 0.0
  %v1168 = vmax.f32 %v1040, 0.0
  %v1169 = vmax.f32 %v1041, 0.0
  %v1170 = vpack.c.bf16 %v1044, %v1042
  %v1171 = vpack.c.bf16 %v1045, %v1043
  %v1172 = vpack.c.bf16 %v1048, %v1046
  %v1173 = vpack.c.bf16 %v1049, %v1047
  %v1174 = vpack.c.bf16 %v1052, %v1050
  %v1175 = vpack.c.bf16 %v1053, %v1051
  %v1176 = vpack.c.bf16 %v1056, %v1054
  %v1177 = vpack.c.bf16 %v1057, %v1055
  %v1178 = vpack.c.bf16 %v1060, %v1058
  %v1179 = vpack.c.bf16 %v1061, %v1059
  %v1180 = vpack.c.bf16 %v1064, %v1062
  %v1181 = vpack.c.bf16 %v1065, %v1063
  %v1182 = vpack.c.bf16 %v1068, %v1066
  %v1183 = vpack.c.bf16 %v1069, %v1067
  %v1184 = vpack.c.bf16 %v1072, %v1070
  %v1185 = vpack.c.bf16 %v1073, %v1071
  %v1186 = vpack.c.bf16 %v1076, %v1074
  %v1187 = vpack.c.bf16 %v1077, %v1075
  %v1188 = vpack.c.bf16 %v1080, %v1078
  %v1189 = vpack.c.bf16 %v1081, %v1079
  %v1190 = vpack.c.bf16 %v1084, %v1082
  %v1191 = vpack.c.bf16 %v1085, %v1083
  %v1192 = vpack.c.bf16 %v1088, %v1086
  %v1193 = vpack.c.bf16 %v1089, %v1087
  %v1194 = vpack.c.bf16 %v1092, %v1090
  %v1195 = vpack.c.bf16 %v1093, %v1091
  %v1196 = vpack.c.bf16 %v1096, %v1094
  %v1197 = vpack.c.bf16 %v1097, %v1095
  %v1198 = vpack.c.bf16 %v1100, %v1098
  %v1199 = vpack.c.bf16 %v1101, %v1099
  %v1200 = vpack.c.bf16 %v1104, %v1102
  %v1201 = vpack.c.bf16 %v1105, %v1103
  %v1202 = vpack.c.bf16 %v1108, %v1106
  %v1203 = vpack.c.bf16 %v1109, %v1107
  %v1204 = vpack.c.bf16 %v1112, %v1110
  %v1205 = vpack.c.bf16 %v1113, %v1111
  %v1206 = vpack.c.bf16 %v1116, %v1114
  %v1207 = vpack.c.bf16 %v1117, %v1115
  %v1208 = vpack.c.bf16 %v1120, %v1118
  %v1209 = vpack.c.bf16 %v1121, %v1119
  %v1210 = vpack.c.bf16 %v1124, %v1122
  %v1211 = vpack.c.bf16 %v1125, %v1123
  %v1212 = vpack.c.bf16 %v1128, %v1126
  %v1213 = vpack.c.bf16 %v1129, %v1127
  %v1214 = vpack.c.bf16 %v1132, %v1130
  %v1215 = vpack.c.bf16 %v1133, %v1131
  %v1216 = vpack.c.bf16 %v1136, %v1134
  %v1217 = vpack.c.bf16 %v1137, %v1135
  %v1218 = vpack.c.bf16 %v1140, %v1138
  %v1219 = vpack.c.bf16 %v1141, %v1139
  %v1220 = vpack.c.bf16 %v1144, %v1142
  %v1221 = vpack.c.bf16 %v1145, %v1143
  %v1222 = vpack.c.bf16 %v1148, %v1146
  %v1223 = vpack.c.bf16 %v1149, %v1147
  %v1224 = vpack.c.bf16 %v1152, %v1150
  %v1225 = vpack.c.bf16 %v1153, %v1151
  %v1226 = vpack.c.bf16 %v1156, %v1154
  %v1227 = vpack.c.bf16 %v1157, %v1155
  %v1228 = vpack.c.bf16 %v1160, %v1158
  %v1229 = vpack.c.bf16 %v1161, %v1159
  %v1230 = vpack.c.bf16 %v1164, %v1162
  %v1231 = vpack.c.bf16 %v1165, %v1163
  %v1232 = vpack.c.bf16 %v1168, %v1166
  %v1233 = vpack.c.bf16 %v1169, %v1167
  %v1234 = vld [vmem:[%s5] sm:$0xff]
  %v1235 = vld [vmem:[%s5 + $0x8] sm:$0xff]
  %v1236 = vld [vmem:[%s5 + $0x10] sm:$0xff]
  %v1237 = vld [vmem:[%s5 + $0x18] sm:$0xff]
  %v1238 = vld [vmem:[%s5 + $0x20] sm:$0xff]
  %v1239 = vld [vmem:[%s5 + $0x28] sm:$0xff]
  %v1240 = vld [vmem:[%s5 + $0x30] sm:$0xff]
  %v1241 = vld [vmem:[%s5 + $0x38] sm:$0xff]
  %v1242 = vld [vmem:[%s5 + $0x40] sm:$0xff]
  %v1243 = vld [vmem:[%s5 + $0x48] sm:$0xff]
  %v1244 = vld [vmem:[%s5 + $0x50] sm:$0xff]
  %v1245 = vld [vmem:[%s5 + $0x58] sm:$0xff]
  %v1246 = vld [vmem:[%s5 + $0x60] sm:$0xff]
  %v1247 = vld [vmem:[%s5 + $0x68] sm:$0xff]
  %v1248 = vld [vmem:[%s5 + $0x70] sm:$0xff]
  %v1249 = vld [vmem:[%s5 + $0x78] sm:$0xff]
  %v1250 = vld [vmem:[%s5 + $0x80] sm:$0xff]
  %v1251 = vld [vmem:[%s5 + $0x88] sm:$0xff]
  %v1270 = vunpack.c.l.b16 %v1234
  %v1271 = vunpack.c.h.b16 %v1234
  %v1272 = vunpack.c.l.b16 %v1235
  %v1273 = vunpack.c.h.b16 %v1235
  %v1274 = vunpack.c.l.b16 %v1236
  %v1275 = vunpack.c.h.b16 %v1236
  %v1276 = vunpack.c.l.b16 %v1237
  %v1277 = vunpack.c.h.b16 %v1237
  %v1278 = vunpack.c.l.b16 %v1238
  %v1279 = vunpack.c.h.b16 %v1238
  %v1280 = vunpack.c.l.b16 %v1239
  %v1281 = vunpack.c.h.b16 %v1239
  %v1282 = vunpack.c.l.b16 %v1240
  %v1283 = vunpack.c.h.b16 %v1240
  %v1284 = vunpack.c.l.b16 %v1241
  %v1285 = vunpack.c.h.b16 %v1241
  %v1286 = vunpack.c.l.b16 %v1242
  %v1287 = vunpack.c.h.b16 %v1242
  %v1288 = vunpack.c.l.b16 %v1243
  %v1289 = vunpack.c.h.b16 %v1243
  %v1290 = vunpack.c.l.b16 %v1244
  %v1291 = vunpack.c.h.b16 %v1244
  %v1292 = vunpack.c.l.b16 %v1245
  %v1293 = vunpack.c.h.b16 %v1245
  %v1294 = vunpack.c.l.b16 %v1246
  %v1295 = vunpack.c.h.b16 %v1246
  %v1296 = vunpack.c.l.b16 %v1247
  %v1297 = vunpack.c.h.b16 %v1247
  %v1298 = vunpack.c.l.b16 %v1248
  %v1299 = vunpack.c.h.b16 %v1248
  %v1300 = vunpack.c.l.b16 %v1249
  %v1301 = vunpack.c.h.b16 %v1249
  %v1302 = vunpack.c.l.b16 %v1250
  %v1303 = vunpack.c.h.b16 %v1250
  %v1304 = vunpack.c.l.b16 %v1251
  %v1305 = vunpack.c.h.b16 %v1251
  %v1306 = vpack.c.b16 %v1272, %v1270
  %v1307 = vpack.c.b16 %v1273, %v1271
  %v1308 = vpack.c.b16 %v1276, %v1274
  %v1309 = vpack.c.b16 %v1277, %v1275
  %v1310 = vpack.c.b16 %v1280, %v1278
  %v1311 = vpack.c.b16 %v1281, %v1279
  %v1312 = vpack.c.b16 %v1284, %v1282
  %v1313 = vpack.c.b16 %v1285, %v1283
  %v1314 = vpack.c.b16 %v1288, %v1286
  %v1315 = vpack.c.b16 %v1289, %v1287
  %v1316 = vpack.c.b16 %v1292, %v1290
  %v1317 = vpack.c.b16 %v1293, %v1291
  %v1318 = vpack.c.b16 %v1296, %v1294
  %v1319 = vpack.c.b16 %v1297, %v1295
  %v1320 = vpack.c.b16 %v1300, %v1298
  %v1321 = vpack.c.b16 %v1301, %v1299
  %v1322 = vpack.c.b16 %v1304, %v1302
  %v1323 = vpack.c.b16 %v1305, %v1303
  %v1343 = vsel %vm312, %v1171, 0
  %v1346 = vsel %vm312, %v1173, 0
  %v1349 = vsel %vm312, %v1175, 0
  %v1352 = vsel %vm312, %v1177, 0
  %v1355 = vsel %vm312, %v1179, 0
  %v1358 = vsel %vm312, %v1181, 0
  %v1361 = vsel %vm312, %v1183, 0
  %v1364 = vsel %vm312, %v1185, 0
  %v1367 = vsel %vm312, %v1187, 0
  %v1370 = vsel %vm312, %v1189, 0
  %v1373 = vsel %vm312, %v1191, 0
  %v1376 = vsel %vm312, %v1193, 0
  %v1379 = vsel %vm312, %v1195, 0
  %v1382 = vsel %vm312, %v1197, 0
  %v1385 = vsel %vm312, %v1199, 0
  %v1388 = vsel %vm312, %v1201, 0
  %v1391 = vsel %vm312, %v1203, 0
  %v1394 = vsel %vm312, %v1205, 0
  %v1397 = vsel %vm312, %v1207, 0
  %v1400 = vsel %vm312, %v1209, 0
  %v1403 = vsel %vm312, %v1211, 0
  %v1406 = vsel %vm312, %v1213, 0
  %v1409 = vsel %vm312, %v1215, 0
  %v1412 = vsel %vm312, %v1217, 0
  %v1415 = vsel %vm312, %v1219, 0
  %v1418 = vsel %vm312, %v1221, 0
  %v1421 = vsel %vm312, %v1223, 0
  %v1424 = vsel %vm312, %v1225, 0
  %v1427 = vsel %vm312, %v1227, 0
  %v1430 = vsel %vm312, %v1229, 0
  %v1433 = vsel %vm312, %v1231, 0
  %v1436 = vsel %vm312, %v1233, 0
  %1438 = vmatprep.subr.bf16.mxu0 %v1321
  %1439 = vmatpush1.bf16.msra.mxu0 %v1320
  %1440 = vmatprep.subr.bf16.mxu0 %v1319
  %1441 = vmatpush1.bf16.msra.mxu0 %v1318
  %1442 = vmatprep.subr.bf16.mxu0 %v1317
  %1443 = vmatpush1.bf16.msra.mxu0 %v1316
  %1444 = vmatprep.subr.bf16.mxu0 %v1315
  %1445 = vmatpush1.bf16.msra.mxu0 %v1314
  %1446 = vmatprep.subr.bf16.mxu0 %v1313
  %1447 = vmatpush1.bf16.msra.mxu0 %v1312
  %1448 = vmatprep.subr.bf16.mxu0 %v1311
  %1449 = vmatpush1.bf16.msra.mxu0 %v1310
  %1450 = vmatprep.subr.bf16.mxu0 %v1309
  %1451 = vmatpush1.bf16.msra.mxu0 %v1308
  %1452 = vmatprep.subr.bf16.mxu0 %v1307
  %1453 = vmatpush1.bf16.msra.mxu0 %v1306
  %1454 = vmatprep.subr.bf16.mxu0 0
  %1455 = vmatpush2.bf16.msra.mxu0 0
  %1456 = vmatprep.subr.bf16.mxu0 0
  %1457 = vmatpush2.bf16.msra.mxu0 0
  %1458 = vmatprep.subr.bf16.mxu0 0
  %1459 = vmatpush2.bf16.msra.mxu0 0
  %1460 = vmatprep.subr.bf16.mxu0 0
  %1461 = vmatpush2.bf16.msra.mxu0 0
  %1462 = vmatprep.subr.bf16.mxu0 0
  %1463 = vmatpush2.bf16.msra.mxu0 0
  %1464 = vmatprep.subr.bf16.mxu0 0
  %1465 = vmatpush2.bf16.msra.mxu0 0
  %1466 = vmatprep.subr.bf16.mxu0 0
  %1467 = vmatpush2.bf16.msra.mxu0 0
  %1468 = vmatprep.subr.bf16.mxu0 %v1323
  %1469 = vmatpush2.bf16.msra.mxu0 %v1322
  %1470 = vmatprep.mubr.bf16.mxu0 %v1343
  %1471 = vmatmul.mubr.bf16.gmra.mxu0 %v1170
  %v1472 = vpop.f32.mrf.mxu0
  %v1473 = vadd.f32 0.0, %v1472
  %v1474 = vpop.f32.mrf.mxu0
  %v1475 = vadd.f32 0.0, %v1474
  %v1476 = vpop.f32.mrf.mxu0
  %v1477 = vadd.f32 0.0, %v1476
  %v1478 = vpop.f32.mrf.mxu0
  %v1479 = vadd.f32 0.0, %v1478
  %1480 = vmatprep.mubr.bf16.mxu0 %v1346
  %1481 = vmatmul.mubr.bf16.gmra.mxu0 %v1172
  %v1482 = vpop.f32.mrf.mxu0
  %v1483 = vadd.f32 0.0, %v1482
  %v1484 = vpop.f32.mrf.mxu0
  %v1485 = vadd.f32 0.0, %v1484
  %v1486 = vpop.f32.mrf.mxu0
  %v1487 = vadd.f32 0.0, %v1486
  %v1488 = vpop.f32.mrf.mxu0
  %v1489 = vadd.f32 0.0, %v1488
  %1490 = vmatprep.mubr.bf16.mxu0 %v1349
  %1491 = vmatmul.mubr.bf16.gmra.mxu0 %v1174
  %v1492 = vpop.f32.mrf.mxu0
  %v1493 = vadd.f32 0.0, %v1492
  %v1494 = vpop.f32.mrf.mxu0
  %v1495 = vadd.f32 0.0, %v1494
  %v1496 = vpop.f32.mrf.mxu0
  %v1497 = vadd.f32 0.0, %v1496
  %v1498 = vpop.f32.mrf.mxu0
  %v1499 = vadd.f32 0.0, %v1498
  %1500 = vmatprep.mubr.bf16.mxu0 %v1352
  %1501 = vmatmul.mubr.bf16.gmra.mxu0 %v1176
  %v1502 = vpop.f32.mrf.mxu0
  %v1503 = vadd.f32 0.0, %v1502
  %v1504 = vpop.f32.mrf.mxu0
  %v1505 = vadd.f32 0.0, %v1504
  %v1506 = vpop.f32.mrf.mxu0
  %v1507 = vadd.f32 0.0, %v1506
  %v1508 = vpop.f32.mrf.mxu0
  %v1509 = vadd.f32 0.0, %v1508
  %1510 = vmatprep.mubr.bf16.mxu0 %v1355
  %1511 = vmatmul.mubr.bf16.gmra.mxu0 %v1178
  %v1512 = vpop.f32.mrf.mxu0
  %v1513 = vadd.f32 0.0, %v1512
  %v1514 = vpop.f32.mrf.mxu0
  %v1515 = vadd.f32 0.0, %v1514
  %v1516 = vpop.f32.mrf.mxu0
  %v1517 = vadd.f32 0.0, %v1516
  %v1518 = vpop.f32.mrf.mxu0
  %v1519 = vadd.f32 0.0, %v1518
  %1520 = vmatprep.mubr.bf16.mxu0 %v1358
  %1521 = vmatmul.mubr.bf16.gmra.mxu0 %v1180
  %v1522 = vpop.f32.mrf.mxu0
  %v1523 = vadd.f32 0.0, %v1522
  %v1524 = vpop.f32.mrf.mxu0
  %v1525 = vadd.f32 0.0, %v1524
  %v1526 = vpop.f32.mrf.mxu0
  %v1527 = vadd.f32 0.0, %v1526
  %v1528 = vpop.f32.mrf.mxu0
  %v1529 = vadd.f32 0.0, %v1528
  %1530 = vmatprep.mubr.bf16.mxu0 %v1361
  %1531 = vmatmul.mubr.bf16.gmra.mxu0 %v1182
  %v1532 = vpop.f32.mrf.mxu0
  %v1533 = vadd.f32 0.0, %v1532
  %v1534 = vpop.f32.mrf.mxu0
  %v1535 = vadd.f32 0.0, %v1534
  %v1536 = vpop.f32.mrf.mxu0
  %v1537 = vadd.f32 0.0, %v1536
  %v1538 = vpop.f32.mrf.mxu0
  %v1539 = vadd.f32 0.0, %v1538
  %1540 = vmatprep.mubr.bf16.mxu0 %v1364
  %1541 = vmatmul.mubr.bf16.gmra.mxu0 %v1184
  %v1542 = vpop.f32.mrf.mxu0
  %v1543 = vadd.f32 0.0, %v1542
  %v1544 = vpop.f32.mrf.mxu0
  %v1545 = vadd.f32 0.0, %v1544
  %v1546 = vpop.f32.mrf.mxu0
  %v1547 = vadd.f32 0.0, %v1546
  %v1548 = vpop.f32.mrf.mxu0
  %v1549 = vadd.f32 0.0, %v1548
  %1550 = vmatprep.mubr.bf16.mxu0 %v1367
  %1551 = vmatmul.mubr.bf16.gmra.mxu0 %v1186
  %v1552 = vpop.f32.mrf.mxu0
  %v1553 = vadd.f32 0.0, %v1552
  %v1554 = vpop.f32.mrf.mxu0
  %v1555 = vadd.f32 0.0, %v1554
  %v1556 = vpop.f32.mrf.mxu0
  %v1557 = vadd.f32 0.0, %v1556
  %v1558 = vpop.f32.mrf.mxu0
  %v1559 = vadd.f32 0.0, %v1558
  %1560 = vmatprep.mubr.bf16.mxu0 %v1370
  %1561 = vmatmul.mubr.bf16.gmra.mxu0 %v1188
  %v1562 = vpop.f32.mrf.mxu0
  %v1563 = vadd.f32 0.0, %v1562
  %v1564 = vpop.f32.mrf.mxu0
  %v1565 = vadd.f32 0.0, %v1564
  %v1566 = vpop.f32.mrf.mxu0
  %v1567 = vadd.f32 0.0, %v1566
  %v1568 = vpop.f32.mrf.mxu0
  %v1569 = vadd.f32 0.0, %v1568
  %1570 = vmatprep.mubr.bf16.mxu0 %v1373
  %1571 = vmatmul.mubr.bf16.gmra.mxu0 %v1190
  %v1572 = vpop.f32.mrf.mxu0
  %v1573 = vadd.f32 0.0, %v1572
  %v1574 = vpop.f32.mrf.mxu0
  %v1575 = vadd.f32 0.0, %v1574
  %v1576 = vpop.f32.mrf.mxu0
  %v1577 = vadd.f32 0.0, %v1576
  %v1578 = vpop.f32.mrf.mxu0
  %v1579 = vadd.f32 0.0, %v1578
  %1580 = vmatprep.mubr.bf16.mxu0 %v1376
  %1581 = vmatmul.mubr.bf16.gmra.mxu0 %v1192
  %v1582 = vpop.f32.mrf.mxu0
  %v1583 = vadd.f32 0.0, %v1582
  %v1584 = vpop.f32.mrf.mxu0
  %v1585 = vadd.f32 0.0, %v1584
  %v1586 = vpop.f32.mrf.mxu0
  %v1587 = vadd.f32 0.0, %v1586
  %v1588 = vpop.f32.mrf.mxu0
  %v1589 = vadd.f32 0.0, %v1588
  %1590 = vmatprep.mubr.bf16.mxu0 %v1379
  %1591 = vmatmul.mubr.bf16.gmra.mxu0 %v1194
  %v1592 = vpop.f32.mrf.mxu0
  %v1593 = vadd.f32 0.0, %v1592
  %v1594 = vpop.f32.mrf.mxu0
  %v1595 = vadd.f32 0.0, %v1594
  %v1596 = vpop.f32.mrf.mxu0
  %v1597 = vadd.f32 0.0, %v1596
  %v1598 = vpop.f32.mrf.mxu0
  %v1599 = vadd.f32 0.0, %v1598
  %1600 = vmatprep.mubr.bf16.mxu0 %v1382
  %1601 = vmatmul.mubr.bf16.gmra.mxu0 %v1196
  %v1602 = vpop.f32.mrf.mxu0
  %v1603 = vadd.f32 0.0, %v1602
  %v1604 = vpop.f32.mrf.mxu0
  %v1605 = vadd.f32 0.0, %v1604
  %v1606 = vpop.f32.mrf.mxu0
  %v1607 = vadd.f32 0.0, %v1606
  %v1608 = vpop.f32.mrf.mxu0
  %v1609 = vadd.f32 0.0, %v1608
  %1610 = vmatprep.mubr.bf16.mxu0 %v1385
  %1611 = vmatmul.mubr.bf16.gmra.mxu0 %v1198
  %v1612 = vpop.f32.mrf.mxu0
  %v1613 = vadd.f32 0.0, %v1612
  %v1614 = vpop.f32.mrf.mxu0
  %v1615 = vadd.f32 0.0, %v1614
  %v1616 = vpop.f32.mrf.mxu0
  %v1617 = vadd.f32 0.0, %v1616
  %v1618 = vpop.f32.mrf.mxu0
  %v1619 = vadd.f32 0.0, %v1618
  %1620 = vmatprep.mubr.bf16.mxu0 %v1388
  %1621 = vmatmul.mubr.bf16.gmra.mxu0 %v1200
  %v1622 = vpop.f32.mrf.mxu0
  %v1623 = vadd.f32 0.0, %v1622
  %v1624 = vpop.f32.mrf.mxu0
  %v1625 = vadd.f32 0.0, %v1624
  %v1626 = vpop.f32.mrf.mxu0
  %v1627 = vadd.f32 0.0, %v1626
  %v1628 = vpop.f32.mrf.mxu0
  %v1629 = vadd.f32 0.0, %v1628
  %1630 = vmatprep.mubr.bf16.mxu0 %v1391
  %1631 = vmatmul.mubr.bf16.gmra.mxu0 %v1202
  %v1632 = vpop.f32.mrf.mxu0
  %v1633 = vadd.f32 0.0, %v1632
  %v1634 = vpop.f32.mrf.mxu0
  %v1635 = vadd.f32 0.0, %v1634
  %v1636 = vpop.f32.mrf.mxu0
  %v1637 = vadd.f32 0.0, %v1636
  %v1638 = vpop.f32.mrf.mxu0
  %v1639 = vadd.f32 0.0, %v1638
  %1640 = vmatprep.mubr.bf16.mxu0 %v1394
  %1641 = vmatmul.mubr.bf16.gmra.mxu0 %v1204
  %v1642 = vpop.f32.mrf.mxu0
  %v1643 = vadd.f32 0.0, %v1642
  %v1644 = vpop.f32.mrf.mxu0
  %v1645 = vadd.f32 0.0, %v1644
  %v1646 = vpop.f32.mrf.mxu0
  %v1647 = vadd.f32 0.0, %v1646
  %v1648 = vpop.f32.mrf.mxu0
  %v1649 = vadd.f32 0.0, %v1648
  %1650 = vmatprep.mubr.bf16.mxu0 %v1397
  %1651 = vmatmul.mubr.bf16.gmra.mxu0 %v1206
  %v1652 = vpop.f32.mrf.mxu0
  %v1653 = vadd.f32 0.0, %v1652
  %v1654 = vpop.f32.mrf.mxu0
  %v1655 = vadd.f32 0.0, %v1654
  %v1656 = vpop.f32.mrf.mxu0
  %v1657 = vadd.f32 0.0, %v1656
  %v1658 = vpop.f32.mrf.mxu0
  %v1659 = vadd.f32 0.0, %v1658
  %1660 = vmatprep.mubr.bf16.mxu0 %v1400
  %1661 = vmatmul.mubr.bf16.gmra.mxu0 %v1208
  %v1662 = vpop.f32.mrf.mxu0
  %v1663 = vadd.f32 0.0, %v1662
  %v1664 = vpop.f32.mrf.mxu0
  %v1665 = vadd.f32 0.0, %v1664
  %v1666 = vpop.f32.mrf.mxu0
  %v1667 = vadd.f32 0.0, %v1666
  %v1668 = vpop.f32.mrf.mxu0
  %v1669 = vadd.f32 0.0, %v1668
  %1670 = vmatprep.mubr.bf16.mxu0 %v1403
  %1671 = vmatmul.mubr.bf16.gmra.mxu0 %v1210
  %v1672 = vpop.f32.mrf.mxu0
  %v1673 = vadd.f32 0.0, %v1672
  %v1674 = vpop.f32.mrf.mxu0
  %v1675 = vadd.f32 0.0, %v1674
  %v1676 = vpop.f32.mrf.mxu0
  %v1677 = vadd.f32 0.0, %v1676
  %v1678 = vpop.f32.mrf.mxu0
  %v1679 = vadd.f32 0.0, %v1678
  %1680 = vmatprep.mubr.bf16.mxu0 %v1406
  %1681 = vmatmul.mubr.bf16.gmra.mxu0 %v1212
  %v1682 = vpop.f32.mrf.mxu0
  %v1683 = vadd.f32 0.0, %v1682
  %v1684 = vpop.f32.mrf.mxu0
  %v1685 = vadd.f32 0.0, %v1684
  %v1686 = vpop.f32.mrf.mxu0
  %v1687 = vadd.f32 0.0, %v1686
  %v1688 = vpop.f32.mrf.mxu0
  %v1689 = vadd.f32 0.0, %v1688
  %1690 = vmatprep.mubr.bf16.mxu0 %v1409
  %1691 = vmatmul.mubr.bf16.gmra.mxu0 %v1214
  %v1692 = vpop.f32.mrf.mxu0
  %v1693 = vadd.f32 0.0, %v1692
  %v1694 = vpop.f32.mrf.mxu0
  %v1695 = vadd.f32 0.0, %v1694
  %v1696 = vpop.f32.mrf.mxu0
  %v1697 = vadd.f32 0.0, %v1696
  %v1698 = vpop.f32.mrf.mxu0
  %v1699 = vadd.f32 0.0, %v1698
  %1700 = vmatprep.mubr.bf16.mxu0 %v1412
  %1701 = vmatmul.mubr.bf16.gmra.mxu0 %v1216
  %v1702 = vpop.f32.mrf.mxu0
  %v1703 = vadd.f32 0.0, %v1702
  %v1704 = vpop.f32.mrf.mxu0
  %v1705 = vadd.f32 0.0, %v1704
  %v1706 = vpop.f32.mrf.mxu0
  %v1707 = vadd.f32 0.0, %v1706
  %v1708 = vpop.f32.mrf.mxu0
  %v1709 = vadd.f32 0.0, %v1708
  %1710 = vmatprep.mubr.bf16.mxu0 %v1415
  %1711 = vmatmul.mubr.bf16.gmra.mxu0 %v1218
  %v1712 = vpop.f32.mrf.mxu0
  %v1713 = vadd.f32 0.0, %v1712
  %v1714 = vpop.f32.mrf.mxu0
  %v1715 = vadd.f32 0.0, %v1714
  %v1716 = vpop.f32.mrf.mxu0
  %v1717 = vadd.f32 0.0, %v1716
  %v1718 = vpop.f32.mrf.mxu0
  %v1719 = vadd.f32 0.0, %v1718
  %1720 = vmatprep.mubr.bf16.mxu0 %v1418
  %1721 = vmatmul.mubr.bf16.gmra.mxu0 %v1220
  %v1722 = vpop.f32.mrf.mxu0
  %v1723 = vadd.f32 0.0, %v1722
  %v1724 = vpop.f32.mrf.mxu0
  %v1725 = vadd.f32 0.0, %v1724
  %v1726 = vpop.f32.mrf.mxu0
  %v1727 = vadd.f32 0.0, %v1726
  %v1728 = vpop.f32.mrf.mxu0
  %v1729 = vadd.f32 0.0, %v1728
  %1730 = vmatprep.mubr.bf16.mxu0 %v1421
  %1731 = vmatmul.mubr.bf16.gmra.mxu0 %v1222
  %v1732 = vpop.f32.mrf.mxu0
  %v1733 = vadd.f32 0.0, %v1732
  %v1734 = vpop.f32.mrf.mxu0
  %v1735 = vadd.f32 0.0, %v1734
  %v1736 = vpop.f32.mrf.mxu0
  %v1737 = vadd.f32 0.0, %v1736
  %v1738 = vpop.f32.mrf.mxu0
  %v1739 = vadd.f32 0.0, %v1738
  %1740 = vmatprep.mubr.bf16.mxu0 %v1424
  %1741 = vmatmul.mubr.bf16.gmra.mxu0 %v1224
  %v1742 = vpop.f32.mrf.mxu0
  %v1743 = vadd.f32 0.0, %v1742
  %v1744 = vpop.f32.mrf.mxu0
  %v1745 = vadd.f32 0.0, %v1744
  %v1746 = vpop.f32.mrf.mxu0
  %v1747 = vadd.f32 0.0, %v1746
  %v1748 = vpop.f32.mrf.mxu0
  %v1749 = vadd.f32 0.0, %v1748
  %1750 = vmatprep.mubr.bf16.mxu0 %v1427
  %1751 = vmatmul.mubr.bf16.gmra.mxu0 %v1226
  %v1752 = vpop.f32.mrf.mxu0
  %v1753 = vadd.f32 0.0, %v1752
  %v1754 = vpop.f32.mrf.mxu0
  %v1755 = vadd.f32 0.0, %v1754
  %v1756 = vpop.f32.mrf.mxu0
  %v1757 = vadd.f32 0.0, %v1756
  %v1758 = vpop.f32.mrf.mxu0
  %v1759 = vadd.f32 0.0, %v1758
  %1760 = vmatprep.mubr.bf16.mxu0 %v1430
  %1761 = vmatmul.mubr.bf16.gmra.mxu0 %v1228
  %v1762 = vpop.f32.mrf.mxu0
  %v1763 = vadd.f32 0.0, %v1762
  %v1764 = vpop.f32.mrf.mxu0
  %v1765 = vadd.f32 0.0, %v1764
  %v1766 = vpop.f32.mrf.mxu0
  %v1767 = vadd.f32 0.0, %v1766
  %v1768 = vpop.f32.mrf.mxu0
  %v1769 = vadd.f32 0.0, %v1768
  %1770 = vmatprep.mubr.bf16.mxu0 %v1433
  %1771 = vmatmul.mubr.bf16.gmra.mxu0 %v1230
  %v1772 = vpop.f32.mrf.mxu0
  %v1773 = vadd.f32 0.0, %v1772
  %v1774 = vpop.f32.mrf.mxu0
  %v1775 = vadd.f32 0.0, %v1774
  %v1776 = vpop.f32.mrf.mxu0
  %v1777 = vadd.f32 0.0, %v1776
  %v1778 = vpop.f32.mrf.mxu0
  %v1779 = vadd.f32 0.0, %v1778
  %1780 = vmatprep.mubr.bf16.mxu0 %v1436
  %1781 = vmatmul.mubr.bf16.gmra.mxu0 %v1232
  %v1782 = vpop.f32.mrf.mxu0
  %v1783 = vadd.f32 0.0, %v1782
  %v1784 = vpop.f32.mrf.mxu0
  %v1785 = vadd.f32 0.0, %v1784
  %v1786 = vpop.f32.mrf.mxu0
  %v1787 = vadd.f32 0.0, %v1786
  %v1788 = vpop.f32.mrf.mxu0
  %v1789 = vadd.f32 0.0, %v1788
  %1790 = vdwg.mxu0
  %v1791 = vld [vmem:[%s6] sm:$0x3]
  %v1793 = vlaneseq
  %v1794 = vshrl.u32 %v1793, 7
  %v1795 = vsub.s32 0, %v1794
  %v1796 = vrot.slane %v1791, %v1795
  %v1797 = vlaneseq
  %v1798 = vshrl.u32 %v1797, 7
  %v1799 = vsub.s32 1, %v1798
  %v1800 = vrot.slane %v1791, %v1799
  %v1803 = vmul.f32 %v1473, %v1796
  %v1804 = vmul.f32 %v1475, %v1800
  %v1805 = vmul.f32 %v1477, %v1796
  %v1806 = vmul.f32 %v1479, %v1800
  %v1807 = vmul.f32 %v1483, %v1796
  %v1808 = vmul.f32 %v1485, %v1800
  %v1809 = vmul.f32 %v1487, %v1796
  %v1810 = vmul.f32 %v1489, %v1800
  %v1811 = vmul.f32 %v1493, %v1796
  %v1812 = vmul.f32 %v1495, %v1800
  %v1813 = vmul.f32 %v1497, %v1796
  %v1814 = vmul.f32 %v1499, %v1800
  %v1815 = vmul.f32 %v1503, %v1796
  %v1816 = vmul.f32 %v1505, %v1800
  %v1817 = vmul.f32 %v1507, %v1796
  %v1818 = vmul.f32 %v1509, %v1800
  %v1819 = vmul.f32 %v1513, %v1796
  %v1820 = vmul.f32 %v1515, %v1800
  %v1821 = vmul.f32 %v1517, %v1796
  %v1822 = vmul.f32 %v1519, %v1800
  %v1823 = vmul.f32 %v1523, %v1796
  %v1824 = vmul.f32 %v1525, %v1800
  %v1825 = vmul.f32 %v1527, %v1796
  %v1826 = vmul.f32 %v1529, %v1800
  %v1827 = vmul.f32 %v1533, %v1796
  %v1828 = vmul.f32 %v1535, %v1800
  %v1829 = vmul.f32 %v1537, %v1796
  %v1830 = vmul.f32 %v1539, %v1800
  %v1831 = vmul.f32 %v1543, %v1796
  %v1832 = vmul.f32 %v1545, %v1800
  %v1833 = vmul.f32 %v1547, %v1796
  %v1834 = vmul.f32 %v1549, %v1800
  %v1835 = vmul.f32 %v1553, %v1796
  %v1836 = vmul.f32 %v1555, %v1800
  %v1837 = vmul.f32 %v1557, %v1796
  %v1838 = vmul.f32 %v1559, %v1800
  %v1839 = vmul.f32 %v1563, %v1796
  %v1840 = vmul.f32 %v1565, %v1800
  %v1841 = vmul.f32 %v1567, %v1796
  %v1842 = vmul.f32 %v1569, %v1800
  %v1843 = vmul.f32 %v1573, %v1796
  %v1844 = vmul.f32 %v1575, %v1800
  %v1845 = vmul.f32 %v1577, %v1796
  %v1846 = vmul.f32 %v1579, %v1800
  %v1847 = vmul.f32 %v1583, %v1796
  %v1848 = vmul.f32 %v1585, %v1800
  %v1849 = vmul.f32 %v1587, %v1796
  %v1850 = vmul.f32 %v1589, %v1800
  %v1851 = vmul.f32 %v1593, %v1796
  %v1852 = vmul.f32 %v1595, %v1800
  %v1853 = vmul.f32 %v1597, %v1796
  %v1854 = vmul.f32 %v1599, %v1800
  %v1855 = vmul.f32 %v1603, %v1796
  %v1856 = vmul.f32 %v1605, %v1800
  %v1857 = vmul.f32 %v1607, %v1796
  %v1858 = vmul.f32 %v1609, %v1800
  %v1859 = vmul.f32 %v1613, %v1796
  %v1860 = vmul.f32 %v1615, %v1800
  %v1861 = vmul.f32 %v1617, %v1796
  %v1862 = vmul.f32 %v1619, %v1800
  %v1863 = vmul.f32 %v1623, %v1796
  %v1864 = vmul.f32 %v1625, %v1800
  %v1865 = vmul.f32 %v1627, %v1796
  %v1866 = vmul.f32 %v1629, %v1800
  %v1867 = vmul.f32 %v1633, %v1796
  %v1868 = vmul.f32 %v1635, %v1800
  %v1869 = vmul.f32 %v1637, %v1796
  %v1870 = vmul.f32 %v1639, %v1800
  %v1871 = vmul.f32 %v1643, %v1796
  %v1872 = vmul.f32 %v1645, %v1800
  %v1873 = vmul.f32 %v1647, %v1796
  %v1874 = vmul.f32 %v1649, %v1800
  %v1875 = vmul.f32 %v1653, %v1796
  %v1876 = vmul.f32 %v1655, %v1800
  %v1877 = vmul.f32 %v1657, %v1796
  %v1878 = vmul.f32 %v1659, %v1800
  %v1879 = vmul.f32 %v1663, %v1796
  %v1880 = vmul.f32 %v1665, %v1800
  %v1881 = vmul.f32 %v1667, %v1796
  %v1882 = vmul.f32 %v1669, %v1800
  %v1883 = vmul.f32 %v1673, %v1796
  %v1884 = vmul.f32 %v1675, %v1800
  %v1885 = vmul.f32 %v1677, %v1796
  %v1886 = vmul.f32 %v1679, %v1800
  %v1887 = vmul.f32 %v1683, %v1796
  %v1888 = vmul.f32 %v1685, %v1800
  %v1889 = vmul.f32 %v1687, %v1796
  %v1890 = vmul.f32 %v1689, %v1800
  %v1891 = vmul.f32 %v1693, %v1796
  %v1892 = vmul.f32 %v1695, %v1800
  %v1893 = vmul.f32 %v1697, %v1796
  %v1894 = vmul.f32 %v1699, %v1800
  %v1895 = vmul.f32 %v1703, %v1796
  %v1896 = vmul.f32 %v1705, %v1800
  %v1897 = vmul.f32 %v1707, %v1796
  %v1898 = vmul.f32 %v1709, %v1800
  %v1899 = vmul.f32 %v1713, %v1796
  %v1900 = vmul.f32 %v1715, %v1800
  %v1901 = vmul.f32 %v1717, %v1796
  %v1902 = vmul.f32 %v1719, %v1800
  %v1903 = vmul.f32 %v1723, %v1796
  %v1904 = vmul.f32 %v1725, %v1800
  %v1905 = vmul.f32 %v1727, %v1796
  %v1906 = vmul.f32 %v1729, %v1800
  %v1907 = vmul.f32 %v1733, %v1796
  %v1908 = vmul.f32 %v1735, %v1800
  %v1909 = vmul.f32 %v1737, %v1796
  %v1910 = vmul.f32 %v1739, %v1800
  %v1911 = vmul.f32 %v1743, %v1796
  %v1912 = vmul.f32 %v1745, %v1800
  %v1913 = vmul.f32 %v1747, %v1796
  %v1914 = vmul.f32 %v1749, %v1800
  %v1915 = vmul.f32 %v1753, %v1796
  %v1916 = vmul.f32 %v1755, %v1800
  %v1917 = vmul.f32 %v1757, %v1796
  %v1918 = vmul.f32 %v1759, %v1800
  %v1919 = vmul.f32 %v1763, %v1796
  %v1920 = vmul.f32 %v1765, %v1800
  %v1921 = vmul.f32 %v1767, %v1796
  %v1922 = vmul.f32 %v1769, %v1800
  %v1923 = vmul.f32 %v1773, %v1796
  %v1924 = vmul.f32 %v1775, %v1800
  %v1925 = vmul.f32 %v1777, %v1796
  %v1926 = vmul.f32 %v1779, %v1800
  %v1927 = vmul.f32 %v1783, %v1796
  %v1928 = vmul.f32 %v1785, %v1800
  %v1929 = vmul.f32 %v1787, %v1796
  %v1930 = vmul.f32 %v1789, %v1800
  %v1931 = vld [vmem:[%s7] sm:$0x3]
  %v1933 = vlaneseq
  %v1934 = vshrl.u32 %v1933, 7
  %v1935 = vsub.s32 0, %v1934
  %v1936 = vrot.slane %v1931, %v1935
  %v1937 = vlaneseq
  %v1938 = vshrl.u32 %v1937, 7
  %v1939 = vsub.s32 1, %v1938
  %v1940 = vrot.slane %v1931, %v1939
  %v1943 = vadd.f32 %v1803, %v1936
  %v1944 = vadd.f32 %v1804, %v1940
  %v1945 = vadd.f32 %v1805, %v1936
  %v1946 = vadd.f32 %v1806, %v1940
  %v1947 = vadd.f32 %v1807, %v1936
  %v1948 = vadd.f32 %v1808, %v1940
  %v1949 = vadd.f32 %v1809, %v1936
  %v1950 = vadd.f32 %v1810, %v1940
  %v1951 = vadd.f32 %v1811, %v1936
  %v1952 = vadd.f32 %v1812, %v1940
  %v1953 = vadd.f32 %v1813, %v1936
  %v1954 = vadd.f32 %v1814, %v1940
  %v1955 = vadd.f32 %v1815, %v1936
  %v1956 = vadd.f32 %v1816, %v1940
  %v1957 = vadd.f32 %v1817, %v1936
  %v1958 = vadd.f32 %v1818, %v1940
  %v1959 = vadd.f32 %v1819, %v1936
  %v1960 = vadd.f32 %v1820, %v1940
  %v1961 = vadd.f32 %v1821, %v1936
  %v1962 = vadd.f32 %v1822, %v1940
  %v1963 = vadd.f32 %v1823, %v1936
  %v1964 = vadd.f32 %v1824, %v1940
  %v1965 = vadd.f32 %v1825, %v1936
  %v1966 = vadd.f32 %v1826, %v1940
  %v1967 = vadd.f32 %v1827, %v1936
  %v1968 = vadd.f32 %v1828, %v1940
  %v1969 = vadd.f32 %v1829, %v1936
  %v1970 = vadd.f32 %v1830, %v1940
  %v1971 = vadd.f32 %v1831, %v1936
  %v1972 = vadd.f32 %v1832, %v1940
  %v1973 = vadd.f32 %v1833, %v1936
  %v1974 = vadd.f32 %v1834, %v1940
  %v1975 = vadd.f32 %v1835, %v1936
  %v1976 = vadd.f32 %v1836, %v1940
  %v1977 = vadd.f32 %v1837, %v1936
  %v1978 = vadd.f32 %v1838, %v1940
  %v1979 = vadd.f32 %v1839, %v1936
  %v1980 = vadd.f32 %v1840, %v1940
  %v1981 = vadd.f32 %v1841, %v1936
  %v1982 = vadd.f32 %v1842, %v1940
  %v1983 = vadd.f32 %v1843, %v1936
  %v1984 = vadd.f32 %v1844, %v1940
  %v1985 = vadd.f32 %v1845, %v1936
  %v1986 = vadd.f32 %v1846, %v1940
  %v1987 = vadd.f32 %v1847, %v1936
  %v1988 = vadd.f32 %v1848, %v1940
  %v1989 = vadd.f32 %v1849, %v1936
  %v1990 = vadd.f32 %v1850, %v1940
  %v1991 = vadd.f32 %v1851, %v1936
  %v1992 = vadd.f32 %v1852, %v1940
  %v1993 = vadd.f32 %v1853, %v1936
  %v1994 = vadd.f32 %v1854, %v1940
  %v1995 = vadd.f32 %v1855, %v1936
  %v1996 = vadd.f32 %v1856, %v1940
  %v1997 = vadd.f32 %v1857, %v1936
  %v1998 = vadd.f32 %v1858, %v1940
  %v1999 = vadd.f32 %v1859, %v1936
  %v2000 = vadd.f32 %v1860, %v1940
  %v2001 = vadd.f32 %v1861, %v1936
  %v2002 = vadd.f32 %v1862, %v1940
  %v2003 = vadd.f32 %v1863, %v1936
  %v2004 = vadd.f32 %v1864, %v1940
  %v2005 = vadd.f32 %v1865, %v1936
  %v2006 = vadd.f32 %v1866, %v1940
  %v2007 = vadd.f32 %v1867, %v1936
  %v2008 = vadd.f32 %v1868, %v1940
  %v2009 = vadd.f32 %v1869, %v1936
  %v2010 = vadd.f32 %v1870, %v1940
  %v2011 = vadd.f32 %v1871, %v1936
  %v2012 = vadd.f32 %v1872, %v1940
  %v2013 = vadd.f32 %v1873, %v1936
  %v2014 = vadd.f32 %v1874, %v1940
  %v2015 = vadd.f32 %v1875, %v1936
  %v2016 = vadd.f32 %v1876, %v1940
  %v2017 = vadd.f32 %v1877, %v1936
  %v2018 = vadd.f32 %v1878, %v1940
  %v2019 = vadd.f32 %v1879, %v1936
  %v2020 = vadd.f32 %v1880, %v1940
  %v2021 = vadd.f32 %v1881, %v1936
  %v2022 = vadd.f32 %v1882, %v1940
  %v2023 = vadd.f32 %v1883, %v1936
  %v2024 = vadd.f32 %v1884, %v1940
  %v2025 = vadd.f32 %v1885, %v1936
  %v2026 = vadd.f32 %v1886, %v1940
  %v2027 = vadd.f32 %v1887, %v1936
  %v2028 = vadd.f32 %v1888, %v1940
  %v2029 = vadd.f32 %v1889, %v1936
  %v2030 = vadd.f32 %v1890, %v1940
  %v2031 = vadd.f32 %v1891, %v1936
  %v2032 = vadd.f32 %v1892, %v1940
  %v2033 = vadd.f32 %v1893, %v1936
  %v2034 = vadd.f32 %v1894, %v1940
  %v2035 = vadd.f32 %v1895, %v1936
  %v2036 = vadd.f32 %v1896, %v1940
  %v2037 = vadd.f32 %v1897, %v1936
  %v2038 = vadd.f32 %v1898, %v1940
  %v2039 = vadd.f32 %v1899, %v1936
  %v2040 = vadd.f32 %v1900, %v1940
  %v2041 = vadd.f32 %v1901, %v1936
  %v2042 = vadd.f32 %v1902, %v1940
  %v2043 = vadd.f32 %v1903, %v1936
  %v2044 = vadd.f32 %v1904, %v1940
  %v2045 = vadd.f32 %v1905, %v1936
  %v2046 = vadd.f32 %v1906, %v1940
  %v2047 = vadd.f32 %v1907, %v1936
  %v2048 = vadd.f32 %v1908, %v1940
  %v2049 = vadd.f32 %v1909, %v1936
  %v2050 = vadd.f32 %v1910, %v1940
  %v2051 = vadd.f32 %v1911, %v1936
  %v2052 = vadd.f32 %v1912, %v1940
  %v2053 = vadd.f32 %v1913, %v1936
  %v2054 = vadd.f32 %v1914, %v1940
  %v2055 = vadd.f32 %v1915, %v1936
  %v2056 = vadd.f32 %v1916, %v1940
  %v2057 = vadd.f32 %v1917, %v1936
  %v2058 = vadd.f32 %v1918, %v1940
  %v2059 = vadd.f32 %v1919, %v1936
  %v2060 = vadd.f32 %v1920, %v1940
  %v2061 = vadd.f32 %v1921, %v1936
  %v2062 = vadd.f32 %v1922, %v1940
  %v2063 = vadd.f32 %v1923, %v1936
  %v2064 = vadd.f32 %v1924, %v1940
  %v2065 = vadd.f32 %v1925, %v1936
  %v2066 = vadd.f32 %v1926, %v1940
  %v2067 = vadd.f32 %v1927, %v1936
  %v2068 = vadd.f32 %v1928, %v1940
  %v2069 = vadd.f32 %v1929, %v1936
  %v2070 = vadd.f32 %v1930, %v1940
  %v2071 = vmax.f32 %v1943, 0.0
  %v2072 = vmax.f32 %v1944, 0.0
  %v2073 = vmax.f32 %v1945, 0.0
  %v2074 = vmax.f32 %v1946, 0.0
  %v2075 = vmax.f32 %v1947, 0.0
  %v2076 = vmax.f32 %v1948, 0.0
  %v2077 = vmax.f32 %v1949, 0.0
  %v2078 = vmax.f32 %v1950, 0.0
  %v2079 = vmax.f32 %v1951, 0.0
  %v2080 = vmax.f32 %v1952, 0.0
  %v2081 = vmax.f32 %v1953, 0.0
  %v2082 = vmax.f32 %v1954, 0.0
  %v2083 = vmax.f32 %v1955, 0.0
  %v2084 = vmax.f32 %v1956, 0.0
  %v2085 = vmax.f32 %v1957, 0.0
  %v2086 = vmax.f32 %v1958, 0.0
  %v2087 = vmax.f32 %v1959, 0.0
  %v2088 = vmax.f32 %v1960, 0.0
  %v2089 = vmax.f32 %v1961, 0.0
  %v2090 = vmax.f32 %v1962, 0.0
  %v2091 = vmax.f32 %v1963, 0.0
  %v2092 = vmax.f32 %v1964, 0.0
  %v2093 = vmax.f32 %v1965, 0.0
  %v2094 = vmax.f32 %v1966, 0.0
  %v2095 = vmax.f32 %v1967, 0.0
  %v2096 = vmax.f32 %v1968, 0.0
  %v2097 = vmax.f32 %v1969, 0.0
  %v2098 = vmax.f32 %v1970, 0.0
  %v2099 = vmax.f32 %v1971, 0.0
  %v2100 = vmax.f32 %v1972, 0.0
  %v2101 = vmax.f32 %v1973, 0.0
  %v2102 = vmax.f32 %v1974, 0.0
  %v2103 = vmax.f32 %v1975, 0.0
  %v2104 = vmax.f32 %v1976, 0.0
  %v2105 = vmax.f32 %v1977, 0.0
  %v2106 = vmax.f32 %v1978, 0.0
  %v2107 = vmax.f32 %v1979, 0.0
  %v2108 = vmax.f32 %v1980, 0.0
  %v2109 = vmax.f32 %v1981, 0.0
  %v2110 = vmax.f32 %v1982, 0.0
  %v2111 = vmax.f32 %v1983, 0.0
  %v2112 = vmax.f32 %v1984, 0.0
  %v2113 = vmax.f32 %v1985, 0.0
  %v2114 = vmax.f32 %v1986, 0.0
  %v2115 = vmax.f32 %v1987, 0.0
  %v2116 = vmax.f32 %v1988, 0.0
  %v2117 = vmax.f32 %v1989, 0.0
  %v2118 = vmax.f32 %v1990, 0.0
  %v2119 = vmax.f32 %v1991, 0.0
  %v2120 = vmax.f32 %v1992, 0.0
  %v2121 = vmax.f32 %v1993, 0.0
  %v2122 = vmax.f32 %v1994, 0.0
  %v2123 = vmax.f32 %v1995, 0.0
  %v2124 = vmax.f32 %v1996, 0.0
  %v2125 = vmax.f32 %v1997, 0.0
  %v2126 = vmax.f32 %v1998, 0.0
  %v2127 = vmax.f32 %v1999, 0.0
  %v2128 = vmax.f32 %v2000, 0.0
  %v2129 = vmax.f32 %v2001, 0.0
  %v2130 = vmax.f32 %v2002, 0.0
  %v2131 = vmax.f32 %v2003, 0.0
  %v2132 = vmax.f32 %v2004, 0.0
  %v2133 = vmax.f32 %v2005, 0.0
  %v2134 = vmax.f32 %v2006, 0.0
  %v2135 = vmax.f32 %v2007, 0.0
  %v2136 = vmax.f32 %v2008, 0.0
  %v2137 = vmax.f32 %v2009, 0.0
  %v2138 = vmax.f32 %v2010, 0.0
  %v2139 = vmax.f32 %v2011, 0.0
  %v2140 = vmax.f32 %v2012, 0.0
  %v2141 = vmax.f32 %v2013, 0.0
  %v2142 = vmax.f32 %v2014, 0.0
  %v2143 = vmax.f32 %v2015, 0.0
  %v2144 = vmax.f32 %v2016, 0.0
  %v2145 = vmax.f32 %v2017, 0.0
  %v2146 = vmax.f32 %v2018, 0.0
  %v2147 = vmax.f32 %v2019, 0.0
  %v2148 = vmax.f32 %v2020, 0.0
  %v2149 = vmax.f32 %v2021, 0.0
  %v2150 = vmax.f32 %v2022, 0.0
  %v2151 = vmax.f32 %v2023, 0.0
  %v2152 = vmax.f32 %v2024, 0.0
  %v2153 = vmax.f32 %v2025, 0.0
  %v2154 = vmax.f32 %v2026, 0.0
  %v2155 = vmax.f32 %v2027, 0.0
  %v2156 = vmax.f32 %v2028, 0.0
  %v2157 = vmax.f32 %v2029, 0.0
  %v2158 = vmax.f32 %v2030, 0.0
  %v2159 = vmax.f32 %v2031, 0.0
  %v2160 = vmax.f32 %v2032, 0.0
  %v2161 = vmax.f32 %v2033, 0.0
  %v2162 = vmax.f32 %v2034, 0.0
  %v2163 = vmax.f32 %v2035, 0.0
  %v2164 = vmax.f32 %v2036, 0.0
  %v2165 = vmax.f32 %v2037, 0.0
  %v2166 = vmax.f32 %v2038, 0.0
  %v2167 = vmax.f32 %v2039, 0.0
  %v2168 = vmax.f32 %v2040, 0.0
  %v2169 = vmax.f32 %v2041, 0.0
  %v2170 = vmax.f32 %v2042, 0.0
  %v2171 = vmax.f32 %v2043, 0.0
  %v2172 = vmax.f32 %v2044, 0.0
  %v2173 = vmax.f32 %v2045, 0.0
  %v2174 = vmax.f32 %v2046, 0.0
  %v2175 = vmax.f32 %v2047, 0.0
  %v2176 = vmax.f32 %v2048, 0.0
  %v2177 = vmax.f32 %v2049, 0.0
  %v2178 = vmax.f32 %v2050, 0.0
  %v2179 = vmax.f32 %v2051, 0.0
  %v2180 = vmax.f32 %v2052, 0.0
  %v2181 = vmax.f32 %v2053, 0.0
  %v2182 = vmax.f32 %v2054, 0.0
  %v2183 = vmax.f32 %v2055, 0.0
  %v2184 = vmax.f32 %v2056, 0.0
  %v2185 = vmax.f32 %v2057, 0.0
  %v2186 = vmax.f32 %v2058, 0.0
  %v2187 = vmax.f32 %v2059, 0.0
  %v2188 = vmax.f32 %v2060, 0.0
  %v2189 = vmax.f32 %v2061, 0.0
  %v2190 = vmax.f32 %v2062, 0.0
  %v2191 = vmax.f32 %v2063, 0.0
  %v2192 = vmax.f32 %v2064, 0.0
  %v2193 = vmax.f32 %v2065, 0.0
  %v2194 = vmax.f32 %v2066, 0.0
  %v2195 = vmax.f32 %v2067, 0.0
  %v2196 = vmax.f32 %v2068, 0.0
  %v2197 = vmax.f32 %v2069, 0.0
  %v2198 = vmax.f32 %v2070, 0.0
  %v2199 = vpack.c.bf16 %v2073, %v2071
  %v2200 = vpack.c.bf16 %v2074, %v2072
  %v2201 = vpack.c.bf16 %v2077, %v2075
  %v2202 = vpack.c.bf16 %v2078, %v2076
  %v2203 = vpack.c.bf16 %v2081, %v2079
  %v2204 = vpack.c.bf16 %v2082, %v2080
  %v2205 = vpack.c.bf16 %v2085, %v2083
  %v2206 = vpack.c.bf16 %v2086, %v2084
  %v2207 = vpack.c.bf16 %v2089, %v2087
  %v2208 = vpack.c.bf16 %v2090, %v2088
  %v2209 = vpack.c.bf16 %v2093, %v2091
  %v2210 = vpack.c.bf16 %v2094, %v2092
  %v2211 = vpack.c.bf16 %v2097, %v2095
  %v2212 = vpack.c.bf16 %v2098, %v2096
  %v2213 = vpack.c.bf16 %v2101, %v2099
  %v2214 = vpack.c.bf16 %v2102, %v2100
  %v2215 = vpack.c.bf16 %v2105, %v2103
  %v2216 = vpack.c.bf16 %v2106, %v2104
  %v2217 = vpack.c.bf16 %v2109, %v2107
  %v2218 = vpack.c.bf16 %v2110, %v2108
  %v2219 = vpack.c.bf16 %v2113, %v2111
  %v2220 = vpack.c.bf16 %v2114, %v2112
  %v2221 = vpack.c.bf16 %v2117, %v2115
  %v2222 = vpack.c.bf16 %v2118, %v2116
  %v2223 = vpack.c.bf16 %v2121, %v2119
  %v2224 = vpack.c.bf16 %v2122, %v2120
  %v2225 = vpack.c.bf16 %v2125, %v2123
  %v2226 = vpack.c.bf16 %v2126, %v2124
  %v2227 = vpack.c.bf16 %v2129, %v2127
  %v2228 = vpack.c.bf16 %v2130, %v2128
  %v2229 = vpack.c.bf16 %v2133, %v2131
  %v2230 = vpack.c.bf16 %v2134, %v2132
  %v2231 = vpack.c.bf16 %v2137, %v2135
  %v2232 = vpack.c.bf16 %v2138, %v2136
  %v2233 = vpack.c.bf16 %v2141, %v2139
  %v2234 = vpack.c.bf16 %v2142, %v2140
  %v2235 = vpack.c.bf16 %v2145, %v2143
  %v2236 = vpack.c.bf16 %v2146, %v2144
  %v2237 = vpack.c.bf16 %v2149, %v2147
  %v2238 = vpack.c.bf16 %v2150, %v2148
  %v2239 = vpack.c.bf16 %v2153, %v2151
  %v2240 = vpack.c.bf16 %v2154, %v2152
  %v2241 = vpack.c.bf16 %v2157, %v2155
  %v2242 = vpack.c.bf16 %v2158, %v2156
  %v2243 = vpack.c.bf16 %v2161, %v2159
  %v2244 = vpack.c.bf16 %v2162, %v2160
  %v2245 = vpack.c.bf16 %v2165, %v2163
  %v2246 = vpack.c.bf16 %v2166, %v2164
  %v2247 = vpack.c.bf16 %v2169, %v2167
  %v2248 = vpack.c.bf16 %v2170, %v2168
  %v2249 = vpack.c.bf16 %v2173, %v2171
  %v2250 = vpack.c.bf16 %v2174, %v2172
  %v2251 = vpack.c.bf16 %v2177, %v2175
  %v2252 = vpack.c.bf16 %v2178, %v2176
  %v2253 = vpack.c.bf16 %v2181, %v2179
  %v2254 = vpack.c.bf16 %v2182, %v2180
  %v2255 = vpack.c.bf16 %v2185, %v2183
  %v2256 = vpack.c.bf16 %v2186, %v2184
  %v2257 = vpack.c.bf16 %v2189, %v2187
  %v2258 = vpack.c.bf16 %v2190, %v2188
  %v2259 = vpack.c.bf16 %v2193, %v2191
  %v2260 = vpack.c.bf16 %v2194, %v2192
  %v2261 = vpack.c.bf16 %v2197, %v2195
  %v2262 = vpack.c.bf16 %v2198, %v2196
  %v2263 = vld [vmem:[%s8] sm:$0xff]
  %v2264 = vld [vmem:[%s8 + $0x8] sm:$0xff]
  %v2265 = vld [vmem:[%s8 + $0x10] sm:$0xff]
  %v2266 = vld [vmem:[%s8 + $0x18] sm:$0xff]
  %v2267 = vld [vmem:[%s8 + $0x20] sm:$0xff]
  %v2268 = vld [vmem:[%s8 + $0x28] sm:$0xff]
  %v2269 = vld [vmem:[%s8 + $0x30] sm:$0xff]
  %v2270 = vld [vmem:[%s8 + $0x38] sm:$0xff]
  %v2271 = vld [vmem:[%s8 + $0x40] sm:$0xff]
  %v2272 = vld [vmem:[%s8 + $0x48] sm:$0xff]
  %v2273 = vld [vmem:[%s8 + $0x50] sm:$0xff]
  %v2274 = vld [vmem:[%s8 + $0x58] sm:$0xff]
  %v2275 = vld [vmem:[%s8 + $0x60] sm:$0xff]
  %v2276 = vld [vmem:[%s8 + $0x68] sm:$0xff]
  %v2277 = vld [vmem:[%s8 + $0x70] sm:$0xff]
  %v2278 = vld [vmem:[%s8 + $0x78] sm:$0xff]
  %v2279 = vld [vmem:[%s8 + $0x80] sm:$0xff]
  %v2280 = vld [vmem:[%s8 + $0x88] sm:$0xff]
  %v2299 = vunpack.c.l.b16 %v2263
  %v2300 = vunpack.c.h.b16 %v2263
  %v2301 = vunpack.c.l.b16 %v2264
  %v2302 = vunpack.c.h.b16 %v2264
  %v2303 = vunpack.c.l.b16 %v2265
  %v2304 = vunpack.c.h.b16 %v2265
  %v2305 = vunpack.c.l.b16 %v2266
  %v2306 = vunpack.c.h.b16 %v2266
  %v2307 = vunpack.c.l.b16 %v2267
  %v2308 = vunpack.c.h.b16 %v2267
  %v2309 = vunpack.c.l.b16 %v2268
  %v2310 = vunpack.c.h.b16 %v2268
  %v2311 = vunpack.c.l.b16 %v2269
  %v2312 = vunpack.c.h.b16 %v2269
  %v2313 = vunpack.c.l.b16 %v2270
  %v2314 = vunpack.c.h.b16 %v2270
  %v2315 = vunpack.c.l.b16 %v2271
  %v2316 = vunpack.c.h.b16 %v2271
  %v2317 = vunpack.c.l.b16 %v2272
  %v2318 = vunpack.c.h.b16 %v2272
  %v2319 = vunpack.c.l.b16 %v2273
  %v2320 = vunpack.c.h.b16 %v2273
  %v2321 = vunpack.c.l.b16 %v2274
  %v2322 = vunpack.c.h.b16 %v2274
  %v2323 = vunpack.c.l.b16 %v2275
  %v2324 = vunpack.c.h.b16 %v2275
  %v2325 = vunpack.c.l.b16 %v2276
  %v2326 = vunpack.c.h.b16 %v2276
  %v2327 = vunpack.c.l.b16 %v2277
  %v2328 = vunpack.c.h.b16 %v2277
  %v2329 = vunpack.c.l.b16 %v2278
  %v2330 = vunpack.c.h.b16 %v2278
  %v2331 = vunpack.c.l.b16 %v2279
  %v2332 = vunpack.c.h.b16 %v2279
  %v2333 = vunpack.c.l.b16 %v2280
  %v2334 = vunpack.c.h.b16 %v2280
  %v2335 = vpack.c.b16 %v2301, %v2299
  %v2336 = vpack.c.b16 %v2302, %v2300
  %v2337 = vpack.c.b16 %v2305, %v2303
  %v2338 = vpack.c.b16 %v2306, %v2304
  %v2339 = vpack.c.b16 %v2309, %v2307
  %v2340 = vpack.c.b16 %v2310, %v2308
  %v2341 = vpack.c.b16 %v2313, %v2311
  %v2342 = vpack.c.b16 %v2314, %v2312
  %v2343 = vpack.c.b16 %v2317, %v2315
  %v2344 = vpack.c.b16 %v2318, %v2316
  %v2345 = vpack.c.b16 %v2321, %v2319
  %v2346 = vpack.c.b16 %v2322, %v2320
  %v2347 = vpack.c.b16 %v2325, %v2323
  %v2348 = vpack.c.b16 %v2326, %v2324
  %v2349 = vpack.c.b16 %v2329, %v2327
  %v2350 = vpack.c.b16 %v2330, %v2328
  %v2351 = vpack.c.b16 %v2333, %v2331
  %v2352 = vpack.c.b16 %v2334, %v2332
  %v2372 = vsel %vm312, %v2200, 0
  %v2375 = vsel %vm312, %v2202, 0
  %v2378 = vsel %vm312, %v2204, 0
  %v2381 = vsel %vm312, %v2206, 0
  %v2384 = vsel %vm312, %v2208, 0
  %v2387 = vsel %vm312, %v2210, 0
  %v2390 = vsel %vm312, %v2212, 0
  %v2393 = vsel %vm312, %v2214, 0
  %v2396 = vsel %vm312, %v2216, 0
  %v2399 = vsel %vm312, %v2218, 0
  %v2402 = vsel %vm312, %v2220, 0
  %v2405 = vsel %vm312, %v2222, 0
  %v2408 = vsel %vm312, %v2224, 0
  %v2411 = vsel %vm312, %v2226, 0
  %v2414 = vsel %vm312, %v2228, 0
  %v2417 = vsel %vm312, %v2230, 0
  %v2420 = vsel %vm312, %v2232, 0
  %v2423 = vsel %vm312, %v2234, 0
  %v2426 = vsel %vm312, %v2236, 0
  %v2429 = vsel %vm312, %v2238, 0
  %v2432 = vsel %vm312, %v2240, 0
  %v2435 = vsel %vm312, %v2242, 0
  %v2438 = vsel %vm312, %v2244, 0
  %v2441 = vsel %vm312, %v2246, 0
  %v2444 = vsel %vm312, %v2248, 0
  %v2447 = vsel %vm312, %v2250, 0
  %v2450 = vsel %vm312, %v2252, 0
  %v2453 = vsel %vm312, %v2254, 0
  %v2456 = vsel %vm312, %v2256, 0
  %v2459 = vsel %vm312, %v2258, 0
  %v2462 = vsel %vm312, %v2260, 0
  %v2465 = vsel %vm312, %v2262, 0
  %2467 = vmatprep.subr.bf16.mxu0 %v2350
  %2468 = vmatpush1.bf16.msra.mxu0 %v2349
  %2469 = vmatprep.subr.bf16.mxu0 %v2348
  %2470 = vmatpush1.bf16.msra.mxu0 %v2347
  %2471 = vmatprep.subr.bf16.mxu0 %v2346
  %2472 = vmatpush1.bf16.msra.mxu0 %v2345
  %2473 = vmatprep.subr.bf16.mxu0 %v2344
  %2474 = vmatpush1.bf16.msra.mxu0 %v2343
  %2475 = vmatprep.subr.bf16.mxu0 %v2342
  %2476 = vmatpush1.bf16.msra.mxu0 %v2341
  %2477 = vmatprep.subr.bf16.mxu0 %v2340
  %2478 = vmatpush1.bf16.msra.mxu0 %v2339
  %2479 = vmatprep.subr.bf16.mxu0 %v2338
  %2480 = vmatpush1.bf16.msra.mxu0 %v2337
  %2481 = vmatprep.subr.bf16.mxu0 %v2336
  %2482 = vmatpush1.bf16.msra.mxu0 %v2335
  %2483 = vmatprep.subr.bf16.mxu0 0
  %2484 = vmatpush2.bf16.msra.mxu0 0
  %2485 = vmatprep.subr.bf16.mxu0 0
  %2486 = vmatpush2.bf16.msra.mxu0 0
  %2487 = vmatprep.subr.bf16.mxu0 0
  %2488 = vmatpush2.bf16.msra.mxu0 0
  %2489 = vmatprep.subr.bf16.mxu0 0
  %2490 = vmatpush2.bf16.msra.mxu0 0
  %2491 = vmatprep.subr.bf16.mxu0 0
  %2492 = vmatpush2.bf16.msra.mxu0 0
  %2493 = vmatprep.subr.bf16.mxu0 0
  %2494 = vmatpush2.bf16.msra.mxu0 0
  %2495 = vmatprep.subr.bf16.mxu0 0
  %2496 = vmatpush2.bf16.msra.mxu0 0
  %2497 = vmatprep.subr.bf16.mxu0 %v2352
  %2498 = vmatpush2.bf16.msra.mxu0 %v2351
  %2499 = vmatprep.mubr.bf16.mxu0 %v2372
  %2500 = vmatmul.mubr.bf16.gmra.mxu0 %v2199
  %v2501 = vpop.f32.mrf.mxu0
  %v2502 = vadd.f32 0.0, %v2501
  %v2503 = vpop.f32.mrf.mxu0
  %v2504 = vadd.f32 0.0, %v2503
  %v2505 = vpop.f32.mrf.mxu0
  %v2506 = vadd.f32 0.0, %v2505
  %v2507 = vpop.f32.mrf.mxu0
  %v2508 = vadd.f32 0.0, %v2507
  %2509 = vmatprep.mubr.bf16.mxu0 %v2375
  %2510 = vmatmul.mubr.bf16.gmra.mxu0 %v2201
  %v2511 = vpop.f32.mrf.mxu0
  %v2512 = vadd.f32 0.0, %v2511
  %v2513 = vpop.f32.mrf.mxu0
  %v2514 = vadd.f32 0.0, %v2513
  %v2515 = vpop.f32.mrf.mxu0
  %v2516 = vadd.f32 0.0, %v2515
  %v2517 = vpop.f32.mrf.mxu0
  %v2518 = vadd.f32 0.0, %v2517
  %2519 = vmatprep.mubr.bf16.mxu0 %v2378
  %2520 = vmatmul.mubr.bf16.gmra.mxu0 %v2203
  %v2521 = vpop.f32.mrf.mxu0
  %v2522 = vadd.f32 0.0, %v2521
  %v2523 = vpop.f32.mrf.mxu0
  %v2524 = vadd.f32 0.0, %v2523
  %v2525 = vpop.f32.mrf.mxu0
  %v2526 = vadd.f32 0.0, %v2525
  %v2527 = vpop.f32.mrf.mxu0
  %v2528 = vadd.f32 0.0, %v2527
  %2529 = vmatprep.mubr.bf16.mxu0 %v2381
  %2530 = vmatmul.mubr.bf16.gmra.mxu0 %v2205
  %v2531 = vpop.f32.mrf.mxu0
  %v2532 = vadd.f32 0.0, %v2531
  %v2533 = vpop.f32.mrf.mxu0
  %v2534 = vadd.f32 0.0, %v2533
  %v2535 = vpop.f32.mrf.mxu0
  %v2536 = vadd.f32 0.0, %v2535
  %v2537 = vpop.f32.mrf.mxu0
  %v2538 = vadd.f32 0.0, %v2537
  %2539 = vmatprep.mubr.bf16.mxu0 %v2384
  %2540 = vmatmul.mubr.bf16.gmra.mxu0 %v2207
  %v2541 = vpop.f32.mrf.mxu0
  %v2542 = vadd.f32 0.0, %v2541
  %v2543 = vpop.f32.mrf.mxu0
  %v2544 = vadd.f32 0.0, %v2543
  %v2545 = vpop.f32.mrf.mxu0
  %v2546 = vadd.f32 0.0, %v2545
  %v2547 = vpop.f32.mrf.mxu0
  %v2548 = vadd.f32 0.0, %v2547
  %2549 = vmatprep.mubr.bf16.mxu0 %v2387
  %2550 = vmatmul.mubr.bf16.gmra.mxu0 %v2209
  %v2551 = vpop.f32.mrf.mxu0
  %v2552 = vadd.f32 0.0, %v2551
  %v2553 = vpop.f32.mrf.mxu0
  %v2554 = vadd.f32 0.0, %v2553
  %v2555 = vpop.f32.mrf.mxu0
  %v2556 = vadd.f32 0.0, %v2555
  %v2557 = vpop.f32.mrf.mxu0
  %v2558 = vadd.f32 0.0, %v2557
  %2559 = vmatprep.mubr.bf16.mxu0 %v2390
  %2560 = vmatmul.mubr.bf16.gmra.mxu0 %v2211
  %v2561 = vpop.f32.mrf.mxu0
  %v2562 = vadd.f32 0.0, %v2561
  %v2563 = vpop.f32.mrf.mxu0
  %v2564 = vadd.f32 0.0, %v2563
  %v2565 = vpop.f32.mrf.mxu0
  %v2566 = vadd.f32 0.0, %v2565
  %v2567 = vpop.f32.mrf.mxu0
  %v2568 = vadd.f32 0.0, %v2567
  %2569 = vmatprep.mubr.bf16.mxu0 %v2393
  %2570 = vmatmul.mubr.bf16.gmra.mxu0 %v2213
  %v2571 = vpop.f32.mrf.mxu0
  %v2572 = vadd.f32 0.0, %v2571
  %v2573 = vpop.f32.mrf.mxu0
  %v2574 = vadd.f32 0.0, %v2573
  %v2575 = vpop.f32.mrf.mxu0
  %v2576 = vadd.f32 0.0, %v2575
  %v2577 = vpop.f32.mrf.mxu0
  %v2578 = vadd.f32 0.0, %v2577
  %2579 = vmatprep.mubr.bf16.mxu0 %v2396
  %2580 = vmatmul.mubr.bf16.gmra.mxu0 %v2215
  %v2581 = vpop.f32.mrf.mxu0
  %v2582 = vadd.f32 0.0, %v2581
  %v2583 = vpop.f32.mrf.mxu0
  %v2584 = vadd.f32 0.0, %v2583
  %v2585 = vpop.f32.mrf.mxu0
  %v2586 = vadd.f32 0.0, %v2585
  %v2587 = vpop.f32.mrf.mxu0
  %v2588 = vadd.f32 0.0, %v2587
  %2589 = vmatprep.mubr.bf16.mxu0 %v2399
  %2590 = vmatmul.mubr.bf16.gmra.mxu0 %v2217
  %v2591 = vpop.f32.mrf.mxu0
  %v2592 = vadd.f32 0.0, %v2591
  %v2593 = vpop.f32.mrf.mxu0
  %v2594 = vadd.f32 0.0, %v2593
  %v2595 = vpop.f32.mrf.mxu0
  %v2596 = vadd.f32 0.0, %v2595
  %v2597 = vpop.f32.mrf.mxu0
  %v2598 = vadd.f32 0.0, %v2597
  %2599 = vmatprep.mubr.bf16.mxu0 %v2402
  %2600 = vmatmul.mubr.bf16.gmra.mxu0 %v2219
  %v2601 = vpop.f32.mrf.mxu0
  %v2602 = vadd.f32 0.0, %v2601
  %v2603 = vpop.f32.mrf.mxu0
  %v2604 = vadd.f32 0.0, %v2603
  %v2605 = vpop.f32.mrf.mxu0
  %v2606 = vadd.f32 0.0, %v2605
  %v2607 = vpop.f32.mrf.mxu0
  %v2608 = vadd.f32 0.0, %v2607
  %2609 = vmatprep.mubr.bf16.mxu0 %v2405
  %2610 = vmatmul.mubr.bf16.gmra.mxu0 %v2221
  %v2611 = vpop.f32.mrf.mxu0
  %v2612 = vadd.f32 0.0, %v2611
  %v2613 = vpop.f32.mrf.mxu0
  %v2614 = vadd.f32 0.0, %v2613
  %v2615 = vpop.f32.mrf.mxu0
  %v2616 = vadd.f32 0.0, %v2615
  %v2617 = vpop.f32.mrf.mxu0
  %v2618 = vadd.f32 0.0, %v2617
  %2619 = vmatprep.mubr.bf16.mxu0 %v2408
  %2620 = vmatmul.mubr.bf16.gmra.mxu0 %v2223
  %v2621 = vpop.f32.mrf.mxu0
  %v2622 = vadd.f32 0.0, %v2621
  %v2623 = vpop.f32.mrf.mxu0
  %v2624 = vadd.f32 0.0, %v2623
  %v2625 = vpop.f32.mrf.mxu0
  %v2626 = vadd.f32 0.0, %v2625
  %v2627 = vpop.f32.mrf.mxu0
  %v2628 = vadd.f32 0.0, %v2627
  %2629 = vmatprep.mubr.bf16.mxu0 %v2411
  %2630 = vmatmul.mubr.bf16.gmra.mxu0 %v2225
  %v2631 = vpop.f32.mrf.mxu0
  %v2632 = vadd.f32 0.0, %v2631
  %v2633 = vpop.f32.mrf.mxu0
  %v2634 = vadd.f32 0.0, %v2633
  %v2635 = vpop.f32.mrf.mxu0
  %v2636 = vadd.f32 0.0, %v2635
  %v2637 = vpop.f32.mrf.mxu0
  %v2638 = vadd.f32 0.0, %v2637
  %2639 = vmatprep.mubr.bf16.mxu0 %v2414
  %2640 = vmatmul.mubr.bf16.gmra.mxu0 %v2227
  %v2641 = vpop.f32.mrf.mxu0
  %v2642 = vadd.f32 0.0, %v2641
  %v2643 = vpop.f32.mrf.mxu0
  %v2644 = vadd.f32 0.0, %v2643
  %v2645 = vpop.f32.mrf.mxu0
  %v2646 = vadd.f32 0.0, %v2645
  %v2647 = vpop.f32.mrf.mxu0
  %v2648 = vadd.f32 0.0, %v2647
  %2649 = vmatprep.mubr.bf16.mxu0 %v2417
  %2650 = vmatmul.mubr.bf16.gmra.mxu0 %v2229
  %v2651 = vpop.f32.mrf.mxu0
  %v2652 = vadd.f32 0.0, %v2651
  %v2653 = vpop.f32.mrf.mxu0
  %v2654 = vadd.f32 0.0, %v2653
  %v2655 = vpop.f32.mrf.mxu0
  %v2656 = vadd.f32 0.0, %v2655
  %v2657 = vpop.f32.mrf.mxu0
  %v2658 = vadd.f32 0.0, %v2657
  %2659 = vmatprep.mubr.bf16.mxu0 %v2420
  %2660 = vmatmul.mubr.bf16.gmra.mxu0 %v2231
  %v2661 = vpop.f32.mrf.mxu0
  %v2662 = vadd.f32 0.0, %v2661
  %v2663 = vpop.f32.mrf.mxu0
  %v2664 = vadd.f32 0.0, %v2663
  %v2665 = vpop.f32.mrf.mxu0
  %v2666 = vadd.f32 0.0, %v2665
  %v2667 = vpop.f32.mrf.mxu0
  %v2668 = vadd.f32 0.0, %v2667
  %2669 = vmatprep.mubr.bf16.mxu0 %v2423
  %2670 = vmatmul.mubr.bf16.gmra.mxu0 %v2233
  %v2671 = vpop.f32.mrf.mxu0
  %v2672 = vadd.f32 0.0, %v2671
  %v2673 = vpop.f32.mrf.mxu0
  %v2674 = vadd.f32 0.0, %v2673
  %v2675 = vpop.f32.mrf.mxu0
  %v2676 = vadd.f32 0.0, %v2675
  %v2677 = vpop.f32.mrf.mxu0
  %v2678 = vadd.f32 0.0, %v2677
  %2679 = vmatprep.mubr.bf16.mxu0 %v2426
  %2680 = vmatmul.mubr.bf16.gmra.mxu0 %v2235
  %v2681 = vpop.f32.mrf.mxu0
  %v2682 = vadd.f32 0.0, %v2681
  %v2683 = vpop.f32.mrf.mxu0
  %v2684 = vadd.f32 0.0, %v2683
  %v2685 = vpop.f32.mrf.mxu0
  %v2686 = vadd.f32 0.0, %v2685
  %v2687 = vpop.f32.mrf.mxu0
  %v2688 = vadd.f32 0.0, %v2687
  %2689 = vmatprep.mubr.bf16.mxu0 %v2429
  %2690 = vmatmul.mubr.bf16.gmra.mxu0 %v2237
  %v2691 = vpop.f32.mrf.mxu0
  %v2692 = vadd.f32 0.0, %v2691
  %v2693 = vpop.f32.mrf.mxu0
  %v2694 = vadd.f32 0.0, %v2693
  %v2695 = vpop.f32.mrf.mxu0
  %v2696 = vadd.f32 0.0, %v2695
  %v2697 = vpop.f32.mrf.mxu0
  %v2698 = vadd.f32 0.0, %v2697
  %2699 = vmatprep.mubr.bf16.mxu0 %v2432
  %2700 = vmatmul.mubr.bf16.gmra.mxu0 %v2239
  %v2701 = vpop.f32.mrf.mxu0
  %v2702 = vadd.f32 0.0, %v2701
  %v2703 = vpop.f32.mrf.mxu0
  %v2704 = vadd.f32 0.0, %v2703
  %v2705 = vpop.f32.mrf.mxu0
  %v2706 = vadd.f32 0.0, %v2705
  %v2707 = vpop.f32.mrf.mxu0
  %v2708 = vadd.f32 0.0, %v2707
  %2709 = vmatprep.mubr.bf16.mxu0 %v2435
  %2710 = vmatmul.mubr.bf16.gmra.mxu0 %v2241
  %v2711 = vpop.f32.mrf.mxu0
  %v2712 = vadd.f32 0.0, %v2711
  %v2713 = vpop.f32.mrf.mxu0
  %v2714 = vadd.f32 0.0, %v2713
  %v2715 = vpop.f32.mrf.mxu0
  %v2716 = vadd.f32 0.0, %v2715
  %v2717 = vpop.f32.mrf.mxu0
  %v2718 = vadd.f32 0.0, %v2717
  %2719 = vmatprep.mubr.bf16.mxu0 %v2438
  %2720 = vmatmul.mubr.bf16.gmra.mxu0 %v2243
  %v2721 = vpop.f32.mrf.mxu0
  %v2722 = vadd.f32 0.0, %v2721
  %v2723 = vpop.f32.mrf.mxu0
  %v2724 = vadd.f32 0.0, %v2723
  %v2725 = vpop.f32.mrf.mxu0
  %v2726 = vadd.f32 0.0, %v2725
  %v2727 = vpop.f32.mrf.mxu0
  %v2728 = vadd.f32 0.0, %v2727
  %2729 = vmatprep.mubr.bf16.mxu0 %v2441
  %2730 = vmatmul.mubr.bf16.gmra.mxu0 %v2245
  %v2731 = vpop.f32.mrf.mxu0
  %v2732 = vadd.f32 0.0, %v2731
  %v2733 = vpop.f32.mrf.mxu0
  %v2734 = vadd.f32 0.0, %v2733
  %v2735 = vpop.f32.mrf.mxu0
  %v2736 = vadd.f32 0.0, %v2735
  %v2737 = vpop.f32.mrf.mxu0
  %v2738 = vadd.f32 0.0, %v2737
  %2739 = vmatprep.mubr.bf16.mxu0 %v2444
  %2740 = vmatmul.mubr.bf16.gmra.mxu0 %v2247
  %v2741 = vpop.f32.mrf.mxu0
  %v2742 = vadd.f32 0.0, %v2741
  %v2743 = vpop.f32.mrf.mxu0
  %v2744 = vadd.f32 0.0, %v2743
  %v2745 = vpop.f32.mrf.mxu0
  %v2746 = vadd.f32 0.0, %v2745
  %v2747 = vpop.f32.mrf.mxu0
  %v2748 = vadd.f32 0.0, %v2747
  %2749 = vmatprep.mubr.bf16.mxu0 %v2447
  %2750 = vmatmul.mubr.bf16.gmra.mxu0 %v2249
  %v2751 = vpop.f32.mrf.mxu0
  %v2752 = vadd.f32 0.0, %v2751
  %v2753 = vpop.f32.mrf.mxu0
  %v2754 = vadd.f32 0.0, %v2753
  %v2755 = vpop.f32.mrf.mxu0
  %v2756 = vadd.f32 0.0, %v2755
  %v2757 = vpop.f32.mrf.mxu0
  %v2758 = vadd.f32 0.0, %v2757
  %2759 = vmatprep.mubr.bf16.mxu0 %v2450
  %2760 = vmatmul.mubr.bf16.gmra.mxu0 %v2251
  %v2761 = vpop.f32.mrf.mxu0
  %v2762 = vadd.f32 0.0, %v2761
  %v2763 = vpop.f32.mrf.mxu0
  %v2764 = vadd.f32 0.0, %v2763
  %v2765 = vpop.f32.mrf.mxu0
  %v2766 = vadd.f32 0.0, %v2765
  %v2767 = vpop.f32.mrf.mxu0
  %v2768 = vadd.f32 0.0, %v2767
  %2769 = vmatprep.mubr.bf16.mxu0 %v2453
  %2770 = vmatmul.mubr.bf16.gmra.mxu0 %v2253
  %v2771 = vpop.f32.mrf.mxu0
  %v2772 = vadd.f32 0.0, %v2771
  %v2773 = vpop.f32.mrf.mxu0
  %v2774 = vadd.f32 0.0, %v2773
  %v2775 = vpop.f32.mrf.mxu0
  %v2776 = vadd.f32 0.0, %v2775
  %v2777 = vpop.f32.mrf.mxu0
  %v2778 = vadd.f32 0.0, %v2777
  %2779 = vmatprep.mubr.bf16.mxu0 %v2456
  %2780 = vmatmul.mubr.bf16.gmra.mxu0 %v2255
  %v2781 = vpop.f32.mrf.mxu0
  %v2782 = vadd.f32 0.0, %v2781
  %v2783 = vpop.f32.mrf.mxu0
  %v2784 = vadd.f32 0.0, %v2783
  %v2785 = vpop.f32.mrf.mxu0
  %v2786 = vadd.f32 0.0, %v2785
  %v2787 = vpop.f32.mrf.mxu0
  %v2788 = vadd.f32 0.0, %v2787
  %2789 = vmatprep.mubr.bf16.mxu0 %v2459
  %2790 = vmatmul.mubr.bf16.gmra.mxu0 %v2257
  %v2791 = vpop.f32.mrf.mxu0
  %v2792 = vadd.f32 0.0, %v2791
  %v2793 = vpop.f32.mrf.mxu0
  %v2794 = vadd.f32 0.0, %v2793
  %v2795 = vpop.f32.mrf.mxu0
  %v2796 = vadd.f32 0.0, %v2795
  %v2797 = vpop.f32.mrf.mxu0
  %v2798 = vadd.f32 0.0, %v2797
  %2799 = vmatprep.mubr.bf16.mxu0 %v2462
  %2800 = vmatmul.mubr.bf16.gmra.mxu0 %v2259
  %v2801 = vpop.f32.mrf.mxu0
  %v2802 = vadd.f32 0.0, %v2801
  %v2803 = vpop.f32.mrf.mxu0
  %v2804 = vadd.f32 0.0, %v2803
  %v2805 = vpop.f32.mrf.mxu0
  %v2806 = vadd.f32 0.0, %v2805
  %v2807 = vpop.f32.mrf.mxu0
  %v2808 = vadd.f32 0.0, %v2807
  %2809 = vmatprep.mubr.bf16.mxu0 %v2465
  %2810 = vmatmul.mubr.bf16.gmra.mxu0 %v2261
  %v2811 = vpop.f32.mrf.mxu0
  %v2812 = vadd.f32 0.0, %v2811
  %v2813 = vpop.f32.mrf.mxu0
  %v2814 = vadd.f32 0.0, %v2813
  %v2815 = vpop.f32.mrf.mxu0
  %v2816 = vadd.f32 0.0, %v2815
  %v2817 = vpop.f32.mrf.mxu0
  %v2818 = vadd.f32 0.0, %v2817
  %2819 = vdwg.mxu0
  %v2820 = vadd.f32 %v1042, %v2502
  %v2821 = vadd.f32 %v1043, %v2504
  %v2822 = vadd.f32 %v1044, %v2506
  %v2823 = vadd.f32 %v1045, %v2508
  %v2824 = vadd.f32 %v1046, %v2512
  %v2825 = vadd.f32 %v1047, %v2514
  %v2826 = vadd.f32 %v1048, %v2516
  %v2827 = vadd.f32 %v1049, %v2518
  %v2828 = vadd.f32 %v1050, %v2522
  %v2829 = vadd.f32 %v1051, %v2524
  %v2830 = vadd.f32 %v1052, %v2526
  %v2831 = vadd.f32 %v1053, %v2528
  %v2832 = vadd.f32 %v1054, %v2532
  %v2833 = vadd.f32 %v1055, %v2534
  %v2834 = vadd.f32 %v1056, %v2536
  %v2835 = vadd.f32 %v1057, %v2538
  %v2836 = vadd.f32 %v1058, %v2542
  %v2837 = vadd.f32 %v1059, %v2544
  %v2838 = vadd.f32 %v1060, %v2546
  %v2839 = vadd.f32 %v1061, %v2548
  %v2840 = vadd.f32 %v1062, %v2552
  %v2841 = vadd.f32 %v1063, %v2554
  %v2842 = vadd.f32 %v1064, %v2556
  %v2843 = vadd.f32 %v1065, %v2558
  %v2844 = vadd.f32 %v1066, %v2562
  %v2845 = vadd.f32 %v1067, %v2564
  %v2846 = vadd.f32 %v1068, %v2566
  %v2847 = vadd.f32 %v1069, %v2568
  %v2848 = vadd.f32 %v1070, %v2572
  %v2849 = vadd.f32 %v1071, %v2574
  %v2850 = vadd.f32 %v1072, %v2576
  %v2851 = vadd.f32 %v1073, %v2578
  %v2852 = vadd.f32 %v1074, %v2582
  %v2853 = vadd.f32 %v1075, %v2584
  %v2854 = vadd.f32 %v1076, %v2586
  %v2855 = vadd.f32 %v1077, %v2588
  %v2856 = vadd.f32 %v1078, %v2592
  %v2857 = vadd.f32 %v1079, %v2594
  %v2858 = vadd.f32 %v1080, %v2596
  %v2859 = vadd.f32 %v1081, %v2598
  %v2860 = vadd.f32 %v1082, %v2602
  %v2861 = vadd.f32 %v1083, %v2604
  %v2862 = vadd.f32 %v1084, %v2606
  %v2863 = vadd.f32 %v1085, %v2608
  %v2864 = vadd.f32 %v1086, %v2612
  %v2865 = vadd.f32 %v1087, %v2614
  %v2866 = vadd.f32 %v1088, %v2616
  %v2867 = vadd.f32 %v1089, %v2618
  %v2868 = vadd.f32 %v1090, %v2622
  %v2869 = vadd.f32 %v1091, %v2624
  %v2870 = vadd.f32 %v1092, %v2626
  %v2871 = vadd.f32 %v1093, %v2628
  %v2872 = vadd.f32 %v1094, %v2632
  %v2873 = vadd.f32 %v1095, %v2634
  %v2874 = vadd.f32 %v1096, %v2636
  %v2875 = vadd.f32 %v1097, %v2638
  %v2876 = vadd.f32 %v1098, %v2642
  %v2877 = vadd.f32 %v1099, %v2644
  %v2878 = vadd.f32 %v1100, %v2646
  %v2879 = vadd.f32 %v1101, %v2648
  %v2880 = vadd.f32 %v1102, %v2652
  %v2881 = vadd.f32 %v1103, %v2654
  %v2882 = vadd.f32 %v1104, %v2656
  %v2883 = vadd.f32 %v1105, %v2658
  %v2884 = vadd.f32 %v1106, %v2662
  %v2885 = vadd.f32 %v1107, %v2664
  %v2886 = vadd.f32 %v1108, %v2666
  %v2887 = vadd.f32 %v1109, %v2668
  %v2888 = vadd.f32 %v1110, %v2672
  %v2889 = vadd.f32 %v1111, %v2674
  %v2890 = vadd.f32 %v1112, %v2676
  %v2891 = vadd.f32 %v1113, %v2678
  %v2892 = vadd.f32 %v1114, %v2682
  %v2893 = vadd.f32 %v1115, %v2684
  %v2894 = vadd.f32 %v1116, %v2686
  %v2895 = vadd.f32 %v1117, %v2688
  %v2896 = vadd.f32 %v1118, %v2692
  %v2897 = vadd.f32 %v1119, %v2694
  %v2898 = vadd.f32 %v1120, %v2696
  %v2899 = vadd.f32 %v1121, %v2698
  %v2900 = vadd.f32 %v1122, %v2702
  %v2901 = vadd.f32 %v1123, %v2704
  %v2902 = vadd.f32 %v1124, %v2706
  %v2903 = vadd.f32 %v1125, %v2708
  %v2904 = vadd.f32 %v1126, %v2712
  %v2905 = vadd.f32 %v1127, %v2714
  %v2906 = vadd.f32 %v1128, %v2716
  %v2907 = vadd.f32 %v1129, %v2718
  %v2908 = vadd.f32 %v1130, %v2722
  %v2909 = vadd.f32 %v1131, %v2724
  %v2910 = vadd.f32 %v1132, %v2726
  %v2911 = vadd.f32 %v1133, %v2728
  %v2912 = vadd.f32 %v1134, %v2732
  %v2913 = vadd.f32 %v1135, %v2734
  %v2914 = vadd.f32 %v1136, %v2736
  %v2915 = vadd.f32 %v1137, %v2738
  %v2916 = vadd.f32 %v1138, %v2742
  %v2917 = vadd.f32 %v1139, %v2744
  %v2918 = vadd.f32 %v1140, %v2746
  %v2919 = vadd.f32 %v1141, %v2748
  %v2920 = vadd.f32 %v1142, %v2752
  %v2921 = vadd.f32 %v1143, %v2754
  %v2922 = vadd.f32 %v1144, %v2756
  %v2923 = vadd.f32 %v1145, %v2758
  %v2924 = vadd.f32 %v1146, %v2762
  %v2925 = vadd.f32 %v1147, %v2764
  %v2926 = vadd.f32 %v1148, %v2766
  %v2927 = vadd.f32 %v1149, %v2768
  %v2928 = vadd.f32 %v1150, %v2772
  %v2929 = vadd.f32 %v1151, %v2774
  %v2930 = vadd.f32 %v1152, %v2776
  %v2931 = vadd.f32 %v1153, %v2778
  %v2932 = vadd.f32 %v1154, %v2782
  %v2933 = vadd.f32 %v1155, %v2784
  %v2934 = vadd.f32 %v1156, %v2786
  %v2935 = vadd.f32 %v1157, %v2788
  %v2936 = vadd.f32 %v1158, %v2792
  %v2937 = vadd.f32 %v1159, %v2794
  %v2938 = vadd.f32 %v1160, %v2796
  %v2939 = vadd.f32 %v1161, %v2798
  %v2940 = vadd.f32 %v1162, %v2802
  %v2941 = vadd.f32 %v1163, %v2804
  %v2942 = vadd.f32 %v1164, %v2806
  %v2943 = vadd.f32 %v1165, %v2808
  %v2944 = vadd.f32 %v1166, %v2812
  %v2945 = vadd.f32 %v1167, %v2814
  %v2946 = vadd.f32 %v1168, %v2816
  %v2947 = vadd.f32 %v1169, %v2818
  %v2948 = vld [vmem:[%s9] sm:$0x3]
  %v2950 = vlaneseq
  %v2951 = vshrl.u32 %v2950, 7
  %v2952 = vsub.s32 0, %v2951
  %v2953 = vrot.slane %v2948, %v2952
  %v2954 = vlaneseq
  %v2955 = vshrl.u32 %v2954, 7
  %v2956 = vsub.s32 1, %v2955
  %v2957 = vrot.slane %v2948, %v2956
  %v2960 = vmul.f32 %v2820, %v2953
  %v2961 = vmul.f32 %v2821, %v2957
  %v2962 = vmul.f32 %v2822, %v2953
  %v2963 = vmul.f32 %v2823, %v2957
  %v2964 = vmul.f32 %v2824, %v2953
  %v2965 = vmul.f32 %v2825, %v2957
  %v2966 = vmul.f32 %v2826, %v2953
  %v2967 = vmul.f32 %v2827, %v2957
  %v2968 = vmul.f32 %v2828, %v2953
  %v2969 = vmul.f32 %v2829, %v2957
  %v2970 = vmul.f32 %v2830, %v2953
  %v2971 = vmul.f32 %v2831, %v2957
  %v2972 = vmul.f32 %v2832, %v2953
  %v2973 = vmul.f32 %v2833, %v2957
  %v2974 = vmul.f32 %v2834, %v2953
  %v2975 = vmul.f32 %v2835, %v2957
  %v2976 = vmul.f32 %v2836, %v2953
  %v2977 = vmul.f32 %v2837, %v2957
  %v2978 = vmul.f32 %v2838, %v2953
  %v2979 = vmul.f32 %v2839, %v2957
  %v2980 = vmul.f32 %v2840, %v2953
  %v2981 = vmul.f32 %v2841, %v2957
  %v2982 = vmul.f32 %v2842, %v2953
  %v2983 = vmul.f32 %v2843, %v2957
  %v2984 = vmul.f32 %v2844, %v2953
  %v2985 = vmul.f32 %v2845, %v2957
  %v2986 = vmul.f32 %v2846, %v2953
  %v2987 = vmul.f32 %v2847, %v2957
  %v2988 = vmul.f32 %v2848, %v2953
  %v2989 = vmul.f32 %v2849, %v2957
  %v2990 = vmul.f32 %v2850, %v2953
  %v2991 = vmul.f32 %v2851, %v2957
  %v2992 = vmul.f32 %v2852, %v2953
  %v2993 = vmul.f32 %v2853, %v2957
  %v2994 = vmul.f32 %v2854, %v2953
  %v2995 = vmul.f32 %v2855, %v2957
  %v2996 = vmul.f32 %v2856, %v2953
  %v2997 = vmul.f32 %v2857, %v2957
  %v2998 = vmul.f32 %v2858, %v2953
  %v2999 = vmul.f32 %v2859, %v2957
  %v3000 = vmul.f32 %v2860, %v2953
  %v3001 = vmul.f32 %v2861, %v2957
  %v3002 = vmul.f32 %v2862, %v2953
  %v3003 = vmul.f32 %v2863, %v2957
  %v3004 = vmul.f32 %v2864, %v2953
  %v3005 = vmul.f32 %v2865, %v2957
  %v3006 = vmul.f32 %v2866, %v2953
  %v3007 = vmul.f32 %v2867, %v2957
  %v3008 = vmul.f32 %v2868, %v2953
  %v3009 = vmul.f32 %v2869, %v2957
  %v3010 = vmul.f32 %v2870, %v2953
  %v3011 = vmul.f32 %v2871, %v2957
  %v3012 = vmul.f32 %v2872, %v2953
  %v3013 = vmul.f32 %v2873, %v2957
  %v3014 = vmul.f32 %v2874, %v2953
  %v3015 = vmul.f32 %v2875, %v2957
  %v3016 = vmul.f32 %v2876, %v2953
  %v3017 = vmul.f32 %v2877, %v2957
  %v3018 = vmul.f32 %v2878, %v2953
  %v3019 = vmul.f32 %v2879, %v2957
  %v3020 = vmul.f32 %v2880, %v2953
  %v3021 = vmul.f32 %v2881, %v2957
  %v3022 = vmul.f32 %v2882, %v2953
  %v3023 = vmul.f32 %v2883, %v2957
  %v3024 = vmul.f32 %v2884, %v2953
  %v3025 = vmul.f32 %v2885, %v2957
  %v3026 = vmul.f32 %v2886, %v2953
  %v3027 = vmul.f32 %v2887, %v2957
  %v3028 = vmul.f32 %v2888, %v2953
  %v3029 = vmul.f32 %v2889, %v2957
  %v3030 = vmul.f32 %v2890, %v2953
  %v3031 = vmul.f32 %v2891, %v2957
  %v3032 = vmul.f32 %v2892, %v2953
  %v3033 = vmul.f32 %v2893, %v2957
  %v3034 = vmul.f32 %v2894, %v2953
  %v3035 = vmul.f32 %v2895, %v2957
  %v3036 = vmul.f32 %v2896, %v2953
  %v3037 = vmul.f32 %v2897, %v2957
  %v3038 = vmul.f32 %v2898, %v2953
  %v3039 = vmul.f32 %v2899, %v2957
  %v3040 = vmul.f32 %v2900, %v2953
  %v3041 = vmul.f32 %v2901, %v2957
  %v3042 = vmul.f32 %v2902, %v2953
  %v3043 = vmul.f32 %v2903, %v2957
  %v3044 = vmul.f32 %v2904, %v2953
  %v3045 = vmul.f32 %v2905, %v2957
  %v3046 = vmul.f32 %v2906, %v2953
  %v3047 = vmul.f32 %v2907, %v2957
  %v3048 = vmul.f32 %v2908, %v2953
  %v3049 = vmul.f32 %v2909, %v2957
  %v3050 = vmul.f32 %v2910, %v2953
  %v3051 = vmul.f32 %v2911, %v2957
  %v3052 = vmul.f32 %v2912, %v2953
  %v3053 = vmul.f32 %v2913, %v2957
  %v3054 = vmul.f32 %v2914, %v2953
  %v3055 = vmul.f32 %v2915, %v2957
  %v3056 = vmul.f32 %v2916, %v2953
  %v3057 = vmul.f32 %v2917, %v2957
  %v3058 = vmul.f32 %v2918, %v2953
  %v3059 = vmul.f32 %v2919, %v2957
  %v3060 = vmul.f32 %v2920, %v2953
  %v3061 = vmul.f32 %v2921, %v2957
  %v3062 = vmul.f32 %v2922, %v2953
  %v3063 = vmul.f32 %v2923, %v2957
  %v3064 = vmul.f32 %v2924, %v2953
  %v3065 = vmul.f32 %v2925, %v2957
  %v3066 = vmul.f32 %v2926, %v2953
  %v3067 = vmul.f32 %v2927, %v2957
  %v3068 = vmul.f32 %v2928, %v2953
  %v3069 = vmul.f32 %v2929, %v2957
  %v3070 = vmul.f32 %v2930, %v2953
  %v3071 = vmul.f32 %v2931, %v2957
  %v3072 = vmul.f32 %v2932, %v2953
  %v3073 = vmul.f32 %v2933, %v2957
  %v3074 = vmul.f32 %v2934, %v2953
  %v3075 = vmul.f32 %v2935, %v2957
  %v3076 = vmul.f32 %v2936, %v2953
  %v3077 = vmul.f32 %v2937, %v2957
  %v3078 = vmul.f32 %v2938, %v2953
  %v3079 = vmul.f32 %v2939, %v2957
  %v3080 = vmul.f32 %v2940, %v2953
  %v3081 = vmul.f32 %v2941, %v2957
  %v3082 = vmul.f32 %v2942, %v2953
  %v3083 = vmul.f32 %v2943, %v2957
  %v3084 = vmul.f32 %v2944, %v2953
  %v3085 = vmul.f32 %v2945, %v2957
  %v3086 = vmul.f32 %v2946, %v2953
  %v3087 = vmul.f32 %v2947, %v2957
  %v3088 = vld [vmem:[%s10] sm:$0x3]
  %v3090 = vlaneseq
  %v3091 = vshrl.u32 %v3090, 7
  %v3092 = vsub.s32 0, %v3091
  %v3093 = vrot.slane %v3088, %v3092
  %v3094 = vlaneseq
  %v3095 = vshrl.u32 %v3094, 7
  %v3096 = vsub.s32 1, %v3095
  %v3097 = vrot.slane %v3088, %v3096
  %v3100 = vadd.f32 %v2960, %v3093
  %v3101 = vadd.f32 %v2961, %v3097
  %v3102 = vadd.f32 %v2962, %v3093
  %v3103 = vadd.f32 %v2963, %v3097
  %v3104 = vadd.f32 %v2964, %v3093
  %v3105 = vadd.f32 %v2965, %v3097
  %v3106 = vadd.f32 %v2966, %v3093
  %v3107 = vadd.f32 %v2967, %v3097
  %v3108 = vadd.f32 %v2968, %v3093
  %v3109 = vadd.f32 %v2969, %v3097
  %v3110 = vadd.f32 %v2970, %v3093
  %v3111 = vadd.f32 %v2971, %v3097
  %v3112 = vadd.f32 %v2972, %v3093
  %v3113 = vadd.f32 %v2973, %v3097
  %v3114 = vadd.f32 %v2974, %v3093
  %v3115 = vadd.f32 %v2975, %v3097
  %v3116 = vadd.f32 %v2976, %v3093
  %v3117 = vadd.f32 %v2977, %v3097
  %v3118 = vadd.f32 %v2978, %v3093
  %v3119 = vadd.f32 %v2979, %v3097
  %v3120 = vadd.f32 %v2980, %v3093
  %v3121 = vadd.f32 %v2981, %v3097
  %v3122 = vadd.f32 %v2982, %v3093
  %v3123 = vadd.f32 %v2983, %v3097
  %v3124 = vadd.f32 %v2984, %v3093
  %v3125 = vadd.f32 %v2985, %v3097
  %v3126 = vadd.f32 %v2986, %v3093
  %v3127 = vadd.f32 %v2987, %v3097
  %v3128 = vadd.f32 %v2988, %v3093
  %v3129 = vadd.f32 %v2989, %v3097
  %v3130 = vadd.f32 %v2990, %v3093
  %v3131 = vadd.f32 %v2991, %v3097
  %v3132 = vadd.f32 %v2992, %v3093
  %v3133 = vadd.f32 %v2993, %v3097
  %v3134 = vadd.f32 %v2994, %v3093
  %v3135 = vadd.f32 %v2995, %v3097
  %v3136 = vadd.f32 %v2996, %v3093
  %v3137 = vadd.f32 %v2997, %v3097
  %v3138 = vadd.f32 %v2998, %v3093
  %v3139 = vadd.f32 %v2999, %v3097
  %v3140 = vadd.f32 %v3000, %v3093
  %v3141 = vadd.f32 %v3001, %v3097
  %v3142 = vadd.f32 %v3002, %v3093
  %v3143 = vadd.f32 %v3003, %v3097
  %v3144 = vadd.f32 %v3004, %v3093
  %v3145 = vadd.f32 %v3005, %v3097
  %v3146 = vadd.f32 %v3006, %v3093
  %v3147 = vadd.f32 %v3007, %v3097
  %v3148 = vadd.f32 %v3008, %v3093
  %v3149 = vadd.f32 %v3009, %v3097
  %v3150 = vadd.f32 %v3010, %v3093
  %v3151 = vadd.f32 %v3011, %v3097
  %v3152 = vadd.f32 %v3012, %v3093
  %v3153 = vadd.f32 %v3013, %v3097
  %v3154 = vadd.f32 %v3014, %v3093
  %v3155 = vadd.f32 %v3015, %v3097
  %v3156 = vadd.f32 %v3016, %v3093
  %v3157 = vadd.f32 %v3017, %v3097
  %v3158 = vadd.f32 %v3018, %v3093
  %v3159 = vadd.f32 %v3019, %v3097
  %v3160 = vadd.f32 %v3020, %v3093
  %v3161 = vadd.f32 %v3021, %v3097
  %v3162 = vadd.f32 %v3022, %v3093
  %v3163 = vadd.f32 %v3023, %v3097
  %v3164 = vadd.f32 %v3024, %v3093
  %v3165 = vadd.f32 %v3025, %v3097
  %v3166 = vadd.f32 %v3026, %v3093
  %v3167 = vadd.f32 %v3027, %v3097
  %v3168 = vadd.f32 %v3028, %v3093
  %v3169 = vadd.f32 %v3029, %v3097
  %v3170 = vadd.f32 %v3030, %v3093
  %v3171 = vadd.f32 %v3031, %v3097
  %v3172 = vadd.f32 %v3032, %v3093
  %v3173 = vadd.f32 %v3033, %v3097
  %v3174 = vadd.f32 %v3034, %v3093
  %v3175 = vadd.f32 %v3035, %v3097
  %v3176 = vadd.f32 %v3036, %v3093
  %v3177 = vadd.f32 %v3037, %v3097
  %v3178 = vadd.f32 %v3038, %v3093
  %v3179 = vadd.f32 %v3039, %v3097
  %v3180 = vadd.f32 %v3040, %v3093
  %v3181 = vadd.f32 %v3041, %v3097
  %v3182 = vadd.f32 %v3042, %v3093
  %v3183 = vadd.f32 %v3043, %v3097
  %v3184 = vadd.f32 %v3044, %v3093
  %v3185 = vadd.f32 %v3045, %v3097
  %v3186 = vadd.f32 %v3046, %v3093
  %v3187 = vadd.f32 %v3047, %v3097
  %v3188 = vadd.f32 %v3048, %v3093
  %v3189 = vadd.f32 %v3049, %v3097
  %v3190 = vadd.f32 %v3050, %v3093
  %v3191 = vadd.f32 %v3051, %v3097
  %v3192 = vadd.f32 %v3052, %v3093
  %v3193 = vadd.f32 %v3053, %v3097
  %v3194 = vadd.f32 %v3054, %v3093
  %v3195 = vadd.f32 %v3055, %v3097
  %v3196 = vadd.f32 %v3056, %v3093
  %v3197 = vadd.f32 %v3057, %v3097
  %v3198 = vadd.f32 %v3058, %v3093
  %v3199 = vadd.f32 %v3059, %v3097
  %v3200 = vadd.f32 %v3060, %v3093
  %v3201 = vadd.f32 %v3061, %v3097
  %v3202 = vadd.f32 %v3062, %v3093
  %v3203 = vadd.f32 %v3063, %v3097
  %v3204 = vadd.f32 %v3064, %v3093
  %v3205 = vadd.f32 %v3065, %v3097
  %v3206 = vadd.f32 %v3066, %v3093
  %v3207 = vadd.f32 %v3067, %v3097
  %v3208 = vadd.f32 %v3068, %v3093
  %v3209 = vadd.f32 %v3069, %v3097
  %v3210 = vadd.f32 %v3070, %v3093
  %v3211 = vadd.f32 %v3071, %v3097
  %v3212 = vadd.f32 %v3072, %v3093
  %v3213 = vadd.f32 %v3073, %v3097
  %v3214 = vadd.f32 %v3074, %v3093
  %v3215 = vadd.f32 %v3075, %v3097
  %v3216 = vadd.f32 %v3076, %v3093
  %v3217 = vadd.f32 %v3077, %v3097
  %v3218 = vadd.f32 %v3078, %v3093
  %v3219 = vadd.f32 %v3079, %v3097
  %v3220 = vadd.f32 %v3080, %v3093
  %v3221 = vadd.f32 %v3081, %v3097
  %v3222 = vadd.f32 %v3082, %v3093
  %v3223 = vadd.f32 %v3083, %v3097
  %v3224 = vadd.f32 %v3084, %v3093
  %v3225 = vadd.f32 %v3085, %v3097
  %v3226 = vadd.f32 %v3086, %v3093
  %v3227 = vadd.f32 %v3087, %v3097
  %v3228 = vmax.f32 %v3100, 0.0
  %v3229 = vmax.f32 %v3101, 0.0
  %v3230 = vmax.f32 %v3102, 0.0
  %v3231 = vmax.f32 %v3103, 0.0
  %v3232 = vmax.f32 %v3104, 0.0
  %v3233 = vmax.f32 %v3105, 0.0
  %v3234 = vmax.f32 %v3106, 0.0
  %v3235 = vmax.f32 %v3107, 0.0
  %v3236 = vmax.f32 %v3108, 0.0
  %v3237 = vmax.f32 %v3109, 0.0
  %v3238 = vmax.f32 %v3110, 0.0
  %v3239 = vmax.f32 %v3111, 0.0
  %v3240 = vmax.f32 %v3112, 0.0
  %v3241 = vmax.f32 %v3113, 0.0
  %v3242 = vmax.f32 %v3114, 0.0
  %v3243 = vmax.f32 %v3115, 0.0
  %v3244 = vmax.f32 %v3116, 0.0
  %v3245 = vmax.f32 %v3117, 0.0
  %v3246 = vmax.f32 %v3118, 0.0
  %v3247 = vmax.f32 %v3119, 0.0
  %v3248 = vmax.f32 %v3120, 0.0
  %v3249 = vmax.f32 %v3121, 0.0
  %v3250 = vmax.f32 %v3122, 0.0
  %v3251 = vmax.f32 %v3123, 0.0
  %v3252 = vmax.f32 %v3124, 0.0
  %v3253 = vmax.f32 %v3125, 0.0
  %v3254 = vmax.f32 %v3126, 0.0
  %v3255 = vmax.f32 %v3127, 0.0
  %v3256 = vmax.f32 %v3128, 0.0
  %v3257 = vmax.f32 %v3129, 0.0
  %v3258 = vmax.f32 %v3130, 0.0
  %v3259 = vmax.f32 %v3131, 0.0
  %v3260 = vmax.f32 %v3132, 0.0
  %v3261 = vmax.f32 %v3133, 0.0
  %v3262 = vmax.f32 %v3134, 0.0
  %v3263 = vmax.f32 %v3135, 0.0
  %v3264 = vmax.f32 %v3136, 0.0
  %v3265 = vmax.f32 %v3137, 0.0
  %v3266 = vmax.f32 %v3138, 0.0
  %v3267 = vmax.f32 %v3139, 0.0
  %v3268 = vmax.f32 %v3140, 0.0
  %v3269 = vmax.f32 %v3141, 0.0
  %v3270 = vmax.f32 %v3142, 0.0
  %v3271 = vmax.f32 %v3143, 0.0
  %v3272 = vmax.f32 %v3144, 0.0
  %v3273 = vmax.f32 %v3145, 0.0
  %v3274 = vmax.f32 %v3146, 0.0
  %v3275 = vmax.f32 %v3147, 0.0
  %v3276 = vmax.f32 %v3148, 0.0
  %v3277 = vmax.f32 %v3149, 0.0
  %v3278 = vmax.f32 %v3150, 0.0
  %v3279 = vmax.f32 %v3151, 0.0
  %v3280 = vmax.f32 %v3152, 0.0
  %v3281 = vmax.f32 %v3153, 0.0
  %v3282 = vmax.f32 %v3154, 0.0
  %v3283 = vmax.f32 %v3155, 0.0
  %v3284 = vmax.f32 %v3156, 0.0
  %v3285 = vmax.f32 %v3157, 0.0
  %v3286 = vmax.f32 %v3158, 0.0
  %v3287 = vmax.f32 %v3159, 0.0
  %v3288 = vmax.f32 %v3160, 0.0
  %v3289 = vmax.f32 %v3161, 0.0
  %v3290 = vmax.f32 %v3162, 0.0
  %v3291 = vmax.f32 %v3163, 0.0
  %v3292 = vmax.f32 %v3164, 0.0
  %v3293 = vmax.f32 %v3165, 0.0
  %v3294 = vmax.f32 %v3166, 0.0
  %v3295 = vmax.f32 %v3167, 0.0
  %v3296 = vmax.f32 %v3168, 0.0
  %v3297 = vmax.f32 %v3169, 0.0
  %v3298 = vmax.f32 %v3170, 0.0
  %v3299 = vmax.f32 %v3171, 0.0
  %v3300 = vmax.f32 %v3172, 0.0
  %v3301 = vmax.f32 %v3173, 0.0
  %v3302 = vmax.f32 %v3174, 0.0
  %v3303 = vmax.f32 %v3175, 0.0
  %v3304 = vmax.f32 %v3176, 0.0
  %v3305 = vmax.f32 %v3177, 0.0
  %v3306 = vmax.f32 %v3178, 0.0
  %v3307 = vmax.f32 %v3179, 0.0
  %v3308 = vmax.f32 %v3180, 0.0
  %v3309 = vmax.f32 %v3181, 0.0
  %v3310 = vmax.f32 %v3182, 0.0
  %v3311 = vmax.f32 %v3183, 0.0
  %v3312 = vmax.f32 %v3184, 0.0
  %v3313 = vmax.f32 %v3185, 0.0
  %v3314 = vmax.f32 %v3186, 0.0
  %v3315 = vmax.f32 %v3187, 0.0
  %v3316 = vmax.f32 %v3188, 0.0
  %v3317 = vmax.f32 %v3189, 0.0
  %v3318 = vmax.f32 %v3190, 0.0
  %v3319 = vmax.f32 %v3191, 0.0
  %v3320 = vmax.f32 %v3192, 0.0
  %v3321 = vmax.f32 %v3193, 0.0
  %v3322 = vmax.f32 %v3194, 0.0
  %v3323 = vmax.f32 %v3195, 0.0
  %v3324 = vmax.f32 %v3196, 0.0
  %v3325 = vmax.f32 %v3197, 0.0
  %v3326 = vmax.f32 %v3198, 0.0
  %v3327 = vmax.f32 %v3199, 0.0
  %v3328 = vmax.f32 %v3200, 0.0
  %v3329 = vmax.f32 %v3201, 0.0
  %v3330 = vmax.f32 %v3202, 0.0
  %v3331 = vmax.f32 %v3203, 0.0
  %v3332 = vmax.f32 %v3204, 0.0
  %v3333 = vmax.f32 %v3205, 0.0
  %v3334 = vmax.f32 %v3206, 0.0
  %v3335 = vmax.f32 %v3207, 0.0
  %v3336 = vmax.f32 %v3208, 0.0
  %v3337 = vmax.f32 %v3209, 0.0
  %v3338 = vmax.f32 %v3210, 0.0
  %v3339 = vmax.f32 %v3211, 0.0
  %v3340 = vmax.f32 %v3212, 0.0
  %v3341 = vmax.f32 %v3213, 0.0
  %v3342 = vmax.f32 %v3214, 0.0
  %v3343 = vmax.f32 %v3215, 0.0
  %v3344 = vmax.f32 %v3216, 0.0
  %v3345 = vmax.f32 %v3217, 0.0
  %v3346 = vmax.f32 %v3218, 0.0
  %v3347 = vmax.f32 %v3219, 0.0
  %v3348 = vmax.f32 %v3220, 0.0
  %v3349 = vmax.f32 %v3221, 0.0
  %v3350 = vmax.f32 %v3222, 0.0
  %v3351 = vmax.f32 %v3223, 0.0
  %v3352 = vmax.f32 %v3224, 0.0
  %v3353 = vmax.f32 %v3225, 0.0
  %v3354 = vmax.f32 %v3226, 0.0
  %v3355 = vmax.f32 %v3227, 0.0
  %v3356 = vpack.c.bf16 %v3230, %v3228
  %v3357 = vpack.c.bf16 %v3231, %v3229
  %v3358 = vpack.c.bf16 %v3234, %v3232
  %v3359 = vpack.c.bf16 %v3235, %v3233
  %v3360 = vpack.c.bf16 %v3238, %v3236
  %v3361 = vpack.c.bf16 %v3239, %v3237
  %v3362 = vpack.c.bf16 %v3242, %v3240
  %v3363 = vpack.c.bf16 %v3243, %v3241
  %v3364 = vpack.c.bf16 %v3246, %v3244
  %v3365 = vpack.c.bf16 %v3247, %v3245
  %v3366 = vpack.c.bf16 %v3250, %v3248
  %v3367 = vpack.c.bf16 %v3251, %v3249
  %v3368 = vpack.c.bf16 %v3254, %v3252
  %v3369 = vpack.c.bf16 %v3255, %v3253
  %v3370 = vpack.c.bf16 %v3258, %v3256
  %v3371 = vpack.c.bf16 %v3259, %v3257
  %v3372 = vpack.c.bf16 %v3262, %v3260
  %v3373 = vpack.c.bf16 %v3263, %v3261
  %v3374 = vpack.c.bf16 %v3266, %v3264
  %v3375 = vpack.c.bf16 %v3267, %v3265
  %v3376 = vpack.c.bf16 %v3270, %v3268
  %v3377 = vpack.c.bf16 %v3271, %v3269
  %v3378 = vpack.c.bf16 %v3274, %v3272
  %v3379 = vpack.c.bf16 %v3275, %v3273
  %v3380 = vpack.c.bf16 %v3278, %v3276
  %v3381 = vpack.c.bf16 %v3279, %v3277
  %v3382 = vpack.c.bf16 %v3282, %v3280
  %v3383 = vpack.c.bf16 %v3283, %v3281
  %v3384 = vpack.c.bf16 %v3286, %v3284
  %v3385 = vpack.c.bf16 %v3287, %v3285
  %v3386 = vpack.c.bf16 %v3290, %v3288
  %v3387 = vpack.c.bf16 %v3291, %v3289
  %v3388 = vpack.c.bf16 %v3294, %v3292
  %v3389 = vpack.c.bf16 %v3295, %v3293
  %v3390 = vpack.c.bf16 %v3298, %v3296
  %v3391 = vpack.c.bf16 %v3299, %v3297
  %v3392 = vpack.c.bf16 %v3302, %v3300
  %v3393 = vpack.c.bf16 %v3303, %v3301
  %v3394 = vpack.c.bf16 %v3306, %v3304
  %v3395 = vpack.c.bf16 %v3307, %v3305
  %v3396 = vpack.c.bf16 %v3310, %v3308
  %v3397 = vpack.c.bf16 %v3311, %v3309
  %v3398 = vpack.c.bf16 %v3314, %v3312
  %v3399 = vpack.c.bf16 %v3315, %v3313
  %v3400 = vpack.c.bf16 %v3318, %v3316
  %v3401 = vpack.c.bf16 %v3319, %v3317
  %v3402 = vpack.c.bf16 %v3322, %v3320
  %v3403 = vpack.c.bf16 %v3323, %v3321
  %v3404 = vpack.c.bf16 %v3326, %v3324
  %v3405 = vpack.c.bf16 %v3327, %v3325
  %v3406 = vpack.c.bf16 %v3330, %v3328
  %v3407 = vpack.c.bf16 %v3331, %v3329
  %v3408 = vpack.c.bf16 %v3334, %v3332
  %v3409 = vpack.c.bf16 %v3335, %v3333
  %v3410 = vpack.c.bf16 %v3338, %v3336
  %v3411 = vpack.c.bf16 %v3339, %v3337
  %v3412 = vpack.c.bf16 %v3342, %v3340
  %v3413 = vpack.c.bf16 %v3343, %v3341
  %v3414 = vpack.c.bf16 %v3346, %v3344
  %v3415 = vpack.c.bf16 %v3347, %v3345
  %v3416 = vpack.c.bf16 %v3350, %v3348
  %v3417 = vpack.c.bf16 %v3351, %v3349
  %v3418 = vpack.c.bf16 %v3354, %v3352
  %v3419 = vpack.c.bf16 %v3355, %v3353
  %v3420 = vld [vmem:[%s11] sm:$0xf]
  %v3421 = vld [vmem:[%s11 + $0x4] sm:$0xf]
  %v3422 = vld [vmem:[%s11 + $0x8] sm:$0xf]
  %v3423 = vld [vmem:[%s11 + $0xc] sm:$0xf]
  %v3424 = vld [vmem:[%s11 + $0x10] sm:$0xf]
  %v3425 = vld [vmem:[%s11 + $0x14] sm:$0xf]
  %v3426 = vld [vmem:[%s11 + $0x18] sm:$0xf]
  %v3427 = vld [vmem:[%s11 + $0x1c] sm:$0xf]
  %v3428 = vld [vmem:[%s11 + $0x20] sm:$0xf]
  %v3429 = vld [vmem:[%s11 + $0x24] sm:$0xf]
  %v3430 = vld [vmem:[%s11 + $0x28] sm:$0xf]
  %v3431 = vld [vmem:[%s11 + $0x2c] sm:$0xf]
  %v3432 = vld [vmem:[%s11 + $0x30] sm:$0xf]
  %v3433 = vld [vmem:[%s11 + $0x34] sm:$0xf]
  %v3434 = vld [vmem:[%s11 + $0x38] sm:$0xf]
  %v3435 = vld [vmem:[%s11 + $0x3c] sm:$0xf]
  %v3436 = vld [vmem:[%s11 + $0x40] sm:$0xf]
  %v3437 = vld [vmem:[%s11 + $0x44] sm:$0xf]
  %v3456 = vunpack.c.l.b16 %v3420
  %v3457 = vunpack.c.l.b16 %v3421
  %v3458 = vunpack.c.l.b16 %v3422
  %v3459 = vunpack.c.l.b16 %v3423
  %v3460 = vunpack.c.l.b16 %v3424
  %v3461 = vunpack.c.l.b16 %v3425
  %v3462 = vunpack.c.l.b16 %v3426
  %v3463 = vunpack.c.l.b16 %v3427
  %v3464 = vunpack.c.l.b16 %v3428
  %v3465 = vunpack.c.l.b16 %v3429
  %v3466 = vunpack.c.l.b16 %v3430
  %v3467 = vunpack.c.l.b16 %v3431
  %v3468 = vunpack.c.l.b16 %v3432
  %v3469 = vunpack.c.l.b16 %v3433
  %v3470 = vunpack.c.l.b16 %v3434
  %v3471 = vunpack.c.l.b16 %v3435
  %v3472 = vunpack.c.l.b16 %v3436
  %v3473 = vunpack.c.l.b16 %v3437
  %v3474 = vpack.c.b16 %v3457, %v3456
  %v3475 = vpack.c.b16 %v3459, %v3458
  %v3476 = vpack.c.b16 %v3461, %v3460
  %v3477 = vpack.c.b16 %v3463, %v3462
  %v3478 = vpack.c.b16 %v3465, %v3464
  %v3479 = vpack.c.b16 %v3467, %v3466
  %v3480 = vpack.c.b16 %v3469, %v3468
  %v3481 = vpack.c.b16 %v3471, %v3470
  %v3482 = vpack.c.b16 %v3473, %v3472
  %v3493 = vsel %vm312, %v3357, 0
  %v3496 = vsel %vm312, %v3359, 0
  %v3499 = vsel %vm312, %v3361, 0
  %v3502 = vsel %vm312, %v3363, 0
  %v3505 = vsel %vm312, %v3365, 0
  %v3508 = vsel %vm312, %v3367, 0
  %v3511 = vsel %vm312, %v3369, 0
  %v3514 = vsel %vm312, %v3371, 0
  %v3517 = vsel %vm312, %v3373, 0
  %v3520 = vsel %vm312, %v3375, 0
  %v3523 = vsel %vm312, %v3377, 0
  %v3526 = vsel %vm312, %v3379, 0
  %v3529 = vsel %vm312, %v3381, 0
  %v3532 = vsel %vm312, %v3383, 0
  %v3535 = vsel %vm312, %v3385, 0
  %v3538 = vsel %vm312, %v3387, 0
  %v3541 = vsel %vm312, %v3389, 0
  %v3544 = vsel %vm312, %v3391, 0
  %v3547 = vsel %vm312, %v3393, 0
  %v3550 = vsel %vm312, %v3395, 0
  %v3553 = vsel %vm312, %v3397, 0
  %v3556 = vsel %vm312, %v3399, 0
  %v3559 = vsel %vm312, %v3401, 0
  %v3562 = vsel %vm312, %v3403, 0
  %v3565 = vsel %vm312, %v3405, 0
  %v3568 = vsel %vm312, %v3407, 0
  %v3571 = vsel %vm312, %v3409, 0
  %v3574 = vsel %vm312, %v3411, 0
  %v3577 = vsel %vm312, %v3413, 0
  %v3580 = vsel %vm312, %v3415, 0
  %v3583 = vsel %vm312, %v3417, 0
  %v3586 = vsel %vm312, %v3419, 0
  %3588 = vmatprep.subr.bf16.mxu0 0
  %3589 = vmatpush1.bf16.msra.mxu0 %v3481
  %3590 = vmatprep.subr.bf16.mxu0 0
  %3591 = vmatpush1.bf16.msra.mxu0 %v3480
  %3592 = vmatprep.subr.bf16.mxu0 0
  %3593 = vmatpush1.bf16.msra.mxu0 %v3479
  %3594 = vmatprep.subr.bf16.mxu0 0
  %3595 = vmatpush1.bf16.msra.mxu0 %v3478
  %3596 = vmatprep.subr.bf16.mxu0 0
  %3597 = vmatpush1.bf16.msra.mxu0 %v3477
  %3598 = vmatprep.subr.bf16.mxu0 0
  %3599 = vmatpush1.bf16.msra.mxu0 %v3476
  %3600 = vmatprep.subr.bf16.mxu0 0
  %3601 = vmatpush1.bf16.msra.mxu0 %v3475
  %3602 = vmatprep.subr.bf16.mxu0 0
  %3603 = vmatpush1.bf16.msra.mxu0 %v3474
  %3604 = vmatprep.subr.bf16.mxu0 0
  %3605 = vmatpush2.bf16.msra.mxu0 0
  %3606 = vmatprep.subr.bf16.mxu0 0
  %3607 = vmatpush2.bf16.msra.mxu0 0
  %3608 = vmatprep.subr.bf16.mxu0 0
  %3609 = vmatpush2.bf16.msra.mxu0 0
  %3610 = vmatprep.subr.bf16.mxu0 0
  %3611 = vmatpush2.bf16.msra.mxu0 0
  %3612 = vmatprep.subr.bf16.mxu0 0
  %3613 = vmatpush2.bf16.msra.mxu0 0
  %3614 = vmatprep.subr.bf16.mxu0 0
  %3615 = vmatpush2.bf16.msra.mxu0 0
  %3616 = vmatprep.subr.bf16.mxu0 0
  %3617 = vmatpush2.bf16.msra.mxu0 0
  %3618 = vmatprep.subr.bf16.mxu0 0
  %3619 = vmatpush2.bf16.msra.mxu0 %v3482
  %3620 = vmatprep.mubr.bf16.mxu0 %v3493
  %3621 = vmatmul.mubr.bf16.gmra.mxu0 %v3356
  %v3622 = vpop.f32.mrf.mxu0
  %v3623 = vadd.f32 0.0, %v3622
  %v3624 = vpop.f32.mrf.mxu0
  %v3625 = vpop.f32.mrf.mxu0
  %v3626 = vadd.f32 0.0, %v3625
  %v3627 = vpop.f32.mrf.mxu0
  %3628 = vmatprep.mubr.bf16.mxu0 %v3496
  %3629 = vmatmul.mubr.bf16.gmra.mxu0 %v3358
  %v3630 = vpop.f32.mrf.mxu0
  %v3631 = vadd.f32 0.0, %v3630
  %v3632 = vpop.f32.mrf.mxu0
  %v3633 = vpop.f32.mrf.mxu0
  %v3634 = vadd.f32 0.0, %v3633
  %v3635 = vpop.f32.mrf.mxu0
  %3636 = vmatprep.mubr.bf16.mxu0 %v3499
  %3637 = vmatmul.mubr.bf16.gmra.mxu0 %v3360
  %v3638 = vpop.f32.mrf.mxu0
  %v3639 = vadd.f32 0.0, %v3638
  %v3640 = vpop.f32.mrf.mxu0
  %v3641 = vpop.f32.mrf.mxu0
  %v3642 = vadd.f32 0.0, %v3641
  %v3643 = vpop.f32.mrf.mxu0
  %3644 = vmatprep.mubr.bf16.mxu0 %v3502
  %3645 = vmatmul.mubr.bf16.gmra.mxu0 %v3362
  %v3646 = vpop.f32.mrf.mxu0
  %v3647 = vadd.f32 0.0, %v3646
  %v3648 = vpop.f32.mrf.mxu0
  %v3649 = vpop.f32.mrf.mxu0
  %v3650 = vadd.f32 0.0, %v3649
  %v3651 = vpop.f32.mrf.mxu0
  %3652 = vmatprep.mubr.bf16.mxu0 %v3505
  %3653 = vmatmul.mubr.bf16.gmra.mxu0 %v3364
  %v3654 = vpop.f32.mrf.mxu0
  %v3655 = vadd.f32 0.0, %v3654
  %v3656 = vpop.f32.mrf.mxu0
  %v3657 = vpop.f32.mrf.mxu0
  %v3658 = vadd.f32 0.0, %v3657
  %v3659 = vpop.f32.mrf.mxu0
  %3660 = vmatprep.mubr.bf16.mxu0 %v3508
  %3661 = vmatmul.mubr.bf16.gmra.mxu0 %v3366
  %v3662 = vpop.f32.mrf.mxu0
  %v3663 = vadd.f32 0.0, %v3662
  %v3664 = vpop.f32.mrf.mxu0
  %v3665 = vpop.f32.mrf.mxu0
  %v3666 = vadd.f32 0.0, %v3665
  %v3667 = vpop.f32.mrf.mxu0
  %3668 = vmatprep.mubr.bf16.mxu0 %v3511
  %3669 = vmatmul.mubr.bf16.gmra.mxu0 %v3368
  %v3670 = vpop.f32.mrf.mxu0
  %v3671 = vadd.f32 0.0, %v3670
  %v3672 = vpop.f32.mrf.mxu0
  %v3673 = vpop.f32.mrf.mxu0
  %v3674 = vadd.f32 0.0, %v3673
  %v3675 = vpop.f32.mrf.mxu0
  %3676 = vmatprep.mubr.bf16.mxu0 %v3514
  %3677 = vmatmul.mubr.bf16.gmra.mxu0 %v3370
  %v3678 = vpop.f32.mrf.mxu0
  %v3679 = vadd.f32 0.0, %v3678
  %v3680 = vpop.f32.mrf.mxu0
  %v3681 = vpop.f32.mrf.mxu0
  %v3682 = vadd.f32 0.0, %v3681
  %v3683 = vpop.f32.mrf.mxu0
  %3684 = vmatprep.mubr.bf16.mxu0 %v3517
  %3685 = vmatmul.mubr.bf16.gmra.mxu0 %v3372
  %v3686 = vpop.f32.mrf.mxu0
  %v3687 = vadd.f32 0.0, %v3686
  %v3688 = vpop.f32.mrf.mxu0
  %v3689 = vpop.f32.mrf.mxu0
  %v3690 = vadd.f32 0.0, %v3689
  %v3691 = vpop.f32.mrf.mxu0
  %3692 = vmatprep.mubr.bf16.mxu0 %v3520
  %3693 = vmatmul.mubr.bf16.gmra.mxu0 %v3374
  %v3694 = vpop.f32.mrf.mxu0
  %v3695 = vadd.f32 0.0, %v3694
  %v3696 = vpop.f32.mrf.mxu0
  %v3697 = vpop.f32.mrf.mxu0
  %v3698 = vadd.f32 0.0, %v3697
  %v3699 = vpop.f32.mrf.mxu0
  %3700 = vmatprep.mubr.bf16.mxu0 %v3523
  %3701 = vmatmul.mubr.bf16.gmra.mxu0 %v3376
  %v3702 = vpop.f32.mrf.mxu0
  %v3703 = vadd.f32 0.0, %v3702
  %v3704 = vpop.f32.mrf.mxu0
  %v3705 = vpop.f32.mrf.mxu0
  %v3706 = vadd.f32 0.0, %v3705
  %v3707 = vpop.f32.mrf.mxu0
  %3708 = vmatprep.mubr.bf16.mxu0 %v3526
  %3709 = vmatmul.mubr.bf16.gmra.mxu0 %v3378
  %v3710 = vpop.f32.mrf.mxu0
  %v3711 = vadd.f32 0.0, %v3710
  %v3712 = vpop.f32.mrf.mxu0
  %v3713 = vpop.f32.mrf.mxu0
  %v3714 = vadd.f32 0.0, %v3713
  %v3715 = vpop.f32.mrf.mxu0
  %3716 = vmatprep.mubr.bf16.mxu0 %v3529
  %3717 = vmatmul.mubr.bf16.gmra.mxu0 %v3380
  %v3718 = vpop.f32.mrf.mxu0
  %v3719 = vadd.f32 0.0, %v3718
  %v3720 = vpop.f32.mrf.mxu0
  %v3721 = vpop.f32.mrf.mxu0
  %v3722 = vadd.f32 0.0, %v3721
  %v3723 = vpop.f32.mrf.mxu0
  %3724 = vmatprep.mubr.bf16.mxu0 %v3532
  %3725 = vmatmul.mubr.bf16.gmra.mxu0 %v3382
  %v3726 = vpop.f32.mrf.mxu0
  %v3727 = vadd.f32 0.0, %v3726
  %v3728 = vpop.f32.mrf.mxu0
  %v3729 = vpop.f32.mrf.mxu0
  %v3730 = vadd.f32 0.0, %v3729
  %v3731 = vpop.f32.mrf.mxu0
  %3732 = vmatprep.mubr.bf16.mxu0 %v3535
  %3733 = vmatmul.mubr.bf16.gmra.mxu0 %v3384
  %v3734 = vpop.f32.mrf.mxu0
  %v3735 = vadd.f32 0.0, %v3734
  %v3736 = vpop.f32.mrf.mxu0
  %v3737 = vpop.f32.mrf.mxu0
  %v3738 = vadd.f32 0.0, %v3737
  %v3739 = vpop.f32.mrf.mxu0
  %3740 = vmatprep.mubr.bf16.mxu0 %v3538
  %3741 = vmatmul.mubr.bf16.gmra.mxu0 %v3386
  %v3742 = vpop.f32.mrf.mxu0
  %v3743 = vadd.f32 0.0, %v3742
  %v3744 = vpop.f32.mrf.mxu0
  %v3745 = vpop.f32.mrf.mxu0
  %v3746 = vadd.f32 0.0, %v3745
  %v3747 = vpop.f32.mrf.mxu0
  %3748 = vmatprep.mubr.bf16.mxu0 %v3541
  %3749 = vmatmul.mubr.bf16.gmra.mxu0 %v3388
  %v3750 = vpop.f32.mrf.mxu0
  %v3751 = vadd.f32 0.0, %v3750
  %v3752 = vpop.f32.mrf.mxu0
  %v3753 = vpop.f32.mrf.mxu0
  %v3754 = vadd.f32 0.0, %v3753
  %v3755 = vpop.f32.mrf.mxu0
  %3756 = vmatprep.mubr.bf16.mxu0 %v3544
  %3757 = vmatmul.mubr.bf16.gmra.mxu0 %v3390
  %v3758 = vpop.f32.mrf.mxu0
  %v3759 = vadd.f32 0.0, %v3758
  %v3760 = vpop.f32.mrf.mxu0
  %v3761 = vpop.f32.mrf.mxu0
  %v3762 = vadd.f32 0.0, %v3761
  %v3763 = vpop.f32.mrf.mxu0
  %3764 = vmatprep.mubr.bf16.mxu0 %v3547
  %3765 = vmatmul.mubr.bf16.gmra.mxu0 %v3392
  %v3766 = vpop.f32.mrf.mxu0
  %v3767 = vadd.f32 0.0, %v3766
  %v3768 = vpop.f32.mrf.mxu0
  %v3769 = vpop.f32.mrf.mxu0
  %v3770 = vadd.f32 0.0, %v3769
  %v3771 = vpop.f32.mrf.mxu0
  %3772 = vmatprep.mubr.bf16.mxu0 %v3550
  %3773 = vmatmul.mubr.bf16.gmra.mxu0 %v3394
  %v3774 = vpop.f32.mrf.mxu0
  %v3775 = vadd.f32 0.0, %v3774
  %v3776 = vpop.f32.mrf.mxu0
  %v3777 = vpop.f32.mrf.mxu0
  %v3778 = vadd.f32 0.0, %v3777
  %v3779 = vpop.f32.mrf.mxu0
  %3780 = vmatprep.mubr.bf16.mxu0 %v3553
  %3781 = vmatmul.mubr.bf16.gmra.mxu0 %v3396
  %v3782 = vpop.f32.mrf.mxu0
  %v3783 = vadd.f32 0.0, %v3782
  %v3784 = vpop.f32.mrf.mxu0
  %v3785 = vpop.f32.mrf.mxu0
  %v3786 = vadd.f32 0.0, %v3785
  %v3787 = vpop.f32.mrf.mxu0
  %3788 = vmatprep.mubr.bf16.mxu0 %v3556
  %3789 = vmatmul.mubr.bf16.gmra.mxu0 %v3398
  %v3790 = vpop.f32.mrf.mxu0
  %v3791 = vadd.f32 0.0, %v3790
  %v3792 = vpop.f32.mrf.mxu0
  %v3793 = vpop.f32.mrf.mxu0
  %v3794 = vadd.f32 0.0, %v3793
  %v3795 = vpop.f32.mrf.mxu0
  %3796 = vmatprep.mubr.bf16.mxu0 %v3559
  %3797 = vmatmul.mubr.bf16.gmra.mxu0 %v3400
  %v3798 = vpop.f32.mrf.mxu0
  %v3799 = vadd.f32 0.0, %v3798
  %v3800 = vpop.f32.mrf.mxu0
  %v3801 = vpop.f32.mrf.mxu0
  %v3802 = vadd.f32 0.0, %v3801
  %v3803 = vpop.f32.mrf.mxu0
  %3804 = vmatprep.mubr.bf16.mxu0 %v3562
  %3805 = vmatmul.mubr.bf16.gmra.mxu0 %v3402
  %v3806 = vpop.f32.mrf.mxu0
  %v3807 = vadd.f32 0.0, %v3806
  %v3808 = vpop.f32.mrf.mxu0
  %v3809 = vpop.f32.mrf.mxu0
  %v3810 = vadd.f32 0.0, %v3809
  %v3811 = vpop.f32.mrf.mxu0
  %3812 = vmatprep.mubr.bf16.mxu0 %v3565
  %3813 = vmatmul.mubr.bf16.gmra.mxu0 %v3404
  %v3814 = vpop.f32.mrf.mxu0
  %v3815 = vadd.f32 0.0, %v3814
  %v3816 = vpop.f32.mrf.mxu0
  %v3817 = vpop.f32.mrf.mxu0
  %v3818 = vadd.f32 0.0, %v3817
  %v3819 = vpop.f32.mrf.mxu0
  %3820 = vmatprep.mubr.bf16.mxu0 %v3568
  %3821 = vmatmul.mubr.bf16.gmra.mxu0 %v3406
  %v3822 = vpop.f32.mrf.mxu0
  %v3823 = vadd.f32 0.0, %v3822
  %v3824 = vpop.f32.mrf.mxu0
  %v3825 = vpop.f32.mrf.mxu0
  %v3826 = vadd.f32 0.0, %v3825
  %v3827 = vpop.f32.mrf.mxu0
  %3828 = vmatprep.mubr.bf16.mxu0 %v3571
  %3829 = vmatmul.mubr.bf16.gmra.mxu0 %v3408
  %v3830 = vpop.f32.mrf.mxu0
  %v3831 = vadd.f32 0.0, %v3830
  %v3832 = vpop.f32.mrf.mxu0
  %v3833 = vpop.f32.mrf.mxu0
  %v3834 = vadd.f32 0.0, %v3833
  %v3835 = vpop.f32.mrf.mxu0
  %3836 = vmatprep.mubr.bf16.mxu0 %v3574
  %3837 = vmatmul.mubr.bf16.gmra.mxu0 %v3410
  %v3838 = vpop.f32.mrf.mxu0
  %v3839 = vadd.f32 0.0, %v3838
  %v3840 = vpop.f32.mrf.mxu0
  %v3841 = vpop.f32.mrf.mxu0
  %v3842 = vadd.f32 0.0, %v3841
  %v3843 = vpop.f32.mrf.mxu0
  %3844 = vmatprep.mubr.bf16.mxu0 %v3577
  %3845 = vmatmul.mubr.bf16.gmra.mxu0 %v3412
  %v3846 = vpop.f32.mrf.mxu0
  %v3847 = vadd.f32 0.0, %v3846
  %v3848 = vpop.f32.mrf.mxu0
  %v3849 = vpop.f32.mrf.mxu0
  %v3850 = vadd.f32 0.0, %v3849
  %v3851 = vpop.f32.mrf.mxu0
  %3852 = vmatprep.mubr.bf16.mxu0 %v3580
  %3853 = vmatmul.mubr.bf16.gmra.mxu0 %v3414
  %v3854 = vpop.f32.mrf.mxu0
  %v3855 = vadd.f32 0.0, %v3854
  %v3856 = vpop.f32.mrf.mxu0
  %v3857 = vpop.f32.mrf.mxu0
  %v3858 = vadd.f32 0.0, %v3857
  %v3859 = vpop.f32.mrf.mxu0
  %3860 = vmatprep.mubr.bf16.mxu0 %v3583
  %3861 = vmatmul.mubr.bf16.gmra.mxu0 %v3416
  %v3862 = vpop.f32.mrf.mxu0
  %v3863 = vadd.f32 0.0, %v3862
  %v3864 = vpop.f32.mrf.mxu0
  %v3865 = vpop.f32.mrf.mxu0
  %v3866 = vadd.f32 0.0, %v3865
  %v3867 = vpop.f32.mrf.mxu0
  %3868 = vmatprep.mubr.bf16.mxu0 %v3586
  %3869 = vmatmul.mubr.bf16.gmra.mxu0 %v3418
  %v3870 = vpop.f32.mrf.mxu0
  %v3871 = vadd.f32 0.0, %v3870
  %v3872 = vpop.f32.mrf.mxu0
  %v3873 = vpop.f32.mrf.mxu0
  %v3874 = vadd.f32 0.0, %v3873
  %v3875 = vpop.f32.mrf.mxu0
  %3876 = vdwg.mxu0
  %v3877 = vld [vmem:[%s12] sm:$0x1]
  %v3879 = vlaneseq
  %v3880 = vshrl.u32 %v3879, 7
  %v3881 = vsub.s32 0, %v3880
  %v3882 = vrot.slane %v3877, %v3881
  %v3884 = vmul.f32 %v3623, %v3882
  %v3885 = vmul.f32 %v3626, %v3882
  %v3886 = vmul.f32 %v3631, %v3882
  %v3887 = vmul.f32 %v3634, %v3882
  %v3888 = vmul.f32 %v3639, %v3882
  %v3889 = vmul.f32 %v3642, %v3882
  %v3890 = vmul.f32 %v3647, %v3882
  %v3891 = vmul.f32 %v3650, %v3882
  %v3892 = vmul.f32 %v3655, %v3882
  %v3893 = vmul.f32 %v3658, %v3882
  %v3894 = vmul.f32 %v3663, %v3882
  %v3895 = vmul.f32 %v3666, %v3882
  %v3896 = vmul.f32 %v3671, %v3882
  %v3897 = vmul.f32 %v3674, %v3882
  %v3898 = vmul.f32 %v3679, %v3882
  %v3899 = vmul.f32 %v3682, %v3882
  %v3900 = vmul.f32 %v3687, %v3882
  %v3901 = vmul.f32 %v3690, %v3882
  %v3902 = vmul.f32 %v3695, %v3882
  %v3903 = vmul.f32 %v3698, %v3882
  %v3904 = vmul.f32 %v3703, %v3882
  %v3905 = vmul.f32 %v3706, %v3882
  %v3906 = vmul.f32 %v3711, %v3882
  %v3907 = vmul.f32 %v3714, %v3882
  %v3908 = vmul.f32 %v3719, %v3882
  %v3909 = vmul.f32 %v3722, %v3882
  %v3910 = vmul.f32 %v3727, %v3882
  %v3911 = vmul.f32 %v3730, %v3882
  %v3912 = vmul.f32 %v3735, %v3882
  %v3913 = vmul.f32 %v3738, %v3882
  %v3914 = vmul.f32 %v3743, %v3882
  %v3915 = vmul.f32 %v3746, %v3882
  %v3916 = vmul.f32 %v3751, %v3882
  %v3917 = vmul.f32 %v3754, %v3882
  %v3918 = vmul.f32 %v3759, %v3882
  %v3919 = vmul.f32 %v3762, %v3882
  %v3920 = vmul.f32 %v3767, %v3882
  %v3921 = vmul.f32 %v3770, %v3882
  %v3922 = vmul.f32 %v3775, %v3882
  %v3923 = vmul.f32 %v3778, %v3882
  %v3924 = vmul.f32 %v3783, %v3882
  %v3925 = vmul.f32 %v3786, %v3882
  %v3926 = vmul.f32 %v3791, %v3882
  %v3927 = vmul.f32 %v3794, %v3882
  %v3928 = vmul.f32 %v3799, %v3882
  %v3929 = vmul.f32 %v3802, %v3882
  %v3930 = vmul.f32 %v3807, %v3882
  %v3931 = vmul.f32 %v3810, %v3882
  %v3932 = vmul.f32 %v3815, %v3882
  %v3933 = vmul.f32 %v3818, %v3882
  %v3934 = vmul.f32 %v3823, %v3882
  %v3935 = vmul.f32 %v3826, %v3882
  %v3936 = vmul.f32 %v3831, %v3882
  %v3937 = vmul.f32 %v3834, %v3882
  %v3938 = vmul.f32 %v3839, %v3882
  %v3939 = vmul.f32 %v3842, %v3882
  %v3940 = vmul.f32 %v3847, %v3882
  %v3941 = vmul.f32 %v3850, %v3882
  %v3942 = vmul.f32 %v3855, %v3882
  %v3943 = vmul.f32 %v3858, %v3882
  %v3944 = vmul.f32 %v3863, %v3882
  %v3945 = vmul.f32 %v3866, %v3882
  %v3946 = vmul.f32 %v3871, %v3882
  %v3947 = vmul.f32 %v3874, %v3882
  %v3948 = vld [vmem:[%s13] sm:$0x1]
  %v3950 = vlaneseq
  %v3951 = vshrl.u32 %v3950, 7
  %v3952 = vsub.s32 0, %v3951
  %v3953 = vrot.slane %v3948, %v3952
  %v3955 = vadd.f32 %v3884, %v3953
  %v3956 = vadd.f32 %v3885, %v3953
  %v3957 = vadd.f32 %v3886, %v3953
  %v3958 = vadd.f32 %v3887, %v3953
  %v3959 = vadd.f32 %v3888, %v3953
  %v3960 = vadd.f32 %v3889, %v3953
  %v3961 = vadd.f32 %v3890, %v3953
  %v3962 = vadd.f32 %v3891, %v3953
  %v3963 = vadd.f32 %v3892, %v3953
  %v3964 = vadd.f32 %v3893, %v3953
  %v3965 = vadd.f32 %v3894, %v3953
  %v3966 = vadd.f32 %v3895, %v3953
  %v3967 = vadd.f32 %v3896, %v3953
  %v3968 = vadd.f32 %v3897, %v3953
  %v3969 = vadd.f32 %v3898, %v3953
  %v3970 = vadd.f32 %v3899, %v3953
  %v3971 = vadd.f32 %v3900, %v3953
  %v3972 = vadd.f32 %v3901, %v3953
  %v3973 = vadd.f32 %v3902, %v3953
  %v3974 = vadd.f32 %v3903, %v3953
  %v3975 = vadd.f32 %v3904, %v3953
  %v3976 = vadd.f32 %v3905, %v3953
  %v3977 = vadd.f32 %v3906, %v3953
  %v3978 = vadd.f32 %v3907, %v3953
  %v3979 = vadd.f32 %v3908, %v3953
  %v3980 = vadd.f32 %v3909, %v3953
  %v3981 = vadd.f32 %v3910, %v3953
  %v3982 = vadd.f32 %v3911, %v3953
  %v3983 = vadd.f32 %v3912, %v3953
  %v3984 = vadd.f32 %v3913, %v3953
  %v3985 = vadd.f32 %v3914, %v3953
  %v3986 = vadd.f32 %v3915, %v3953
  %v3987 = vadd.f32 %v3916, %v3953
  %v3988 = vadd.f32 %v3917, %v3953
  %v3989 = vadd.f32 %v3918, %v3953
  %v3990 = vadd.f32 %v3919, %v3953
  %v3991 = vadd.f32 %v3920, %v3953
  %v3992 = vadd.f32 %v3921, %v3953
  %v3993 = vadd.f32 %v3922, %v3953
  %v3994 = vadd.f32 %v3923, %v3953
  %v3995 = vadd.f32 %v3924, %v3953
  %v3996 = vadd.f32 %v3925, %v3953
  %v3997 = vadd.f32 %v3926, %v3953
  %v3998 = vadd.f32 %v3927, %v3953
  %v3999 = vadd.f32 %v3928, %v3953
  %v4000 = vadd.f32 %v3929, %v3953
  %v4001 = vadd.f32 %v3930, %v3953
  %v4002 = vadd.f32 %v3931, %v3953
  %v4003 = vadd.f32 %v3932, %v3953
  %v4004 = vadd.f32 %v3933, %v3953
  %v4005 = vadd.f32 %v3934, %v3953
  %v4006 = vadd.f32 %v3935, %v3953
  %v4007 = vadd.f32 %v3936, %v3953
  %v4008 = vadd.f32 %v3937, %v3953
  %v4009 = vadd.f32 %v3938, %v3953
  %v4010 = vadd.f32 %v3939, %v3953
  %v4011 = vadd.f32 %v3940, %v3953
  %v4012 = vadd.f32 %v3941, %v3953
  %v4013 = vadd.f32 %v3942, %v3953
  %v4014 = vadd.f32 %v3943, %v3953
  %v4015 = vadd.f32 %v3944, %v3953
  %v4016 = vadd.f32 %v3945, %v3953
  %v4017 = vadd.f32 %v3946, %v3953
  %v4018 = vadd.f32 %v3947, %v3953
  %v4019 = vmax.f32 %v3955, 0.0
  %v4020 = vmax.f32 %v3956, 0.0
  %v4021 = vmax.f32 %v3957, 0.0
  %v4022 = vmax.f32 %v3958, 0.0
  %v4023 = vmax.f32 %v3959, 0.0
  %v4024 = vmax.f32 %v3960, 0.0
  %v4025 = vmax.f32 %v3961, 0.0
  %v4026 = vmax.f32 %v3962, 0.0
  %v4027 = vmax.f32 %v3963, 0.0
  %v4028 = vmax.f32 %v3964, 0.0
  %v4029 = vmax.f32 %v3965, 0.0
  %v4030 = vmax.f32 %v3966, 0.0
  %v4031 = vmax.f32 %v3967, 0.0
  %v4032 = vmax.f32 %v3968, 0.0
  %v4033 = vmax.f32 %v3969, 0.0
  %v4034 = vmax.f32 %v3970, 0.0
  %v4035 = vmax.f32 %v3971, 0.0
  %v4036 = vmax.f32 %v3972, 0.0
  %v4037 = vmax.f32 %v3973, 0.0
  %v4038 = vmax.f32 %v3974, 0.0
  %v4039 = vmax.f32 %v3975, 0.0
  %v4040 = vmax.f32 %v3976, 0.0
  %v4041 = vmax.f32 %v3977, 0.0
  %v4042 = vmax.f32 %v3978, 0.0
  %v4043 = vmax.f32 %v3979, 0.0
  %v4044 = vmax.f32 %v3980, 0.0
  %v4045 = vmax.f32 %v3981, 0.0
  %v4046 = vmax.f32 %v3982, 0.0
  %v4047 = vmax.f32 %v3983, 0.0
  %v4048 = vmax.f32 %v3984, 0.0
  %v4049 = vmax.f32 %v3985, 0.0
  %v4050 = vmax.f32 %v3986, 0.0
  %v4051 = vmax.f32 %v3987, 0.0
  %v4052 = vmax.f32 %v3988, 0.0
  %v4053 = vmax.f32 %v3989, 0.0
  %v4054 = vmax.f32 %v3990, 0.0
  %v4055 = vmax.f32 %v3991, 0.0
  %v4056 = vmax.f32 %v3992, 0.0
  %v4057 = vmax.f32 %v3993, 0.0
  %v4058 = vmax.f32 %v3994, 0.0
  %v4059 = vmax.f32 %v3995, 0.0
  %v4060 = vmax.f32 %v3996, 0.0
  %v4061 = vmax.f32 %v3997, 0.0
  %v4062 = vmax.f32 %v3998, 0.0
  %v4063 = vmax.f32 %v3999, 0.0
  %v4064 = vmax.f32 %v4000, 0.0
  %v4065 = vmax.f32 %v4001, 0.0
  %v4066 = vmax.f32 %v4002, 0.0
  %v4067 = vmax.f32 %v4003, 0.0
  %v4068 = vmax.f32 %v4004, 0.0
  %v4069 = vmax.f32 %v4005, 0.0
  %v4070 = vmax.f32 %v4006, 0.0
  %v4071 = vmax.f32 %v4007, 0.0
  %v4072 = vmax.f32 %v4008, 0.0
  %v4073 = vmax.f32 %v4009, 0.0
  %v4074 = vmax.f32 %v4010, 0.0
  %v4075 = vmax.f32 %v4011, 0.0
  %v4076 = vmax.f32 %v4012, 0.0
  %v4077 = vmax.f32 %v4013, 0.0
  %v4078 = vmax.f32 %v4014, 0.0
  %v4079 = vmax.f32 %v4015, 0.0
  %v4080 = vmax.f32 %v4016, 0.0
  %v4081 = vmax.f32 %v4017, 0.0
  %v4082 = vmax.f32 %v4018, 0.0
  %v4083 = vld [vmem:[%s14] sm:$0xff]
  %v4084 = vld [vmem:[%s1] sm:$0xff]
  %v4085 = vld [vmem:[%s1 + $0x8] sm:$0xff]
  %v4086 = vpack.c.bf16 %v4020, %v4019
  %v4087 = vpack.c.bf16 %v4022, %v4021
  %v4088 = vpack.c.bf16 %v4024, %v4023
  %v4089 = vpack.c.bf16 %v4026, %v4025
  %v4090 = vpack.c.bf16 %v4028, %v4027
  %v4091 = vpack.c.bf16 %v4030, %v4029
  %v4092 = vpack.c.bf16 %v4032, %v4031
  %v4093 = vpack.c.bf16 %v4034, %v4033
  %v4094 = vpack.c.bf16 %v4036, %v4035
  %v4095 = vpack.c.bf16 %v4038, %v4037
  %v4096 = vpack.c.bf16 %v4040, %v4039
  %v4097 = vpack.c.bf16 %v4042, %v4041
  %v4098 = vpack.c.bf16 %v4044, %v4043
  %v4099 = vpack.c.bf16 %v4046, %v4045
  %v4100 = vpack.c.bf16 %v4048, %v4047
  %v4101 = vpack.c.bf16 %v4050, %v4049
  %v4102 = vpack.c.bf16 %v4052, %v4051
  %v4103 = vpack.c.bf16 %v4054, %v4053
  %v4104 = vpack.c.bf16 %v4056, %v4055
  %v4105 = vpack.c.bf16 %v4058, %v4057
  %v4106 = vpack.c.bf16 %v4060, %v4059
  %v4107 = vpack.c.bf16 %v4062, %v4061
  %v4108 = vpack.c.bf16 %v4064, %v4063
  %v4109 = vpack.c.bf16 %v4066, %v4065
  %v4110 = vpack.c.bf16 %v4068, %v4067
  %v4111 = vpack.c.bf16 %v4070, %v4069
  %v4112 = vpack.c.bf16 %v4072, %v4071
  %v4113 = vpack.c.bf16 %v4074, %v4073
  %v4114 = vpack.c.bf16 %v4076, %v4075
  %v4115 = vpack.c.bf16 %v4078, %v4077
  %v4116 = vpack.c.bf16 %v4080, %v4079
  %v4117 = vpack.c.bf16 %v4082, %v4081
  %v4120 = vunpack.c.l.b16 %v4084
  %v4121 = vunpack.c.h.b16 %v4084
  %v4122 = vunpack.c.l.b16 %v4085
  %v4123 = vunpack.c.h.b16 %v4085
  %v4124 = vpack.c.b16 %v4120, %v4120
  %v4125 = vpack.c.b16 %v4121, %v4121
  %v4126 = vpack.c.b16 %v4122, %v4122
  %v4127 = vpack.c.b16 %v4123, %v4123
  %4132 = vmatprep.subr.bf16.mxu0 0
  %4133 = vmatpush1.bf16.msra.mxu0 %v4093
  %4134 = vmatprep.subr.bf16.mxu0 0
  %4135 = vmatpush1.bf16.msra.mxu0 %v4092
  %4136 = vmatprep.subr.bf16.mxu0 0
  %4137 = vmatpush1.bf16.msra.mxu0 %v4091
  %4138 = vmatprep.subr.bf16.mxu0 0
  %4139 = vmatpush1.bf16.msra.mxu0 %v4090
  %4140 = vmatprep.subr.bf16.mxu0 0
  %4141 = vmatpush1.bf16.msra.mxu0 %v4089
  %4142 = vmatprep.subr.bf16.mxu0 0
  %4143 = vmatpush1.bf16.msra.mxu0 %v4088
  %4144 = vmatprep.subr.bf16.mxu0 0
  %4145 = vmatpush1.bf16.msra.mxu0 %v4087
  %4146 = vmatprep.subr.bf16.mxu0 0
  %4147 = vmatpush1.bf16.msra.mxu0 %v4086
  %4148 = vmatprep.subr.bf16.mxu0 0
  %4149 = vmatpush2.bf16.msra.mxu0 %v4101
  %4150 = vmatprep.subr.bf16.mxu0 0
  %4151 = vmatpush2.bf16.msra.mxu0 %v4100
  %4152 = vmatprep.subr.bf16.mxu0 0
  %4153 = vmatpush2.bf16.msra.mxu0 %v4099
  %4154 = vmatprep.subr.bf16.mxu0 0
  %4155 = vmatpush2.bf16.msra.mxu0 %v4098
  %4156 = vmatprep.subr.bf16.mxu0 0
  %4157 = vmatpush2.bf16.msra.mxu0 %v4097
  %4158 = vmatprep.subr.bf16.mxu0 0
  %4159 = vmatpush2.bf16.msra.mxu0 %v4096
  %4160 = vmatprep.subr.bf16.mxu0 0
  %4161 = vmatpush2.bf16.msra.mxu0 %v4095
  %4162 = vmatprep.subr.bf16.mxu0 0
  %4163 = vmatpush2.bf16.msra.mxu0 %v4094
  %4164 = vmatprep.mubr.bf16.mxu0 %v4125
  %4165 = vmatmul.mubr.bf16.gmra.mxu0 %v4124
  %v4166 = vpop.f32.mrf.mxu0
  %v4167 = vadd.f32 0.0, %v4166
  %v4168 = vpop.f32.mrf.mxu0
  %v4169 = vpop.f32.mrf.mxu0
  %v4170 = vpop.f32.mrf.mxu0
  %4171 = vdwg.mxu0
  %4172 = vmatprep.subr.bf16.mxu0 0
  %4173 = vmatpush1.bf16.msra.mxu0 %v4109
  %4174 = vmatprep.subr.bf16.mxu0 0
  %4175 = vmatpush1.bf16.msra.mxu0 %v4108
  %4176 = vmatprep.subr.bf16.mxu0 0
  %4177 = vmatpush1.bf16.msra.mxu0 %v4107
  %4178 = vmatprep.subr.bf16.mxu0 0
  %4179 = vmatpush1.bf16.msra.mxu0 %v4106
  %4180 = vmatprep.subr.bf16.mxu0 0
  %4181 = vmatpush1.bf16.msra.mxu0 %v4105
  %4182 = vmatprep.subr.bf16.mxu0 0
  %4183 = vmatpush1.bf16.msra.mxu0 %v4104
  %4184 = vmatprep.subr.bf16.mxu0 0
  %4185 = vmatpush1.bf16.msra.mxu0 %v4103
  %4186 = vmatprep.subr.bf16.mxu0 0
  %4187 = vmatpush1.bf16.msra.mxu0 %v4102
  %4188 = vmatprep.subr.bf16.mxu0 0
  %4189 = vmatpush2.bf16.msra.mxu0 %v4117
  %4190 = vmatprep.subr.bf16.mxu0 0
  %4191 = vmatpush2.bf16.msra.mxu0 %v4116
  %4192 = vmatprep.subr.bf16.mxu0 0
  %4193 = vmatpush2.bf16.msra.mxu0 %v4115
  %4194 = vmatprep.subr.bf16.mxu0 0
  %4195 = vmatpush2.bf16.msra.mxu0 %v4114
  %4196 = vmatprep.subr.bf16.mxu0 0
  %4197 = vmatpush2.bf16.msra.mxu0 %v4113
  %4198 = vmatprep.subr.bf16.mxu0 0
  %4199 = vmatpush2.bf16.msra.mxu0 %v4112
  %4200 = vmatprep.subr.bf16.mxu0 0
  %4201 = vmatpush2.bf16.msra.mxu0 %v4111
  %4202 = vmatprep.subr.bf16.mxu0 0
  %4203 = vmatpush2.bf16.msra.mxu0 %v4110
  %4204 = vmatprep.mubr.bf16.mxu0 %v4127
  %4205 = vmatmul.mubr.bf16.gmra.mxu0 %v4126
  %v4206 = vpop.f32.mrf.mxu0
  %v4207 = vadd.f32 %v4167, %v4206
  %v4208 = vpop.f32.mrf.mxu0
  %v4209 = vpop.f32.mrf.mxu0
  %v4210 = vpop.f32.mrf.mxu0
  %4211 = vdwg.mxu0
  %v4212 = vadd.f32 %v4083, %v4207
  %vm4213 = vcmask 261120
  %4214 = vst.msk [vmem:[%s14] sm:$0xff] %vm4213, %v4212
  // Predicated region
  $region62: #{spectral_encoder_forward.1} parent=0 // pred_check
    _
  $region63: #{spectral_encoder_forward.1} parent=0 // pred_check_branch
    %4216 = sbr.rel (0) target = $region65
  $region64: #{spectral_encoder_forward.1} parent=0 // pred_region
    _
  $region65: #{spectral_encoder_forward.1} parent=0 // pred_fallthru
    _
  // Predicated region
  $region66: #{spectral_encoder_forward.1} parent=0 // pred_check
    _
  $region67: #{spectral_encoder_forward.1} parent=0 // pred_check_branch
    %4218 = sbr.rel (0) target = $region69
  $region68: #{spectral_encoder_forward.1} parent=0 // pred_region
    _
  $region69: #{spectral_encoder_forward.1} parent=0 // pred_fallthru
    _

</llo_original>
